<compile_context>
chip_gen: v6e
topology: v6e:2x2x1
jax: 0.10.0
libtpu: 0.0.40
codegen_flags: <defaults>
</compile_context>

<pallas_src>
import functools

import jax
import jax.numpy as jnp
from jax import lax
from jax.experimental import pallas as pl
from jax.experimental.pallas import tpu as pltpu


def s2s_readout_kernel(x_ref, wg_ref, wr_ref, b_ref,
                       w1q_ref, w1r_ref, b1_ref, w2_ref, b2_ref, w3_ref, b3_ref,
                       out_ref, *, nin, steps, unroll):
    H = nin
    TB = x_ref.shape[0]

    # x is loop-invariant: load once; attention math stays f32 on the VPU/XLU (v5e-safe).
    x = x_ref[...].astype(jnp.float32)                     # (TB, N, D)
    wg = wg_ref[...]                                       # (H, 4H)  (Wq + Whh) folded
    wr = wr_ref[...]                                       # (H, 4H)
    # Hoist the bias broadcast out of the recurrence (JAX does not CSE broadcast_in_dim).
    b_full = jnp.broadcast_to(b_ref[...], (TB, 4 * H)).astype(jnp.float32)

    def mxu(a, w):
        # bf16 (or f32) operands, f32 accumulation on the MXU.
        return jnp.dot(a.astype(w.dtype), w, preferred_element_type=jnp.float32)

    # TODO(synk): only num_layers=1 is implemented (S2SReadout uses the default 1-layer LSTM).
    def step(_, carry):
        h, c, r = carry                                    # (TB, H) f32 each
        # ---- LSTM cell, PyTorch gate order (i, f, g, o).  Input [q, r] via split weights;
        #      Whh folded into wg because the LSTM input q equals the hidden state h. ----
        gates = mxu(h, wg) + mxu(r, wr) + b_full           # (TB, 4H) f32
        s = jax.nn.sigmoid(gates)                          # full-width: 2 EUP pushes
        t = jnp.tanh(gates)
        # NOTE: H is typically < 128, so these are masked sub-vreg lane slices (XLU);
        # cheap relative to the per-step matmuls and overlapped with MXU/EUP work.
        i = s[:, 0 * H:1 * H]
        f = s[:, 1 * H:2 * H]
        g = t[:, 2 * H:3 * H]
        o = s[:, 3 * H:4 * H]
        c_new = f * c + i * g
        q = o * jnp.tanh(c_new)                            # (TB, H) == h_new == q_t

        # ---- attention over the set: block-wide multiply + reduce (VPU/XLU), exact
        #      f32 softmax.  No per-set matvecs, no second pre-transposed copy of x. ----
        e = jnp.sum(q[:, None, :] * x, axis=-1)            # (TB, N)
        e_max = jnp.max(e, axis=-1, keepdims=True)
        p = jnp.exp(e - e_max)                             # (TB, N)
        p = p / jnp.sum(p, axis=-1, keepdims=True)         # exact divide (parity)
        r_new = jnp.sum(p[:, :, None] * x, axis=1)         # (TB, D)
        return q, c_new, r_new

    z = jnp.zeros((TB, H), jnp.float32)
    q, _, r = lax.fori_loop(0, steps, step, (z, z, z), unroll=unroll)

    # ---- MLP head: 3x (Linear + ReLU); q_star = [q, r] never materialized (split W1).
    #      (FCLayer never instantiates batch-norm; dropout=0 in this module config.) ----
    h1 = jnp.maximum(mxu(q, w1q_ref[...]) + mxu(r, w1r_ref[...]) + b1_ref[...], 0.0)
    h2 = jnp.maximum(mxu(h1, w2_ref[...]) + b2_ref[...], 0.0)
    h3 = jnp.maximum(mxu(h2, w3_ref[...]) + b3_ref[...], 0.0)   # final_activation='relu'
    out_ref[...] = h3.astype(out_ref.dtype)


def s2s_readout(x, params, steps=None, block_b=128, use_bf16=True):
    """Pallas S2SReadout forward. x: (B, N, D) -> (B, out_size) float32."""
    B, N, D = x.shape
    nin = D
    nhid = 2 * nin                                   # Set2Set default: nhid = nin * 2
    steps = steps if steps is not None else N        # explicit None check (steps=0 stays 0)

    w_ih, w_hh = params["w_ih"], params["w_hh"]
    assert w_ih.shape == (4 * nin, nhid), w_ih.shape
    assert w_hh.shape == (4 * nin, nin), w_hh.shape

    mxu_dtype = jnp.bfloat16 if use_bf16 else jnp.float32

    # LSTM weights: transpose, split the [q, r] input, and fold Whh into the q weight.
    wq_t = jnp.transpose(w_ih[:, :nin])              # (nin, 4*nin)
    wr_t = jnp.transpose(w_ih[:, nin:])              # (nin, 4*nin)
    whh_t = jnp.transpose(w_hh)                      # (nin, 4*nin)
    wg = (wq_t + whh_t).astype(mxu_dtype)
    wr = wr_t.astype(mxu_dtype)
    b = (params["b_ih"] + params["b_hh"]).reshape(1, 4 * nin).astype(jnp.float32)

    # MLP weights, (in, out) layout; first layer split the same way as the LSTM input.
    w1, w2, w3 = params["w1"], params["w2"], params["w3"]
    assert w1.shape[0] == nhid, w1.shape
    hidden = w1.shape[1]
    out_size = w3.shape[1]
    w1q = w1[:nin].astype(mxu_dtype)
    w1r = w1[nin:].astype(mxu_dtype)
    w2c = w2.astype(mxu_dtype)
    w3c = w3.astype(mxu_dtype)
    b1 = params["b1"].reshape(1, hidden).astype(jnp.float32)
    b2 = params["b2"].reshape(1, w2.shape[1]).astype(jnp.float32)
    b3 = params["b3"].reshape(1, out_size).astype(jnp.float32)

    # ---- batch tiling: TB sets per grid invocation (128 is a good cross-gen default:
    #      >= v5e MXU rows; bump to 256 on v6e/v7x when B allows). ----
    TB = min(block_b, B)
    B_pad = pl.cdiv(B, TB) * TB
    x_in = x if B_pad == B else jnp.pad(x, ((0, B_pad - B), (0, 0), (0, 0)))
    grid = (B_pad // TB,)

    # VMEM budget re-derived from the actual block footprint (v7x: 64 MiB/TC physical).
    x_block_bytes = TB * N * D * x_in.dtype.itemsize
    w_bytes = sum(int(a.size) * a.dtype.itemsize
                  for a in (wg, wr, b, w1q, w1r, b1, w2c, b2, w3c, b3))
    out_block_bytes = TB * out_size * 4
    vmem_bytes = 2 * x_block_bytes + w_bytes + 2 * out_block_bytes + (4 << 20)
    vmem_limit = int(min(max(vmem_bytes, 16 << 20), 48 << 20))

    unroll = True if steps <= 16 else 4              # partial unroll for long recurrences

    kernel = functools.partial(s2s_readout_kernel, nin=nin, steps=steps, unroll=unroll)

    def wspec(a):                                    # full-array, VMEM-resident weight block.
        # Constant block index -> Pallas fetches it once; loop-invariant across the grid.
        # (Could also be single-buffered via pipeline_mode if weights ever get large.)
        assert a.ndim == 2
        return pl.BlockSpec(a.shape, lambda bi: (0, 0))

    out_pad = pl.pallas_call(
        kernel,
        out_shape=jax.ShapeDtypeStruct((B_pad, out_size), jnp.float32),
        grid=grid,                                   # one tile of TB sets per grid step
        in_specs=[
            pl.BlockSpec((TB, N, D), lambda bi: (bi, 0, 0)),   # x (single copy, no x^T)
            wspec(wg), wspec(wr), wspec(b),
            wspec(w1q), wspec(w1r), wspec(b1),
            wspec(w2c), wspec(b2), wspec(w3c), wspec(b3),
        ],
        # 2-D, sublane/lane-dense output block; one writeback DMA per TB sets.
        # (If out_size << 128 ever dominates, pad it to 128 lanes in the wrapper.)
        out_specs=pl.BlockSpec((TB, out_size), lambda bi: (bi, 0)),
        compiler_params=pltpu.CompilerParams(
            dimension_semantics=("parallel",),       # megacore: both TCs on v7x
            vmem_limit_bytes=vmem_limit),
    )(x_in, wg, wr, b, w1q, w1r, b1, w2c, b2, w3c, b3)
    return out_pad[:B]


def s2s_readout_ref(x, params, steps=None):
    """Pure-JAX reference mirroring the PyTorch S2SReadout forward exactly."""
    B, N, D = x.shape
    nin, nhid = D, 2 * D
    steps = steps if steps is not None else N
    w_ih, w_hh = params["w_ih"], params["w_hh"]
    b_ih, b_hh = params["b_ih"], params["b_hh"]
    h = jnp.zeros((B, nin), jnp.float32)
    c = jnp.zeros((B, nin), jnp.float32)
    q_star = jnp.zeros((B, nhid), jnp.float32)
    H = nin
    for _ in range(steps):
        gates = q_star @ w_ih.T + b_ih + h @ w_hh.T + b_hh
        i = jax.nn.sigmoid(gates[:, 0 * H:1 * H])
        f = jax.nn.sigmoid(gates[:, 1 * H:2 * H])
        g = jnp.tanh(gates[:, 2 * H:3 * H])
        o = jax.nn.sigmoid(gates[:, 3 * H:4 * H])
        c = f * c + i * g
        h = o * jnp.tanh(c)
        e = jnp.einsum("bnd,bd->bn", x, h)
        a = jax.nn.softmax(e, axis=1)
        r = jnp.einsum("bn,bnd->bd", a, x)
        q_star = jnp.concatenate([h, r], axis=-1)
    y = jax.nn.relu(q_star @ params["w1"] + params["b1"])
    y = jax.nn.relu(y @ params["w2"] + params["b2"])
    y = jax.nn.relu(y @ params["w3"] + params["b3"])
    return y


def init_params(key, nin, hidden, out_size):
    """Deterministic init: LSTM weights U(-1/sqrt(nin), 1/sqrt(nin)); small random MLP."""
    nhid = 2 * nin
    ks = jax.random.split(key, 10)
    u = lambda kk, shape, s: jax.random.uniform(kk, shape, jnp.float32, -s, s)
    k_lstm = 1.0 / float(jnp.sqrt(jnp.float32(nin)))
    k1 = 1.0 / float(jnp.sqrt(jnp.float32(nhid)))
    k2 = 1.0 / float(jnp.sqrt(jnp.float32(hidden)))
    return {
        "w_ih": u(ks[0], (4 * nin, nhid), k_lstm),   # weight_ih_l0
        "w_hh": u(ks[1], (4 * nin, nin), k_lstm),    # weight_hh_l0
        "b_ih": u(ks[2], (4 * nin,), k_lstm),        # bias_ih_l0
        "b_hh": u(ks[3], (4 * nin,), k_lstm),        # bias_hh_l0
        "w1": u(ks[4], (nhid, hidden), k1),          # FC1: 2*nin -> hidden
        "b1": u(ks[5], (hidden,), 0.1),
        "w2": u(ks[6], (hidden, hidden), k2),        # FC2: hidden -> hidden
        "b2": u(ks[7], (hidden,), 0.1),
        "w3": u(ks[8], (hidden, out_size), k2),      # FC3: hidden -> out
        "b3": u(ks[9], (out_size,), 0.1),
    }


if __name__ == "__main__":
    B, N, nin = 8, 8, 32
    hidden, out_size = 64, 16
    key = jax.random.PRNGKey(0)
    kx, kp = jax.random.split(key)
    x = jax.random.normal(kx, (B, N, nin), jnp.float32)
    params = init_params(kp, nin, hidden, out_size)

    ref = s2s_readout_ref(x, params)

    # f32 MXU-operand path: tight parity with the PyTorch math (exact softmax divide).
    out_f32 = jax.block_until_ready(s2s_readout(x, params, use_bf16=False))
    assert out_f32.shape == (B, out_size), out_f32.shape
    err_f32 = float(jnp.max(jnp.abs(out_f32 - ref)))
    assert jnp.allclose(out_f32, ref, atol=1e-3, rtol=1e-3), err_f32

    # bf16 MXU-operand path (perf config for v5e/v6e/v7x): f32 accumulation + f32
    # elementwise/softmax math keep the deviation at the few-1e-3 level.
    out_bf16 = jax.block_until_ready(s2s_readout(x, params, use_bf16=True))
    err_bf16 = float(jnp.max(jnp.abs(out_bf16 - ref)))
    assert jnp.allclose(out_bf16, ref, atol=2e-2, rtol=2e-2), err_bf16

    print("KERNEL_OK")
</pallas_src>

<mosaic_0001>
module attributes {stable_mosaic.version = 11 : i64} {
  func.func @s2s_readout_kernel(%arg0: i32, %arg1: memref<8x8x32xf32, #tpu.memory_space<vmem>>, %arg2: memref<32x128xf32, #tpu.memory_space<vmem>>, %arg3: memref<32x128xf32, #tpu.memory_space<vmem>>, %arg4: memref<1x128xf32, #tpu.memory_space<vmem>>, %arg5: memref<32x64xf32, #tpu.memory_space<vmem>>, %arg6: memref<32x64xf32, #tpu.memory_space<vmem>>, %arg7: memref<1x64xf32, #tpu.memory_space<vmem>>, %arg8: memref<64x64xf32, #tpu.memory_space<vmem>>, %arg9: memref<1x64xf32, #tpu.memory_space<vmem>>, %arg10: memref<64x16xf32, #tpu.memory_space<vmem>>, %arg11: memref<1x16xf32, #tpu.memory_space<vmem>>, %arg12: memref<8x16xf32, #tpu.memory_space<vmem>>) attributes {dimension_semantics = [#tpu.dimension_semantics<parallel>], iteration_bounds = array<i64: 1>, scalar_prefetch = 0 : i64, scratch_operands = 0 : i64, tpu.core_type = #tpu.core_type<tc>, window_params = [{transform_indices = @transform_0, window_bounds = array<i64: 8, 8, 32>}, {pipeline_mode = #tpu.pipeline_mode<synchronous>, transform_indices = @transform_1, window_bounds = array<i64: 32, 128>}, {pipeline_mode = #tpu.pipeline_mode<synchronous>, transform_indices = @transform_2, window_bounds = array<i64: 32, 128>}, {pipeline_mode = #tpu.pipeline_mode<synchronous>, transform_indices = @transform_3, window_bounds = array<i64: 1, 128>}, {pipeline_mode = #tpu.pipeline_mode<synchronous>, transform_indices = @transform_4, window_bounds = array<i64: 32, 64>}, {pipeline_mode = #tpu.pipeline_mode<synchronous>, transform_indices = @transform_5, window_bounds = array<i64: 32, 64>}, {pipeline_mode = #tpu.pipeline_mode<synchronous>, transform_indices = @transform_6, window_bounds = array<i64: 1, 64>}, {pipeline_mode = #tpu.pipeline_mode<synchronous>, transform_indices = @transform_7, window_bounds = array<i64: 64, 64>}, {pipeline_mode = #tpu.pipeline_mode<synchronous>, transform_indices = @transform_8, window_bounds = array<i64: 1, 64>}, {pipeline_mode = #tpu.pipeline_mode<synchronous>, transform_indices = @transform_9, window_bounds = array<i64: 64, 16>}, {pipeline_mode = #tpu.pipeline_mode<synchronous>, transform_indices = @transform_10, window_bounds = array<i64: 1, 16>}, {transform_indices = @transform_11, window_bounds = array<i64: 8, 16>}]} {
    %c0 = arith.constant 0 : index
    %c0_0 = arith.constant 0 : index
    %c0_1 = arith.constant 0 : index
    %0 = vector.load %arg1[%c0, %c0_0, %c0_1] : memref<8x8x32xf32, #tpu.memory_space<vmem>>, vector<8x8x32xf32>
    %c0_2 = arith.constant 0 : index
    %c0_3 = arith.constant 0 : index
    %1 = vector.load %arg2[%c0_2, %c0_3] : memref<32x128xf32, #tpu.memory_space<vmem>>, vector<32x128xf32>
    %c0_4 = arith.constant 0 : index
    %c0_5 = arith.constant 0 : index
    %2 = vector.load %arg3[%c0_4, %c0_5] : memref<32x128xf32, #tpu.memory_space<vmem>>, vector<32x128xf32>
    %c0_6 = arith.constant 0 : index
    %c0_7 = arith.constant 0 : index
    %3 = vector.load %arg4[%c0_6, %c0_7] : memref<1x128xf32, #tpu.memory_space<vmem>>, vector<1x128xf32>
    %4 = vector.shape_cast %3 : vector<1x128xf32> to vector<1x128xf32>
    %5 = vector.broadcast %4 : vector<1x128xf32> to vector<8x128xf32>
    %cst = arith.constant 0.000000e+00 : f32
    %6 = vector.broadcast %cst : f32 to vector<8x32xf32>
    %c0_i32 = arith.constant 0 : i32
    %cst_8 = arith.constant dense<0.000000e+00> : vector<8x128xf32>
    %7 = tpu.matmul %6, %1, %cst_8 {dimension_numbers = #tpu.dot_dimension_numbers<[1], [0], [0], [1], [0, 0, 1, 1], [], []>} : vector<8x32xf32>, vector<32x128xf32>, vector<8x128xf32> -> vector<8x128xf32>
    %cst_9 = arith.constant dense<0.000000e+00> : vector<8x128xf32>
    %8 = tpu.matmul %6, %2, %cst_9 {dimension_numbers = #tpu.dot_dimension_numbers<[1], [0], [0], [1], [0, 0, 1, 1], [], []>} : vector<8x32xf32>, vector<32x128xf32>, vector<8x128xf32> -> vector<8x128xf32>
    %9 = arith.addf %7, %8 : vector<8x128xf32>
    %10 = arith.addf %9, %5 : vector<8x128xf32>
    %11 = arith.negf %10 : vector<8x128xf32>
    %12 = math.exp %11 : vector<8x128xf32>
    %cst_10 = arith.constant 1.000000e+00 : f32
    %13 = vector.broadcast %cst_10 : f32 to vector<8x128xf32>
    %14 = arith.addf %13, %12 : vector<8x128xf32>
    %15 = arith.divf %13, %14 : vector<8x128xf32>
    %16 = math.tanh %10 : vector<8x128xf32>
    %17 = vector.extract_strided_slice %15 {offsets = [0, 0], sizes = [8, 32], strides = [1, 1]} : vector<8x128xf32> to vector<8x32xf32>
    %18 = vector.extract_strided_slice %15 {offsets = [0, 32], sizes = [8, 32], strides = [1, 1]} : vector<8x128xf32> to vector<8x32xf32>
    %19 = vector.extract_strided_slice %16 {offsets = [0, 64], sizes = [8, 32], strides = [1, 1]} : vector<8x128xf32> to vector<8x32xf32>
    %20 = vector.extract_strided_slice %15 {offsets = [0, 96], sizes = [8, 32], strides = [1, 1]} : vector<8x128xf32> to vector<8x32xf32>
    %21 = arith.mulf %18, %6 : vector<8x32xf32>
    %22 = arith.mulf %17, %19 : vector<8x32xf32>
    %23 = arith.addf %21, %22 : vector<8x32xf32>
    %24 = math.tanh %23 : vector<8x32xf32>
    %25 = arith.mulf %20, %24 : vector<8x32xf32>
    %26 = vector.shape_cast %25 : vector<8x32xf32> to vector<8x1x32xf32>
    %27 = vector.broadcast %26 : vector<8x1x32xf32> to vector<8x8x32xf32>
    %28 = arith.mulf %27, %0 : vector<8x8x32xf32>
    %cst_11 = arith.constant dense<0.000000e+00> : vector<8x8xf32>
    %29 = vector.multi_reduction <add>, %28, %cst_11 [2] : vector<8x8x32xf32> to vector<8x8xf32>
    %cst_12 = arith.constant dense<0xFF800000> : vector<8xf32>
    %30 = vector.multi_reduction <maximumf>, %29, %cst_12 [1] : vector<8x8xf32> to vector<8xf32>
    %31 = vector.shape_cast %30 : vector<8xf32> to vector<8x1xf32>
    %32 = vector.broadcast %31 : vector<8x1xf32> to vector<8x8xf32>
    %33 = arith.subf %29, %32 : vector<8x8xf32>
    %34 = math.exp %33 : vector<8x8xf32>
    %cst_13 = arith.constant dense<0.000000e+00> : vector<8xf32>
    %35 = vector.multi_reduction <add>, %34, %cst_13 [1] : vector<8x8xf32> to vector<8xf32>
    %36 = vector.shape_cast %35 : vector<8xf32> to vector<8x1xf32>
    %37 = vector.broadcast %36 : vector<8x1xf32> to vector<8x8xf32>
    %38 = arith.divf %34, %37 : vector<8x8xf32>
    %39 = vector.shape_cast %38 : vector<8x8xf32> to vector<8x8x1xf32>
    %40 = vector.broadcast %39 : vector<8x8x1xf32> to vector<8x8x32xf32>
    %41 = arith.mulf %40, %0 : vector<8x8x32xf32>
    %cst_14 = arith.constant dense<0.000000e+00> : vector<8x32xf32>
    %42 = vector.multi_reduction <add>, %41, %cst_14 [1] : vector<8x8x32xf32> to vector<8x32xf32>
    %c1_i32 = arith.constant 1 : i32
    %cst_15 = arith.constant dense<0.000000e+00> : vector<8x128xf32>
    %43 = tpu.matmul %25, %1, %cst_15 {dimension_numbers = #tpu.dot_dimension_numbers<[1], [0], [0], [1], [0, 0, 1, 1], [], []>} : vector<8x32xf32>, vector<32x128xf32>, vector<8x128xf32> -> vector<8x128xf32>
    %cst_16 = arith.constant dense<0.000000e+00> : vector<8x128xf32>
    %44 = tpu.matmul %42, %2, %cst_16 {dimension_numbers = #tpu.dot_dimension_numbers<[1], [0], [0], [1], [0, 0, 1, 1], [], []>} : vector<8x32xf32>, vector<32x128xf32>, vector<8x128xf32> -> vector<8x128xf32>
    %45 = arith.addf %43, %44 : vector<8x128xf32>
    %46 = arith.addf %45, %5 : vector<8x128xf32>
    %47 = arith.negf %46 : vector<8x128xf32>
    %48 = math.exp %47 : vector<8x128xf32>
    %cst_17 = arith.constant 1.000000e+00 : f32
    %49 = vector.broadcast %cst_17 : f32 to vector<8x128xf32>
    %50 = arith.addf %49, %48 : vector<8x128xf32>
    %51 = arith.divf %49, %50 : vector<8x128xf32>
    %52 = math.tanh %46 : vector<8x128xf32>
    %53 = vector.extract_strided_slice %51 {offsets = [0, 0], sizes = [8, 32], strides = [1, 1]} : vector<8x128xf32> to vector<8x32xf32>
    %54 = vector.extract_strided_slice %51 {offsets = [0, 32], sizes = [8, 32], strides = [1, 1]} : vector<8x128xf32> to vector<8x32xf32>
    %55 = vector.extract_strided_slice %52 {offsets = [0, 64], sizes = [8, 32], strides = [1, 1]} : vector<8x128xf32> to vector<8x32xf32>
    %56 = vector.extract_strided_slice %51 {offsets = [0, 96], sizes = [8, 32], strides = [1, 1]} : vector<8x128xf32> to vector<8x32xf32>
    %57 = arith.mulf %54, %23 : vector<8x32xf32>
    %58 = arith.mulf %53, %55 : vector<8x32xf32>
    %59 = arith.addf %57, %58 : vector<8x32xf32>
    %60 = math.tanh %59 : vector<8x32xf32>
    %61 = arith.mulf %56, %60 : vector<8x32xf32>
    %62 = vector.shape_cast %61 : vector<8x32xf32> to vector<8x1x32xf32>
    %63 = vector.broadcast %62 : vector<8x1x32xf32> to vector<8x8x32xf32>
    %64 = arith.mulf %63, %0 : vector<8x8x32xf32>
    %cst_18 = arith.constant dense<0.000000e+00> : vector<8x8xf32>
    %65 = vector.multi_reduction <add>, %64, %cst_18 [2] : vector<8x8x32xf32> to vector<8x8xf32>
    %cst_19 = arith.constant dense<0xFF800000> : vector<8xf32>
    %66 = vector.multi_reduction <maximumf>, %65, %cst_19 [1] : vector<8x8xf32> to vector<8xf32>
    %67 = vector.shape_cast %66 : vector<8xf32> to vector<8x1xf32>
    %68 = vector.broadcast %67 : vector<8x1xf32> to vector<8x8xf32>
    %69 = arith.subf %65, %68 : vector<8x8xf32>
    %70 = math.exp %69 : vector<8x8xf32>
    %cst_20 = arith.constant dense<0.000000e+00> : vector<8xf32>
    %71 = vector.multi_reduction <add>, %70, %cst_20 [1] : vector<8x8xf32> to vector<8xf32>
    %72 = vector.shape_cast %71 : vector<8xf32> to vector<8x1xf32>
    %73 = vector.broadcast %72 : vector<8x1xf32> to vector<8x8xf32>
    %74 = arith.divf %70, %73 : vector<8x8xf32>
    %75 = vector.shape_cast %74 : vector<8x8xf32> to vector<8x8x1xf32>
    %76 = vector.broadcast %75 : vector<8x8x1xf32> to vector<8x8x32xf32>
    %77 = arith.mulf %76, %0 : vector<8x8x32xf32>
    %cst_21 = arith.constant dense<0.000000e+00> : vector<8x32xf32>
    %78 = vector.multi_reduction <add>, %77, %cst_21 [1] : vector<8x8x32xf32> to vector<8x32xf32>
    %c2_i32 = arith.constant 2 : i32
    %cst_22 = arith.constant dense<0.000000e+00> : vector<8x128xf32>
    %79 = tpu.matmul %61, %1, %cst_22 {dimension_numbers = #tpu.dot_dimension_numbers<[1], [0], [0], [1], [0, 0, 1, 1], [], []>} : vector<8x32xf32>, vector<32x128xf32>, vector<8x128xf32> -> vector<8x128xf32>
    %cst_23 = arith.constant dense<0.000000e+00> : vector<8x128xf32>
    %80 = tpu.matmul %78, %2, %cst_23 {dimension_numbers = #tpu.dot_dimension_numbers<[1], [0], [0], [1], [0, 0, 1, 1], [], []>} : vector<8x32xf32>, vector<32x128xf32>, vector<8x128xf32> -> vector<8x128xf32>
    %81 = arith.addf %79, %80 : vector<8x128xf32>
    %82 = arith.addf %81, %5 : vector<8x128xf32>
    %83 = arith.negf %82 : vector<8x128xf32>
    %84 = math.exp %83 : vector<8x128xf32>
    %cst_24 = arith.constant 1.000000e+00 : f32
    %85 = vector.broadcast %cst_24 : f32 to vector<8x128xf32>
    %86 = arith.addf %85, %84 : vector<8x128xf32>
    %87 = arith.divf %85, %86 : vector<8x128xf32>
    %88 = math.tanh %82 : vector<8x128xf32>
    %89 = vector.extract_strided_slice %87 {offsets = [0, 0], sizes = [8, 32], strides = [1, 1]} : vector<8x128xf32> to vector<8x32xf32>
    %90 = vector.extract_strided_slice %87 {offsets = [0, 32], sizes = [8, 32], strides = [1, 1]} : vector<8x128xf32> to vector<8x32xf32>
    %91 = vector.extract_strided_slice %88 {offsets = [0, 64], sizes = [8, 32], strides = [1, 1]} : vector<8x128xf32> to vector<8x32xf32>
    %92 = vector.extract_strided_slice %87 {offsets = [0, 96], sizes = [8, 32], strides = [1, 1]} : vector<8x128xf32> to vector<8x32xf32>
    %93 = arith.mulf %90, %59 : vector<8x32xf32>
    %94 = arith.mulf %89, %91 : vector<8x32xf32>
    %95 = arith.addf %93, %94 : vector<8x32xf32>
    %96 = math.tanh %95 : vector<8x32xf32>
    %97 = arith.mulf %92, %96 : vector<8x32xf32>
    %98 = vector.shape_cast %97 : vector<8x32xf32> to vector<8x1x32xf32>
    %99 = vector.broadcast %98 : vector<8x1x32xf32> to vector<8x8x32xf32>
    %100 = arith.mulf %99, %0 : vector<8x8x32xf32>
    %cst_25 = arith.constant dense<0.000000e+00> : vector<8x8xf32>
    %101 = vector.multi_reduction <add>, %100, %cst_25 [2] : vector<8x8x32xf32> to vector<8x8xf32>
    %cst_26 = arith.constant dense<0xFF800000> : vector<8xf32>
    %102 = vector.multi_reduction <maximumf>, %101, %cst_26 [1] : vector<8x8xf32> to vector<8xf32>
    %103 = vector.shape_cast %102 : vector<8xf32> to vector<8x1xf32>
    %104 = vector.broadcast %103 : vector<8x1xf32> to vector<8x8xf32>
    %105 = arith.subf %101, %104 : vector<8x8xf32>
    %106 = math.exp %105 : vector<8x8xf32>
    %cst_27 = arith.constant dense<0.000000e+00> : vector<8xf32>
    %107 = vector.multi_reduction <add>, %106, %cst_27 [1] : vector<8x8xf32> to vector<8xf32>
    %108 = vector.shape_cast %107 : vector<8xf32> to vector<8x1xf32>
    %109 = vector.broadcast %108 : vector<8x1xf32> to vector<8x8xf32>
    %110 = arith.divf %106, %109 : vector<8x8xf32>
    %111 = vector.shape_cast %110 : vector<8x8xf32> to vector<8x8x1xf32>
    %112 = vector.broadcast %111 : vector<8x8x1xf32> to vector<8x8x32xf32>
    %113 = arith.mulf %112, %0 : vector<8x8x32xf32>
    %cst_28 = arith.constant dense<0.000000e+00> : vector<8x32xf32>
    %114 = vector.multi_reduction <add>, %113, %cst_28 [1] : vector<8x8x32xf32> to vector<8x32xf32>
    %c3_i32 = arith.constant 3 : i32
    %cst_29 = arith.constant dense<0.000000e+00> : vector<8x128xf32>
    %115 = tpu.matmul %97, %1, %cst_29 {dimension_numbers = #tpu.dot_dimension_numbers<[1], [0], [0], [1], [0, 0, 1, 1], [], []>} : vector<8x32xf32>, vector<32x128xf32>, vector<8x128xf32> -> vector<8x128xf32>
    %cst_30 = arith.constant dense<0.000000e+00> : vector<8x128xf32>
    %116 = tpu.matmul %114, %2, %cst_30 {dimension_numbers = #tpu.dot_dimension_numbers<[1], [0], [0], [1], [0, 0, 1, 1], [], []>} : vector<8x32xf32>, vector<32x128xf32>, vector<8x128xf32> -> vector<8x128xf32>
    %117 = arith.addf %115, %116 : vector<8x128xf32>
    %118 = arith.addf %117, %5 : vector<8x128xf32>
    %119 = arith.negf %118 : vector<8x128xf32>
    %120 = math.exp %119 : vector<8x128xf32>
    %cst_31 = arith.constant 1.000000e+00 : f32
    %121 = vector.broadcast %cst_31 : f32 to vector<8x128xf32>
    %122 = arith.addf %121, %120 : vector<8x128xf32>
    %123 = arith.divf %121, %122 : vector<8x128xf32>
    %124 = math.tanh %118 : vector<8x128xf32>
    %125 = vector.extract_strided_slice %123 {offsets = [0, 0], sizes = [8, 32], strides = [1, 1]} : vector<8x128xf32> to vector<8x32xf32>
    %126 = vector.extract_strided_slice %123 {offsets = [0, 32], sizes = [8, 32], strides = [1, 1]} : vector<8x128xf32> to vector<8x32xf32>
    %127 = vector.extract_strided_slice %124 {offsets = [0, 64], sizes = [8, 32], strides = [1, 1]} : vector<8x128xf32> to vector<8x32xf32>
    %128 = vector.extract_strided_slice %123 {offsets = [0, 96], sizes = [8, 32], strides = [1, 1]} : vector<8x128xf32> to vector<8x32xf32>
    %129 = arith.mulf %126, %95 : vector<8x32xf32>
    %130 = arith.mulf %125, %127 : vector<8x32xf32>
    %131 = arith.addf %129, %130 : vector<8x32xf32>
    %132 = math.tanh %131 : vector<8x32xf32>
    %133 = arith.mulf %128, %132 : vector<8x32xf32>
    %134 = vector.shape_cast %133 : vector<8x32xf32> to vector<8x1x32xf32>
    %135 = vector.broadcast %134 : vector<8x1x32xf32> to vector<8x8x32xf32>
    %136 = arith.mulf %135, %0 : vector<8x8x32xf32>
    %cst_32 = arith.constant dense<0.000000e+00> : vector<8x8xf32>
    %137 = vector.multi_reduction <add>, %136, %cst_32 [2] : vector<8x8x32xf32> to vector<8x8xf32>
    %cst_33 = arith.constant dense<0xFF800000> : vector<8xf32>
    %138 = vector.multi_reduction <maximumf>, %137, %cst_33 [1] : vector<8x8xf32> to vector<8xf32>
    %139 = vector.shape_cast %138 : vector<8xf32> to vector<8x1xf32>
    %140 = vector.broadcast %139 : vector<8x1xf32> to vector<8x8xf32>
    %141 = arith.subf %137, %140 : vector<8x8xf32>
    %142 = math.exp %141 : vector<8x8xf32>
    %cst_34 = arith.constant dense<0.000000e+00> : vector<8xf32>
    %143 = vector.multi_reduction <add>, %142, %cst_34 [1] : vector<8x8xf32> to vector<8xf32>
    %144 = vector.shape_cast %143 : vector<8xf32> to vector<8x1xf32>
    %145 = vector.broadcast %144 : vector<8x1xf32> to vector<8x8xf32>
    %146 = arith.divf %142, %145 : vector<8x8xf32>
    %147 = vector.shape_cast %146 : vector<8x8xf32> to vector<8x8x1xf32>
    %148 = vector.broadcast %147 : vector<8x8x1xf32> to vector<8x8x32xf32>
    %149 = arith.mulf %148, %0 : vector<8x8x32xf32>
    %cst_35 = arith.constant dense<0.000000e+00> : vector<8x32xf32>
    %150 = vector.multi_reduction <add>, %149, %cst_35 [1] : vector<8x8x32xf32> to vector<8x32xf32>
    %c4_i32 = arith.constant 4 : i32
    %cst_36 = arith.constant dense<0.000000e+00> : vector<8x128xf32>
    %151 = tpu.matmul %133, %1, %cst_36 {dimension_numbers = #tpu.dot_dimension_numbers<[1], [0], [0], [1], [0, 0, 1, 1], [], []>} : vector<8x32xf32>, vector<32x128xf32>, vector<8x128xf32> -> vector<8x128xf32>
    %cst_37 = arith.constant dense<0.000000e+00> : vector<8x128xf32>
    %152 = tpu.matmul %150, %2, %cst_37 {dimension_numbers = #tpu.dot_dimension_numbers<[1], [0], [0], [1], [0, 0, 1, 1], [], []>} : vector<8x32xf32>, vector<32x128xf32>, vector<8x128xf32> -> vector<8x128xf32>
    %153 = arith.addf %151, %152 : vector<8x128xf32>
    %154 = arith.addf %153, %5 : vector<8x128xf32>
    %155 = arith.negf %154 : vector<8x128xf32>
    %156 = math.exp %155 : vector<8x128xf32>
    %cst_38 = arith.constant 1.000000e+00 : f32
    %157 = vector.broadcast %cst_38 : f32 to vector<8x128xf32>
    %158 = arith.addf %157, %156 : vector<8x128xf32>
    %159 = arith.divf %157, %158 : vector<8x128xf32>
    %160 = math.tanh %154 : vector<8x128xf32>
    %161 = vector.extract_strided_slice %159 {offsets = [0, 0], sizes = [8, 32], strides = [1, 1]} : vector<8x128xf32> to vector<8x32xf32>
    %162 = vector.extract_strided_slice %159 {offsets = [0, 32], sizes = [8, 32], strides = [1, 1]} : vector<8x128xf32> to vector<8x32xf32>
    %163 = vector.extract_strided_slice %160 {offsets = [0, 64], sizes = [8, 32], strides = [1, 1]} : vector<8x128xf32> to vector<8x32xf32>
    %164 = vector.extract_strided_slice %159 {offsets = [0, 96], sizes = [8, 32], strides = [1, 1]} : vector<8x128xf32> to vector<8x32xf32>
    %165 = arith.mulf %162, %131 : vector<8x32xf32>
    %166 = arith.mulf %161, %163 : vector<8x32xf32>
    %167 = arith.addf %165, %166 : vector<8x32xf32>
    %168 = math.tanh %167 : vector<8x32xf32>
    %169 = arith.mulf %164, %168 : vector<8x32xf32>
    %170 = vector.shape_cast %169 : vector<8x32xf32> to vector<8x1x32xf32>
    %171 = vector.broadcast %170 : vector<8x1x32xf32> to vector<8x8x32xf32>
    %172 = arith.mulf %171, %0 : vector<8x8x32xf32>
    %cst_39 = arith.constant dense<0.000000e+00> : vector<8x8xf32>
    %173 = vector.multi_reduction <add>, %172, %cst_39 [2] : vector<8x8x32xf32> to vector<8x8xf32>
    %cst_40 = arith.constant dense<0xFF800000> : vector<8xf32>
    %174 = vector.multi_reduction <maximumf>, %173, %cst_40 [1] : vector<8x8xf32> to vector<8xf32>
    %175 = vector.shape_cast %174 : vector<8xf32> to vector<8x1xf32>
    %176 = vector.broadcast %175 : vector<8x1xf32> to vector<8x8xf32>
    %177 = arith.subf %173, %176 : vector<8x8xf32>
    %178 = math.exp %177 : vector<8x8xf32>
    %cst_41 = arith.constant dense<0.000000e+00> : vector<8xf32>
    %179 = vector.multi_reduction <add>, %178, %cst_41 [1] : vector<8x8xf32> to vector<8xf32>
    %180 = vector.shape_cast %179 : vector<8xf32> to vector<8x1xf32>
    %181 = vector.broadcast %180 : vector<8x1xf32> to vector<8x8xf32>
    %182 = arith.divf %178, %181 : vector<8x8xf32>
    %183 = vector.shape_cast %182 : vector<8x8xf32> to vector<8x8x1xf32>
    %184 = vector.broadcast %183 : vector<8x8x1xf32> to vector<8x8x32xf32>
    %185 = arith.mulf %184, %0 : vector<8x8x32xf32>
    %cst_42 = arith.constant dense<0.000000e+00> : vector<8x32xf32>
    %186 = vector.multi_reduction <add>, %185, %cst_42 [1] : vector<8x8x32xf32> to vector<8x32xf32>
    %c5_i32 = arith.constant 5 : i32
    %cst_43 = arith.constant dense<0.000000e+00> : vector<8x128xf32>
    %187 = tpu.matmul %169, %1, %cst_43 {dimension_numbers = #tpu.dot_dimension_numbers<[1], [0], [0], [1], [0, 0, 1, 1], [], []>} : vector<8x32xf32>, vector<32x128xf32>, vector<8x128xf32> -> vector<8x128xf32>
    %cst_44 = arith.constant dense<0.000000e+00> : vector<8x128xf32>
    %188 = tpu.matmul %186, %2, %cst_44 {dimension_numbers = #tpu.dot_dimension_numbers<[1], [0], [0], [1], [0, 0, 1, 1], [], []>} : vector<8x32xf32>, vector<32x128xf32>, vector<8x128xf32> -> vector<8x128xf32>
    %189 = arith.addf %187, %188 : vector<8x128xf32>
    %190 = arith.addf %189, %5 : vector<8x128xf32>
    %191 = arith.negf %190 : vector<8x128xf32>
    %192 = math.exp %191 : vector<8x128xf32>
    %cst_45 = arith.constant 1.000000e+00 : f32
    %193 = vector.broadcast %cst_45 : f32 to vector<8x128xf32>
    %194 = arith.addf %193, %192 : vector<8x128xf32>
    %195 = arith.divf %193, %194 : vector<8x128xf32>
    %196 = math.tanh %190 : vector<8x128xf32>
    %197 = vector.extract_strided_slice %195 {offsets = [0, 0], sizes = [8, 32], strides = [1, 1]} : vector<8x128xf32> to vector<8x32xf32>
    %198 = vector.extract_strided_slice %195 {offsets = [0, 32], sizes = [8, 32], strides = [1, 1]} : vector<8x128xf32> to vector<8x32xf32>
    %199 = vector.extract_strided_slice %196 {offsets = [0, 64], sizes = [8, 32], strides = [1, 1]} : vector<8x128xf32> to vector<8x32xf32>
    %200 = vector.extract_strided_slice %195 {offsets = [0, 96], sizes = [8, 32], strides = [1, 1]} : vector<8x128xf32> to vector<8x32xf32>
    %201 = arith.mulf %198, %167 : vector<8x32xf32>
    %202 = arith.mulf %197, %199 : vector<8x32xf32>
    %203 = arith.addf %201, %202 : vector<8x32xf32>
    %204 = math.tanh %203 : vector<8x32xf32>
    %205 = arith.mulf %200, %204 : vector<8x32xf32>
    %206 = vector.shape_cast %205 : vector<8x32xf32> to vector<8x1x32xf32>
    %207 = vector.broadcast %206 : vector<8x1x32xf32> to vector<8x8x32xf32>
    %208 = arith.mulf %207, %0 : vector<8x8x32xf32>
    %cst_46 = arith.constant dense<0.000000e+00> : vector<8x8xf32>
    %209 = vector.multi_reduction <add>, %208, %cst_46 [2] : vector<8x8x32xf32> to vector<8x8xf32>
    %cst_47 = arith.constant dense<0xFF800000> : vector<8xf32>
    %210 = vector.multi_reduction <maximumf>, %209, %cst_47 [1] : vector<8x8xf32> to vector<8xf32>
    %211 = vector.shape_cast %210 : vector<8xf32> to vector<8x1xf32>
    %212 = vector.broadcast %211 : vector<8x1xf32> to vector<8x8xf32>
    %213 = arith.subf %209, %212 : vector<8x8xf32>
    %214 = math.exp %213 : vector<8x8xf32>
    %cst_48 = arith.constant dense<0.000000e+00> : vector<8xf32>
    %215 = vector.multi_reduction <add>, %214, %cst_48 [1] : vector<8x8xf32> to vector<8xf32>
    %216 = vector.shape_cast %215 : vector<8xf32> to vector<8x1xf32>
    %217 = vector.broadcast %216 : vector<8x1xf32> to vector<8x8xf32>
    %218 = arith.divf %214, %217 : vector<8x8xf32>
    %219 = vector.shape_cast %218 : vector<8x8xf32> to vector<8x8x1xf32>
    %220 = vector.broadcast %219 : vector<8x8x1xf32> to vector<8x8x32xf32>
    %221 = arith.mulf %220, %0 : vector<8x8x32xf32>
    %cst_49 = arith.constant dense<0.000000e+00> : vector<8x32xf32>
    %222 = vector.multi_reduction <add>, %221, %cst_49 [1] : vector<8x8x32xf32> to vector<8x32xf32>
    %c6_i32 = arith.constant 6 : i32
    %cst_50 = arith.constant dense<0.000000e+00> : vector<8x128xf32>
    %223 = tpu.matmul %205, %1, %cst_50 {dimension_numbers = #tpu.dot_dimension_numbers<[1], [0], [0], [1], [0, 0, 1, 1], [], []>} : vector<8x32xf32>, vector<32x128xf32>, vector<8x128xf32> -> vector<8x128xf32>
    %cst_51 = arith.constant dense<0.000000e+00> : vector<8x128xf32>
    %224 = tpu.matmul %222, %2, %cst_51 {dimension_numbers = #tpu.dot_dimension_numbers<[1], [0], [0], [1], [0, 0, 1, 1], [], []>} : vector<8x32xf32>, vector<32x128xf32>, vector<8x128xf32> -> vector<8x128xf32>
    %225 = arith.addf %223, %224 : vector<8x128xf32>
    %226 = arith.addf %225, %5 : vector<8x128xf32>
    %227 = arith.negf %226 : vector<8x128xf32>
    %228 = math.exp %227 : vector<8x128xf32>
    %cst_52 = arith.constant 1.000000e+00 : f32
    %229 = vector.broadcast %cst_52 : f32 to vector<8x128xf32>
    %230 = arith.addf %229, %228 : vector<8x128xf32>
    %231 = arith.divf %229, %230 : vector<8x128xf32>
    %232 = math.tanh %226 : vector<8x128xf32>
    %233 = vector.extract_strided_slice %231 {offsets = [0, 0], sizes = [8, 32], strides = [1, 1]} : vector<8x128xf32> to vector<8x32xf32>
    %234 = vector.extract_strided_slice %231 {offsets = [0, 32], sizes = [8, 32], strides = [1, 1]} : vector<8x128xf32> to vector<8x32xf32>
    %235 = vector.extract_strided_slice %232 {offsets = [0, 64], sizes = [8, 32], strides = [1, 1]} : vector<8x128xf32> to vector<8x32xf32>
    %236 = vector.extract_strided_slice %231 {offsets = [0, 96], sizes = [8, 32], strides = [1, 1]} : vector<8x128xf32> to vector<8x32xf32>
    %237 = arith.mulf %234, %203 : vector<8x32xf32>
    %238 = arith.mulf %233, %235 : vector<8x32xf32>
    %239 = arith.addf %237, %238 : vector<8x32xf32>
    %240 = math.tanh %239 : vector<8x32xf32>
    %241 = arith.mulf %236, %240 : vector<8x32xf32>
    %242 = vector.shape_cast %241 : vector<8x32xf32> to vector<8x1x32xf32>
    %243 = vector.broadcast %242 : vector<8x1x32xf32> to vector<8x8x32xf32>
    %244 = arith.mulf %243, %0 : vector<8x8x32xf32>
    %cst_53 = arith.constant dense<0.000000e+00> : vector<8x8xf32>
    %245 = vector.multi_reduction <add>, %244, %cst_53 [2] : vector<8x8x32xf32> to vector<8x8xf32>
    %cst_54 = arith.constant dense<0xFF800000> : vector<8xf32>
    %246 = vector.multi_reduction <maximumf>, %245, %cst_54 [1] : vector<8x8xf32> to vector<8xf32>
    %247 = vector.shape_cast %246 : vector<8xf32> to vector<8x1xf32>
    %248 = vector.broadcast %247 : vector<8x1xf32> to vector<8x8xf32>
    %249 = arith.subf %245, %248 : vector<8x8xf32>
    %250 = math.exp %249 : vector<8x8xf32>
    %cst_55 = arith.constant dense<0.000000e+00> : vector<8xf32>
    %251 = vector.multi_reduction <add>, %250, %cst_55 [1] : vector<8x8xf32> to vector<8xf32>
    %252 = vector.shape_cast %251 : vector<8xf32> to vector<8x1xf32>
    %253 = vector.broadcast %252 : vector<8x1xf32> to vector<8x8xf32>
    %254 = arith.divf %250, %253 : vector<8x8xf32>
    %255 = vector.shape_cast %254 : vector<8x8xf32> to vector<8x8x1xf32>
    %256 = vector.broadcast %255 : vector<8x8x1xf32> to vector<8x8x32xf32>
    %257 = arith.mulf %256, %0 : vector<8x8x32xf32>
    %cst_56 = arith.constant dense<0.000000e+00> : vector<8x32xf32>
    %258 = vector.multi_reduction <add>, %257, %cst_56 [1] : vector<8x8x32xf32> to vector<8x32xf32>
    %c7_i32 = arith.constant 7 : i32
    %cst_57 = arith.constant dense<0.000000e+00> : vector<8x128xf32>
    %259 = tpu.matmul %241, %1, %cst_57 {dimension_numbers = #tpu.dot_dimension_numbers<[1], [0], [0], [1], [0, 0, 1, 1], [], []>} : vector<8x32xf32>, vector<32x128xf32>, vector<8x128xf32> -> vector<8x128xf32>
    %cst_58 = arith.constant dense<0.000000e+00> : vector<8x128xf32>
    %260 = tpu.matmul %258, %2, %cst_58 {dimension_numbers = #tpu.dot_dimension_numbers<[1], [0], [0], [1], [0, 0, 1, 1], [], []>} : vector<8x32xf32>, vector<32x128xf32>, vector<8x128xf32> -> vector<8x128xf32>
    %261 = arith.addf %259, %260 : vector<8x128xf32>
    %262 = arith.addf %261, %5 : vector<8x128xf32>
    %263 = arith.negf %262 : vector<8x128xf32>
    %264 = math.exp %263 : vector<8x128xf32>
    %cst_59 = arith.constant 1.000000e+00 : f32
    %265 = vector.broadcast %cst_59 : f32 to vector<8x128xf32>
    %266 = arith.addf %265, %264 : vector<8x128xf32>
    %267 = arith.divf %265, %266 : vector<8x128xf32>
    %268 = math.tanh %262 : vector<8x128xf32>
    %269 = vector.extract_strided_slice %267 {offsets = [0, 0], sizes = [8, 32], strides = [1, 1]} : vector<8x128xf32> to vector<8x32xf32>
    %270 = vector.extract_strided_slice %267 {offsets = [0, 32], sizes = [8, 32], strides = [1, 1]} : vector<8x128xf32> to vector<8x32xf32>
    %271 = vector.extract_strided_slice %268 {offsets = [0, 64], sizes = [8, 32], strides = [1, 1]} : vector<8x128xf32> to vector<8x32xf32>
    %272 = vector.extract_strided_slice %267 {offsets = [0, 96], sizes = [8, 32], strides = [1, 1]} : vector<8x128xf32> to vector<8x32xf32>
    %273 = arith.mulf %270, %239 : vector<8x32xf32>
    %274 = arith.mulf %269, %271 : vector<8x32xf32>
    %275 = arith.addf %273, %274 : vector<8x32xf32>
    %276 = math.tanh %275 : vector<8x32xf32>
    %277 = arith.mulf %272, %276 : vector<8x32xf32>
    %278 = vector.shape_cast %277 : vector<8x32xf32> to vector<8x1x32xf32>
    %279 = vector.broadcast %278 : vector<8x1x32xf32> to vector<8x8x32xf32>
    %280 = arith.mulf %279, %0 : vector<8x8x32xf32>
    %cst_60 = arith.constant dense<0.000000e+00> : vector<8x8xf32>
    %281 = vector.multi_reduction <add>, %280, %cst_60 [2] : vector<8x8x32xf32> to vector<8x8xf32>
    %cst_61 = arith.constant dense<0xFF800000> : vector<8xf32>
    %282 = vector.multi_reduction <maximumf>, %281, %cst_61 [1] : vector<8x8xf32> to vector<8xf32>
    %283 = vector.shape_cast %282 : vector<8xf32> to vector<8x1xf32>
    %284 = vector.broadcast %283 : vector<8x1xf32> to vector<8x8xf32>
    %285 = arith.subf %281, %284 : vector<8x8xf32>
    %286 = math.exp %285 : vector<8x8xf32>
    %cst_62 = arith.constant dense<0.000000e+00> : vector<8xf32>
    %287 = vector.multi_reduction <add>, %286, %cst_62 [1] : vector<8x8xf32> to vector<8xf32>
    %288 = vector.shape_cast %287 : vector<8xf32> to vector<8x1xf32>
    %289 = vector.broadcast %288 : vector<8x1xf32> to vector<8x8xf32>
    %290 = arith.divf %286, %289 : vector<8x8xf32>
    %291 = vector.shape_cast %290 : vector<8x8xf32> to vector<8x8x1xf32>
    %292 = vector.broadcast %291 : vector<8x8x1xf32> to vector<8x8x32xf32>
    %293 = arith.mulf %292, %0 : vector<8x8x32xf32>
    %cst_63 = arith.constant dense<0.000000e+00> : vector<8x32xf32>
    %294 = vector.multi_reduction <add>, %293, %cst_63 [1] : vector<8x8x32xf32> to vector<8x32xf32>
    %c0_64 = arith.constant 0 : index
    %c0_65 = arith.constant 0 : index
    %295 = vector.load %arg5[%c0_64, %c0_65] : memref<32x64xf32, #tpu.memory_space<vmem>>, vector<32x64xf32>
    %cst_66 = arith.constant dense<0.000000e+00> : vector<8x64xf32>
    %296 = tpu.matmul %277, %295, %cst_66 {dimension_numbers = #tpu.dot_dimension_numbers<[1], [0], [0], [1], [0, 0, 1, 1], [], []>} : vector<8x32xf32>, vector<32x64xf32>, vector<8x64xf32> -> vector<8x64xf32>
    %c0_67 = arith.constant 0 : index
    %c0_68 = arith.constant 0 : index
    %297 = vector.load %arg6[%c0_67, %c0_68] : memref<32x64xf32, #tpu.memory_space<vmem>>, vector<32x64xf32>
    %cst_69 = arith.constant dense<0.000000e+00> : vector<8x64xf32>
    %298 = tpu.matmul %294, %297, %cst_69 {dimension_numbers = #tpu.dot_dimension_numbers<[1], [0], [0], [1], [0, 0, 1, 1], [], []>} : vector<8x32xf32>, vector<32x64xf32>, vector<8x64xf32> -> vector<8x64xf32>
    %299 = arith.addf %296, %298 : vector<8x64xf32>
    %c0_70 = arith.constant 0 : index
    %c0_71 = arith.constant 0 : index
    %300 = vector.load %arg7[%c0_70, %c0_71] : memref<1x64xf32, #tpu.memory_space<vmem>>, vector<1x64xf32>
    %301 = vector.broadcast %300 : vector<1x64xf32> to vector<8x64xf32>
    %302 = arith.addf %299, %301 : vector<8x64xf32>
    %cst_72 = arith.constant 0.000000e+00 : f32
    %303 = vector.broadcast %cst_72 : f32 to vector<8x64xf32>
    %304 = arith.maximumf %302, %303 : vector<8x64xf32>
    %c0_73 = arith.constant 0 : index
    %c0_74 = arith.constant 0 : index
    %305 = vector.load %arg8[%c0_73, %c0_74] : memref<64x64xf32, #tpu.memory_space<vmem>>, vector<64x64xf32>
    %cst_75 = arith.constant dense<0.000000e+00> : vector<8x64xf32>
    %306 = tpu.matmul %304, %305, %cst_75 {dimension_numbers = #tpu.dot_dimension_numbers<[1], [0], [0], [1], [0, 0, 1, 1], [], []>} : vector<8x64xf32>, vector<64x64xf32>, vector<8x64xf32> -> vector<8x64xf32>
    %c0_76 = arith.constant 0 : index
    %c0_77 = arith.constant 0 : index
    %307 = vector.load %arg9[%c0_76, %c0_77] : memref<1x64xf32, #tpu.memory_space<vmem>>, vector<1x64xf32>
    %308 = vector.broadcast %307 : vector<1x64xf32> to vector<8x64xf32>
    %309 = arith.addf %306, %308 : vector<8x64xf32>
    %cst_78 = arith.constant 0.000000e+00 : f32
    %310 = vector.broadcast %cst_78 : f32 to vector<8x64xf32>
    %311 = arith.maximumf %309, %310 : vector<8x64xf32>
    %c0_79 = arith.constant 0 : index
    %c0_80 = arith.constant 0 : index
    %312 = vector.load %arg10[%c0_79, %c0_80] : memref<64x16xf32, #tpu.memory_space<vmem>>, vector<64x16xf32>
    %cst_81 = arith.constant dense<0.000000e+00> : vector<8x16xf32>
    %313 = tpu.matmul %311, %312, %cst_81 {dimension_numbers = #tpu.dot_dimension_numbers<[1], [0], [0], [1], [0, 0, 1, 1], [], []>} : vector<8x64xf32>, vector<64x16xf32>, vector<8x16xf32> -> vector<8x16xf32>
    %c0_82 = arith.constant 0 : index
    %c0_83 = arith.constant 0 : index
    %314 = vector.load %arg11[%c0_82, %c0_83] : memref<1x16xf32, #tpu.memory_space<vmem>>, vector<1x16xf32>
    %315 = vector.broadcast %314 : vector<1x16xf32> to vector<8x16xf32>
    %316 = arith.addf %313, %315 : vector<8x16xf32>
    %cst_84 = arith.constant 0.000000e+00 : f32
    %317 = vector.broadcast %cst_84 : f32 to vector<8x16xf32>
    %318 = arith.maximumf %316, %317 : vector<8x16xf32>
    %c0_85 = arith.constant 0 : index
    %c0_86 = arith.constant 0 : index
    %319 = vector.load %arg12[%c0_85, %c0_86] : memref<8x16xf32, #tpu.memory_space<vmem>>, vector<8x16xf32>
    tpu.vector_store %arg12[%c0_85, %c0_86], %318 {strides = array<i32>} : memref<8x16xf32, #tpu.memory_space<vmem>>, vector<8x16xf32>,
    return
  }
  func.func @transform_0(%arg0: i32) -> (i32, i32, i32) {
    %c0_i32 = arith.constant 0 : i32
    %c0_i32_0 = arith.constant 0 : i32
    %c0_i32_1 = arith.constant 0 : i32
    return %arg0, %c0_i32, %c0_i32_0 : i32, i32, i32
  }
  func.func @transform_1(%arg0: i32) -> (i32, i32) {
    %c0_i32 = arith.constant 0 : i32
    %c0_i32_0 = arith.constant 0 : i32
    %c0_i32_1 = arith.constant 0 : i32
    return %c0_i32, %c0_i32_0 : i32, i32
  }
  func.func @transform_2(%arg0: i32) -> (i32, i32) {
    %c0_i32 = arith.constant 0 : i32
    %c0_i32_0 = arith.constant 0 : i32
    %c0_i32_1 = arith.constant 0 : i32
    return %c0_i32, %c0_i32_0 : i32, i32
  }
  func.func @transform_3(%arg0: i32) -> (i32, i32) {
    %c0_i32 = arith.constant 0 : i32
    %c0_i32_0 = arith.constant 0 : i32
    %c0_i32_1 = arith.constant 0 : i32
    return %c0_i32, %c0_i32_0 : i32, i32
  }
  func.func @transform_4(%arg0: i32) -> (i32, i32) {
    %c0_i32 = arith.constant 0 : i32
    %c0_i32_0 = arith.constant 0 : i32
    %c0_i32_1 = arith.constant 0 : i32
    return %c0_i32, %c0_i32_0 : i32, i32
  }
  func.func @transform_5(%arg0: i32) -> (i32, i32) {
    %c0_i32 = arith.constant 0 : i32
    %c0_i32_0 = arith.constant 0 : i32
    %c0_i32_1 = arith.constant 0 : i32
    return %c0_i32, %c0_i32_0 : i32, i32
  }
  func.func @transform_6(%arg0: i32) -> (i32, i32) {
    %c0_i32 = arith.constant 0 : i32
    %c0_i32_0 = arith.constant 0 : i32
    %c0_i32_1 = arith.constant 0 : i32
    return %c0_i32, %c0_i32_0 : i32, i32
  }
  func.func @transform_7(%arg0: i32) -> (i32, i32) {
    %c0_i32 = arith.constant 0 : i32
    %c0_i32_0 = arith.constant 0 : i32
    %c0_i32_1 = arith.constant 0 : i32
    return %c0_i32, %c0_i32_0 : i32, i32
  }
  func.func @transform_8(%arg0: i32) -> (i32, i32) {
    %c0_i32 = arith.constant 0 : i32
    %c0_i32_0 = arith.constant 0 : i32
    %c0_i32_1 = arith.constant 0 : i32
    return %c0_i32, %c0_i32_0 : i32, i32
  }
  func.func @transform_9(%arg0: i32) -> (i32, i32) {
    %c0_i32 = arith.constant 0 : i32
    %c0_i32_0 = arith.constant 0 : i32
    %c0_i32_1 = arith.constant 0 : i32
    return %c0_i32, %c0_i32_0 : i32, i32
  }
  func.func @transform_10(%arg0: i32) -> (i32, i32) {
    %c0_i32 = arith.constant 0 : i32
    %c0_i32_0 = arith.constant 0 : i32
    %c0_i32_1 = arith.constant 0 : i32
    return %c0_i32, %c0_i32_0 : i32, i32
  }
  func.func @transform_11(%arg0: i32) -> (i32, i32) {
    %c0_i32 = arith.constant 0 : i32
    %c0_i32_0 = arith.constant 0 : i32
    return %arg0, %c0_i32 : i32, i32
  }
}

</mosaic_0001>

<llo_original>
// kernel: tpu_custom_call.1
$region0: #{tpu_custom_call.1}
  #allocation0 [shape = 'u32[]', space=smem, size = 0x4, offset = 0x4, fixed_abs, tag = 'smem constant byte address 0x4 - core index']
  #allocation1 [shape = 'u32[144,128]{1,0:T(1,128)}', space=vmem, size = 0x12000, scoped, tag = 'internal scratch']
  %s0 = inlined_call_operand.vmem [shape: f32[8,8,32], index: 0, kind: input, shape index: {}]
  %s1 = inlined_call_operand.hbm [shape: f32[32,128], index: 1, kind: input, shape index: {}]
  %s2 = inlined_call_operand.hbm [shape: f32[32,128], index: 2, kind: input, shape index: {}]
  %s3 = inlined_call_operand.vmem [shape: f32[1,128], index: 3, kind: input, shape index: {}]
  %s4 = inlined_call_operand.hbm [shape: f32[32,64], index: 4, kind: input, shape index: {}]
  %s5 = inlined_call_operand.hbm [shape: f32[32,64], index: 5, kind: input, shape index: {}]
  %s6 = inlined_call_operand.vmem [shape: f32[1,64], index: 6, kind: input, shape index: {}]
  %s7 = inlined_call_operand.hbm [shape: f32[64,64], index: 7, kind: input, shape index: {}]
  %s8 = inlined_call_operand.vmem [shape: f32[1,64], index: 8, kind: input, shape index: {}]
  %s9 = inlined_call_operand.vmem [shape: f32[64,16], index: 9, kind: input, shape index: {}]
  %s10 = inlined_call_operand.vmem [shape: f32[1,16], index: 10, kind: input, shape index: {}]
  %s11 = inlined_call_operand.hbm [shape: f32[8,16], index: 11, kind: output, shape index: {}]
  %s12 = sld [smem:[#allocation0]]
  $region74: #{tpu_custom_call.1} parent=0
    _
  %s14 = ssub.s32 1, %s12
  %s15 = scalar_select 0, %s14, %s12
  $region1: #{tpu_custom_call.1} parent=0
    #allocation2 [shape = 'u8[16384]{0}', space=vmem, size = 0x4000, scoped, tag = 'input window, operand 1, single buffered']
    #allocation3 [shape = 's32[1]{0}', space=sflag, size = 0x4, scoped, tag = 'scoped memory for tpu_custom_call.1']
    #allocation4 [shape = 's32[1]{0}', space=sflag, size = 0x4, scoped, tag = 'scoped memory for tpu_custom_call.1']
    #allocation5 [shape = 'u8[16384]{0}', space=vmem, size = 0x4000, scoped, tag = 'input window, operand 2, single buffered']
    #allocation6 [shape = 's32[1]{0}', space=sflag, size = 0x4, scoped, tag = 'scoped memory for tpu_custom_call.1']
    #allocation7 [shape = 'u8[16384]{0}', space=vmem, size = 0x4000, scoped, tag = 'input window, operand 4, single buffered']
    #allocation8 [shape = 'u8[16384]{0}', space=vmem, size = 0x4000, scoped, tag = 'input window, operand 5, single buffered']
    #allocation9 [shape = 's32[1]{0}', space=sflag, size = 0x4, scoped, tag = 'scoped memory for tpu_custom_call.1']
    #allocation10 [shape = 'u8[32768]{0}', space=vmem, size = 0x8000, scoped, tag = 'input window, operand 7, single buffered']
    #allocation11 [shape = 'u8[4096]{0}', space=vmem, size = 0x1000, scoped, tag = 'output window, operand 0, single buffered']
    %16 = vsyncpa [#allocation3], 0
    %17 = vsyncpa [#allocation6], 0
    %18 = vsyncpa [#allocation9], 0
    %19 = vsyncpa [#allocation4], 0
    // Predicated region
    $region2: #{tpu_custom_call.1} parent=1 // pred_check
      _
    $region3: #{tpu_custom_call.1} parent=1 // pred_check_branch
      %21 = sbr.rel (0) target = $region5
    $region4: #{tpu_custom_call.1} parent=1 // pred_region
      _
    $region5: #{tpu_custom_call.1} parent=1 // pred_fallthru
      _
    // Predicated region
    $region6: #{tpu_custom_call.1} parent=1 // pred_check
      _
    $region7: #{tpu_custom_call.1} parent=1 // pred_check_branch
      %23 = sbr.rel (0) target = $region9
    $region8: #{tpu_custom_call.1} parent=1 // pred_region
      %s25 = ssub.s32 512, 512
      %26 = vsyncadd [#allocation3], %s25
      %s27 = sshll.u32 [#allocation2], 4
      %s28 = int_to_ptr.vmem [resolvable:$true] %s27
      %33 = dma.hbm_to_vmem [thread:$0]  %s1, 512, %s28, [#allocation3], 128, 128, 8
    $region9: #{tpu_custom_call.1} parent=1 // pred_fallthru
      _
    // Predicated region
    $region10: #{tpu_custom_call.1} parent=1 // pred_check
      _
    $region11: #{tpu_custom_call.1} parent=1 // pred_check_branch
      %35 = sbr.rel (0) target = $region13
    $region12: #{tpu_custom_call.1} parent=1 // pred_region
      %s37 = ssub.s32 512, 512
      %38 = vsyncadd [#allocation6], %s37
      %s39 = sshll.u32 [#allocation5], 4
      %s40 = int_to_ptr.vmem [resolvable:$true] %s39
      %45 = dma.hbm_to_vmem [thread:$0]  %s2, 512, %s40, [#allocation6], 128, 128, 8
    $region13: #{tpu_custom_call.1} parent=1 // pred_fallthru
      _
    // Predicated region
    $region14: #{tpu_custom_call.1} parent=1 // pred_check
      _
    $region15: #{tpu_custom_call.1} parent=1 // pred_check_branch
      %47 = sbr.rel (0) target = $region17
    $region16: #{tpu_custom_call.1} parent=1 // pred_region
      _
    $region17: #{tpu_custom_call.1} parent=1 // pred_fallthru
      _
    // Predicated region
    $region18: #{tpu_custom_call.1} parent=1 // pred_check
      _
    $region19: #{tpu_custom_call.1} parent=1 // pred_check_branch
      %49 = sbr.rel (0) target = $region21
    $region20: #{tpu_custom_call.1} parent=1 // pred_region
      %s51 = ssub.s32 512, 512
      %52 = vsyncadd [#allocation6], %s51
      %s53 = sshll.u32 [#allocation7], 4
      %s54 = int_to_ptr.vmem [resolvable:$true] %s53
      %59 = dma.hbm_to_vmem [thread:$0]  %s4, 512, %s54, [#allocation6], 128, 128, 8
    $region21: #{tpu_custom_call.1} parent=1 // pred_fallthru
      _
    // Predicated region
    $region22: #{tpu_custom_call.1} parent=1 // pred_check
      _
    $region23: #{tpu_custom_call.1} parent=1 // pred_check_branch
      %61 = sbr.rel (0) target = $region25
    $region24: #{tpu_custom_call.1} parent=1 // pred_region
      %s63 = ssub.s32 512, 512
      %64 = vsyncadd [#allocation9], %s63
      %s65 = sshll.u32 [#allocation8], 4
      %s66 = int_to_ptr.vmem [resolvable:$true] %s65
      %71 = dma.hbm_to_vmem [thread:$0]  %s5, 512, %s66, [#allocation9], 128, 128, 8
    $region25: #{tpu_custom_call.1} parent=1 // pred_fallthru
      _
    // Predicated region
    $region26: #{tpu_custom_call.1} parent=1 // pred_check
      _
    $region27: #{tpu_custom_call.1} parent=1 // pred_check_branch
      %73 = sbr.rel (0) target = $region29
    $region28: #{tpu_custom_call.1} parent=1 // pred_region
      _
    $region29: #{tpu_custom_call.1} parent=1 // pred_fallthru
      _
    // Predicated region
    $region30: #{tpu_custom_call.1} parent=1 // pred_check
      _
    $region31: #{tpu_custom_call.1} parent=1 // pred_check_branch
      %75 = sbr.rel (0) target = $region33
    $region32: #{tpu_custom_call.1} parent=1 // pred_region
      %s77 = ssub.s32 1024, 1024
      %78 = vsyncadd [#allocation9], %s77
      %s79 = sshll.u32 [#allocation10], 4
      %s80 = int_to_ptr.vmem [resolvable:$true] %s79
      %85 = dma.hbm_to_vmem [thread:$0]  %s7, 1024, %s80, [#allocation9], 128, 128, 8
    $region33: #{tpu_custom_call.1} parent=1 // pred_fallthru
      _
    // Predicated region
    $region34: #{tpu_custom_call.1} parent=1 // pred_check
      _
    $region35: #{tpu_custom_call.1} parent=1 // pred_check_branch
      %87 = sbr.rel (0) target = $region37
    $region36: #{tpu_custom_call.1} parent=1 // pred_region
      _
    $region37: #{tpu_custom_call.1} parent=1 // pred_fallthru
      _
    // Predicated region
    $region38: #{tpu_custom_call.1} parent=1 // pred_check
      _
    $region39: #{tpu_custom_call.1} parent=1 // pred_check_branch
      %89 = sbr.rel (0) target = $region41
    $region40: #{tpu_custom_call.1} parent=1 // pred_region
      _
    $region41: #{tpu_custom_call.1} parent=1 // pred_fallthru
      _
    // Predicated region
    $region42: #{tpu_custom_call.1} parent=1 // pred_check
      _
    $region43: #{tpu_custom_call.1} parent=1 // pred_check_branch
      %91 = sbr.rel (0) target = $region45
    $region44: #{tpu_custom_call.1} parent=1 // pred_region
      _
    $region45: #{tpu_custom_call.1} parent=1 // pred_fallthru
      _
    // Predicated region
    $region46: #{tpu_custom_call.1} parent=1 // pred_check
      _
    $region47: #{tpu_custom_call.1} parent=1 // pred_check_branch
      %93 = sbr.rel (0) target = $region49
    $region48: #{tpu_custom_call.1} parent=1 // pred_region
      %94 = dma.done [#allocation3], 512
    $region49: #{tpu_custom_call.1} parent=1 // pred_fallthru
      _
    // Predicated region
    $region50: #{tpu_custom_call.1} parent=1 // pred_check
      _
    $region51: #{tpu_custom_call.1} parent=1 // pred_check_branch
      %96 = sbr.rel (0) target = $region53
    $region52: #{tpu_custom_call.1} parent=1 // pred_region
      %97 = dma.done [#allocation6], 512
    $region53: #{tpu_custom_call.1} parent=1 // pred_fallthru
      _
    // Predicated region
    $region54: #{tpu_custom_call.1} parent=1 // pred_check
      _
    $region55: #{tpu_custom_call.1} parent=1 // pred_check_branch
      %99 = sbr.rel (0) target = $region57
    $region56: #{tpu_custom_call.1} parent=1 // pred_region
      %100 = dma.done [#allocation6], 512
    $region57: #{tpu_custom_call.1} parent=1 // pred_fallthru
      _
    // Predicated region
    $region58: #{tpu_custom_call.1} parent=1 // pred_check
      _
    $region59: #{tpu_custom_call.1} parent=1 // pred_check_branch
      %102 = sbr.rel (0) target = $region61
    $region60: #{tpu_custom_call.1} parent=1 // pred_region
      %103 = dma.done [#allocation9], 512
    $region61: #{tpu_custom_call.1} parent=1 // pred_fallthru
      _
    // Predicated region
    $region62: #{tpu_custom_call.1} parent=1 // pred_check
      _
    $region63: #{tpu_custom_call.1} parent=1 // pred_check_branch
      %105 = sbr.rel (0) target = $region65
    $region64: #{tpu_custom_call.1} parent=1 // pred_region
      %106 = dma.done [#allocation9], 1024
    $region65: #{tpu_custom_call.1} parent=1 // pred_fallthru
      _
    %v107 = vld [vmem:[%s0] sm:$0xff]
    %v108 = vld [vmem:[%s0 + $0x8] sm:$0xff]
    %v109 = vld [vmem:[%s0 + $0x10] sm:$0xff]
    %v110 = vld [vmem:[%s0 + $0x18] sm:$0xff]
    %v111 = vld [vmem:[%s0 + $0x20] sm:$0xff]
    %v112 = vld [vmem:[%s0 + $0x28] sm:$0xff]
    %v113 = vld [vmem:[%s0 + $0x30] sm:$0xff]
    %v114 = vld [vmem:[%s0 + $0x38] sm:$0xff]
    %v115 = vld [vmem:[#allocation2] sm:$0xff]
    %v116 = vld [vmem:[#allocation2 + $0x8] sm:$0xff]
    %v117 = vld [vmem:[#allocation2 + $0x10] sm:$0xff]
    %v118 = vld [vmem:[#allocation2 + $0x18] sm:$0xff]
    %v119 = vld [vmem:[#allocation5] sm:$0xff]
    %v120 = vld [vmem:[#allocation5 + $0x8] sm:$0xff]
    %v121 = vld [vmem:[#allocation5 + $0x10] sm:$0xff]
    %v122 = vld [vmem:[#allocation5 + $0x18] sm:$0xff]
    %v123 = vld [vmem:[%s3] sm:$0x1]
    %v125 = vlaneseq
    %v126 = vshrl.u32 %v125, 7
    %v127 = vsub.s32 0, %v126
    %v128 = vrot.slane %v123, %v127
    %vm130 = vcmask 261120
    %v132 = vsel %vm130, 0.0, 0
    %134 = vmatprep.subr.mxu0 0.0
    %135 = vmatpush1.msra.mxu0 0.0
    %136 = vmatprep.subr.mxu0 0.0
    %137 = vmatpush1.msra.mxu0 0.0
    %138 = vmatprep.subr.mxu0 0.0
    %139 = vmatpush1.msra.mxu0 0.0
    %140 = vmatprep.subr.mxu0 0.0
    %141 = vmatpush1.msra.mxu0 0.0
    %142 = vmatprep.subr.mxu0 0.0
    %143 = vmatpush1.msra.mxu0 0.0
    %144 = vmatprep.subr.mxu0 0.0
    %145 = vmatpush1.msra.mxu0 0.0
    %146 = vmatprep.subr.mxu0 0.0
    %147 = vmatpush1.msra.mxu0 0.0
    %148 = vmatprep.subr.mxu0 0.0
    %149 = vmatpush1.msra.mxu0 0.0
    %150 = vmatprep.subr.mxu0 0.0
    %151 = vmatpush1.msra.mxu0 0.0
    %152 = vmatprep.subr.mxu0 0.0
    %153 = vmatpush1.msra.mxu0 0.0
    %154 = vmatprep.subr.mxu0 0.0
    %155 = vmatpush1.msra.mxu0 0.0
    %156 = vmatprep.subr.mxu0 0.0
    %157 = vmatpush1.msra.mxu0 0.0
    %158 = vmatprep.subr.mxu0 0.0
    %159 = vmatpush1.msra.mxu0 %v122
    %160 = vmatprep.subr.mxu0 0.0
    %161 = vmatpush1.msra.mxu0 %v121
    %162 = vmatprep.subr.mxu0 0.0
    %163 = vmatpush1.msra.mxu0 %v120
    %164 = vmatprep.subr.mxu0 0.0
    %165 = vmatpush1.msra.mxu0 %v119
    %166 = vmatprep.subr.mxu0 0.0
    %167 = vmatpush2.msra.mxu0 0.0
    %168 = vmatprep.subr.mxu0 0.0
    %169 = vmatpush2.msra.mxu0 0.0
    %170 = vmatprep.subr.mxu0 0.0
    %171 = vmatpush2.msra.mxu0 0.0
    %172 = vmatprep.subr.mxu0 0.0
    %173 = vmatpush2.msra.mxu0 0.0
    %174 = vmatprep.subr.mxu0 0.0
    %175 = vmatpush2.msra.mxu0 0.0
    %176 = vmatprep.subr.mxu0 0.0
    %177 = vmatpush2.msra.mxu0 0.0
    %178 = vmatprep.subr.mxu0 0.0
    %179 = vmatpush2.msra.mxu0 0.0
    %180 = vmatprep.subr.mxu0 0.0
    %181 = vmatpush2.msra.mxu0 0.0
    %182 = vmatprep.subr.mxu0 0.0
    %183 = vmatpush2.msra.mxu0 0.0
    %184 = vmatprep.subr.mxu0 0.0
    %185 = vmatpush2.msra.mxu0 0.0
    %186 = vmatprep.subr.mxu0 0.0
    %187 = vmatpush2.msra.mxu0 0.0
    %188 = vmatprep.subr.mxu0 0.0
    %189 = vmatpush2.msra.mxu0 0.0
    %190 = vmatprep.subr.mxu0 0.0
    %191 = vmatpush2.msra.mxu0 0.0
    %192 = vmatprep.subr.mxu0 0.0
    %193 = vmatpush2.msra.mxu0 0.0
    %194 = vmatprep.subr.mxu0 0.0
    %195 = vmatpush2.msra.mxu0 0.0
    %196 = vmatprep.subr.mxu0 0.0
    %197 = vmatpush2.msra.mxu0 0.0
    %198 = vmatprep.mubr.f32.mxu0 0.0
    %199 = vmatmul.mubr.f32.gmra.mxu0 %v132
    %v200 = vpop.f32.mrf.mxu0
    %v201 = vadd.f32 0.0, %v200
    %v202 = vpop.f32.mrf.mxu0
    %203 = vdwg.mxu0
    %204 = vmatprep.subr.mxu0 0.0
    %205 = vmatpush1.msra.mxu0 0.0
    %206 = vmatprep.subr.mxu0 0.0
    %207 = vmatpush1.msra.mxu0 0.0
    %208 = vmatprep.subr.mxu0 0.0
    %209 = vmatpush1.msra.mxu0 0.0
    %210 = vmatprep.subr.mxu0 0.0
    %211 = vmatpush1.msra.mxu0 0.0
    %212 = vmatprep.subr.mxu0 0.0
    %213 = vmatpush1.msra.mxu0 0.0
    %214 = vmatprep.subr.mxu0 0.0
    %215 = vmatpush1.msra.mxu0 0.0
    %216 = vmatprep.subr.mxu0 0.0
    %217 = vmatpush1.msra.mxu0 0.0
    %218 = vmatprep.subr.mxu0 0.0
    %219 = vmatpush1.msra.mxu0 0.0
    %220 = vmatprep.subr.mxu0 0.0
    %221 = vmatpush1.msra.mxu0 0.0
    %222 = vmatprep.subr.mxu0 0.0
    %223 = vmatpush1.msra.mxu0 0.0
    %224 = vmatprep.subr.mxu0 0.0
    %225 = vmatpush1.msra.mxu0 0.0
    %226 = vmatprep.subr.mxu0 0.0
    %227 = vmatpush1.msra.mxu0 0.0
    %228 = vmatprep.subr.mxu0 0.0
    %229 = vmatpush1.msra.mxu0 %v118
    %230 = vmatprep.subr.mxu0 0.0
    %231 = vmatpush1.msra.mxu0 %v117
    %232 = vmatprep.subr.mxu0 0.0
    %233 = vmatpush1.msra.mxu0 %v116
    %234 = vmatprep.subr.mxu0 0.0
    %235 = vmatpush1.msra.mxu0 %v115
    %236 = vmatprep.subr.mxu0 0.0
    %237 = vmatpush2.msra.mxu0 0.0
    %238 = vmatprep.subr.mxu0 0.0
    %239 = vmatpush2.msra.mxu0 0.0
    %240 = vmatprep.subr.mxu0 0.0
    %241 = vmatpush2.msra.mxu0 0.0
    %242 = vmatprep.subr.mxu0 0.0
    %243 = vmatpush2.msra.mxu0 0.0
    %244 = vmatprep.subr.mxu0 0.0
    %245 = vmatpush2.msra.mxu0 0.0
    %246 = vmatprep.subr.mxu0 0.0
    %247 = vmatpush2.msra.mxu0 0.0
    %248 = vmatprep.subr.mxu0 0.0
    %249 = vmatpush2.msra.mxu0 0.0
    %250 = vmatprep.subr.mxu0 0.0
    %251 = vmatpush2.msra.mxu0 0.0
    %252 = vmatprep.subr.mxu0 0.0
    %253 = vmatpush2.msra.mxu0 0.0
    %254 = vmatprep.subr.mxu0 0.0
    %255 = vmatpush2.msra.mxu0 0.0
    %256 = vmatprep.subr.mxu0 0.0
    %257 = vmatpush2.msra.mxu0 0.0
    %258 = vmatprep.subr.mxu0 0.0
    %259 = vmatpush2.msra.mxu0 0.0
    %260 = vmatprep.subr.mxu0 0.0
    %261 = vmatpush2.msra.mxu0 0.0
    %262 = vmatprep.subr.mxu0 0.0
    %263 = vmatpush2.msra.mxu0 0.0
    %264 = vmatprep.subr.mxu0 0.0
    %265 = vmatpush2.msra.mxu0 0.0
    %266 = vmatprep.subr.mxu0 0.0
    %267 = vmatpush2.msra.mxu0 0.0
    %268 = vmatprep.mubr.f32.mxu0 0.0
    %269 = vmatmul.mubr.f32.gmra.mxu0 %v132
    %v270 = vpop.f32.mrf.mxu0
    %v271 = vadd.f32 %v201, %v270
    %v272 = vpop.f32.mrf.mxu0
    %273 = vdwg.mxu0
    %v274 = vadd.f32 %v271, %v128
    %v275 = vxor.u32 %v274, 2147483648
    %v276 = vmul.f32 %v275, 1.442695
    %v277 = vpow.pop %v276
    %v278 = vadd.f32 %v277, 1.0
    %v279 = vrcp.pop %v278
    %v280 = vmul.f32 1.0, %v279
    %v281 = vtanh.pop %v274
    %v282 = vmul.f32 %v280, 0.0
    %284 = vrot.lane.b32.xlu0 %v281, 64
    %v285 = vpop.permute.xlu0 %284
    %v287 = vmul.f32 %v280, %v285
    %289 = vrot.lane.b32.xlu0 %v287, 32
    %v290 = vpop.permute.xlu0 %289
    %v292 = vadd.f32 %v282, %v290
    %v293 = vtanh.pop %v292
    %295 = vrot.lane.b32.xlu0 %v293, 64
    %v296 = vpop.permute.xlu0 %295
    %v298 = vmul.f32 %v280, %v296
    %v300 = vcombine.high %v298, %v298
    %v302 = vunpack.c.l.s4 1966171168
    %v303 = vunpack.c.0.s8 %v302
    %v304 = vlaneseq
    %v305 = vshrl.u32 %v304, 7
    %v306 = vsub.s32 %v303, %v305
    %v307 = vrot.slane %v298, %v306
    %v309 = vunpack.c.l.s4 1966171168
    %v310 = vunpack.c.0.s8 %v309
    %v311 = vlaneseq
    %v312 = vshrl.u32 %v311, 7
    %v313 = vsub.s32 %v310, %v312
    %v314 = vrot.slane %v300, %v313
    %v315 = vcombine.high %v307, %v307
    %v316 = vcombine.high %v314, %v314
    %v318 = vunpack.c.l.s4 1966171168
    %v319 = vunpack.c.0.s8 %v318
    %v320 = vlaneseq
    %v321 = vshrl.u32 %v320, 7
    %v322 = vsub.s32 %v319, %v321
    %v323 = vrot.slane %v307, %v322
    %v325 = vunpack.c.l.s4 1966171168
    %v326 = vunpack.c.0.s8 %v325
    %v327 = vlaneseq
    %v328 = vshrl.u32 %v327, 7
    %v329 = vsub.s32 %v326, %v328
    %v330 = vrot.slane %v314, %v329
    %v332 = vunpack.c.l.s4 1966171168
    %v333 = vunpack.c.0.s8 %v332
    %v334 = vlaneseq
    %v335 = vshrl.u32 %v334, 7
    %v336 = vsub.s32 %v333, %v335
    %v337 = vrot.slane %v315, %v336
    %v339 = vunpack.c.l.s4 1966171168
    %v340 = vunpack.c.0.s8 %v339
    %v341 = vlaneseq
    %v342 = vshrl.u32 %v341, 7
    %v343 = vsub.s32 %v340, %v342
    %v344 = vrot.slane %v316, %v343
    %v345 = vcombine.high %v323, %v323
    %v346 = vcombine.high %v330, %v330
    %v347 = vcombine.high %v337, %v337
    %v348 = vcombine.high %v344, %v344
    %v349 = vlaneseq
    %v350 = vshrl.u32 %v349, 7
    %v351 = vsub.s32 0, %v350
    %v352 = vrot.slane %v323, %v351
    %v353 = vlaneseq
    %v354 = vshrl.u32 %v353, 7
    %v355 = vsub.s32 0, %v354
    %v356 = vrot.slane %v337, %v355
    %v357 = vlaneseq
    %v358 = vshrl.u32 %v357, 7
    %v359 = vsub.s32 0, %v358
    %v360 = vrot.slane %v345, %v359
    %v361 = vlaneseq
    %v362 = vshrl.u32 %v361, 7
    %v363 = vsub.s32 0, %v362
    %v364 = vrot.slane %v347, %v363
    %v365 = vlaneseq
    %v366 = vshrl.u32 %v365, 7
    %v367 = vsub.s32 0, %v366
    %v368 = vrot.slane %v330, %v367
    %v369 = vlaneseq
    %v370 = vshrl.u32 %v369, 7
    %v371 = vsub.s32 0, %v370
    %v372 = vrot.slane %v344, %v371
    %v373 = vlaneseq
    %v374 = vshrl.u32 %v373, 7
    %v375 = vsub.s32 0, %v374
    %v376 = vrot.slane %v346, %v375
    %v377 = vlaneseq
    %v378 = vshrl.u32 %v377, 7
    %v379 = vsub.s32 0, %v378
    %v380 = vrot.slane %v348, %v379
    %397 = vrot.lane.b32.xlu0 %v107, 96
    %v398 = vpop.permute.xlu0 %397
    %399 = vrot.lane.b32.xlu0 %v108, 96
    %v400 = vpop.permute.xlu0 %399
    %401 = vrot.lane.b32.xlu0 %v109, 96
    %v402 = vpop.permute.xlu0 %401
    %403 = vrot.lane.b32.xlu0 %v110, 96
    %v404 = vpop.permute.xlu0 %403
    %405 = vrot.lane.b32.xlu0 %v111, 96
    %v406 = vpop.permute.xlu0 %405
    %407 = vrot.lane.b32.xlu0 %v112, 96
    %v408 = vpop.permute.xlu0 %407
    %409 = vrot.lane.b32.xlu0 %v113, 96
    %v410 = vpop.permute.xlu0 %409
    %411 = vrot.lane.b32.xlu0 %v114, 96
    %v412 = vpop.permute.xlu0 %411
    %v421 = vmul.f32 %v352, %v398
    %v422 = vmul.f32 %v356, %v400
    %v423 = vmul.f32 %v360, %v402
    %v424 = vmul.f32 %v364, %v404
    %v425 = vmul.f32 %v368, %v406
    %v426 = vmul.f32 %v372, %v408
    %v427 = vmul.f32 %v376, %v410
    %v428 = vmul.f32 %v380, %v412
    %437 = vrot.lane.b32.xlu0 %v421, 32
    %v438 = vpop.permute.xlu0 %437
    %439 = vrot.lane.b32.xlu0 %v422, 32
    %v440 = vpop.permute.xlu0 %439
    %441 = vrot.lane.b32.xlu0 %v423, 32
    %v442 = vpop.permute.xlu0 %441
    %443 = vrot.lane.b32.xlu0 %v424, 32
    %v444 = vpop.permute.xlu0 %443
    %445 = vrot.lane.b32.xlu0 %v425, 32
    %v446 = vpop.permute.xlu0 %445
    %447 = vrot.lane.b32.xlu0 %v426, 32
    %v448 = vpop.permute.xlu0 %447
    %449 = vrot.lane.b32.xlu0 %v427, 32
    %v450 = vpop.permute.xlu0 %449
    %451 = vrot.lane.b32.xlu0 %v428, 32
    %v452 = vpop.permute.xlu0 %451
    %v461 = vsel %vm130, %v438, 0.0
    %462 = vadd.xlane.f32.xlu0 %v461
    %v463 = vpop.xlane.xlu0 %462
    %v464 = vsel %vm130, %v440, 0.0
    %465 = vadd.xlane.f32.xlu0 %v464
    %v466 = vpop.xlane.xlu0 %465
    %v467 = vsel %vm130, %v442, 0.0
    %468 = vadd.xlane.f32.xlu0 %v467
    %v469 = vpop.xlane.xlu0 %468
    %v470 = vsel %vm130, %v444, 0.0
    %471 = vadd.xlane.f32.xlu0 %v470
    %v472 = vpop.xlane.xlu0 %471
    %v473 = vsel %vm130, %v446, 0.0
    %474 = vadd.xlane.f32.xlu0 %v473
    %v475 = vpop.xlane.xlu0 %474
    %v476 = vsel %vm130, %v448, 0.0
    %477 = vadd.xlane.f32.xlu0 %v476
    %v478 = vpop.xlane.xlu0 %477
    %v479 = vsel %vm130, %v450, 0.0
    %480 = vadd.xlane.f32.xlu0 %v479
    %v481 = vpop.xlane.xlu0 %480
    %v482 = vsel %vm130, %v452, 0.0
    %483 = vadd.xlane.f32.xlu0 %v482
    %v484 = vpop.xlane.xlu0 %483
    %v493 = vlaneseq
    %v494 = vand.u32 %v493, 127
    %v495 = vlaneseq
    %v496 = vshrl.u32 %v495, 7
    %v497 = vsub.s32 %v494, %v496
    %v498 = vrot.slane %v463, %v497
    %v499 = vlaneseq
    %v500 = vshrl.u32 %v499, 7
    %v501 = vsub.s32 %v494, %v500
    %v502 = vrot.slane %v466, %v501
    %v503 = vlaneseq
    %v504 = vshrl.u32 %v503, 7
    %v505 = vsub.s32 %v494, %v504
    %v506 = vrot.slane %v469, %v505
    %v507 = vlaneseq
    %v508 = vshrl.u32 %v507, 7
    %v509 = vsub.s32 %v494, %v508
    %v510 = vrot.slane %v472, %v509
    %v511 = vlaneseq
    %v512 = vshrl.u32 %v511, 7
    %v513 = vsub.s32 %v494, %v512
    %v514 = vrot.slane %v475, %v513
    %v515 = vlaneseq
    %v516 = vshrl.u32 %v515, 7
    %v517 = vsub.s32 %v494, %v516
    %v518 = vrot.slane %v478, %v517
    %v519 = vlaneseq
    %v520 = vshrl.u32 %v519, 7
    %v521 = vsub.s32 %v494, %v520
    %v522 = vrot.slane %v481, %v521
    %v523 = vlaneseq
    %v524 = vshrl.u32 %v523, 7
    %v525 = vsub.s32 %v494, %v524
    %v526 = vrot.slane %v484, %v525
    %vm527 = vcmask 1041409
    %v528 = vsel %vm527, %v502, %v498
    %vm529 = vcmask 1042434
    %v530 = vsel %vm529, %v506, %v528
    %vm531 = vcmask 1043459
    %v532 = vsel %vm531, %v510, %v530
    %vm533 = vcmask 1044484
    %v534 = vsel %vm533, %v514, %v532
    %vm535 = vcmask 1045509
    %v536 = vsel %vm535, %v518, %v534
    %vm537 = vcmask 1046534
    %v538 = vsel %vm537, %v522, %v536
    %vm539 = vcmask 1047559
    %v540 = vsel %vm539, %v526, %v538
    %vm542 = vcmask 64512
    %v543 = vsel %vm542, %v540, -inf
    %544 = vmax.xlane.f32.xlu0 %v543
    %v545 = vpop.xlane.xlu0 %544
    %v547 = vlaneseq
    %v548 = vshrl.u32 %v547, 7
    %v549 = vsub.s32 0, %v548
    %v550 = vrot.slane %v545, %v549
    %v551 = vlaneseq
    %v552 = vshrl.u32 %v551, 7
    %v553 = vsub.s32 1, %v552
    %v554 = vrot.slane %v545, %v553
    %v555 = vlaneseq
    %v556 = vshrl.u32 %v555, 7
    %v557 = vsub.s32 2, %v556
    %v558 = vrot.slane %v545, %v557
    %v559 = vlaneseq
    %v560 = vshrl.u32 %v559, 7
    %v561 = vsub.s32 3, %v560
    %v562 = vrot.slane %v545, %v561
    %v563 = vlaneseq
    %v564 = vshrl.u32 %v563, 7
    %v565 = vsub.s32 4, %v564
    %v566 = vrot.slane %v545, %v565
    %v567 = vlaneseq
    %v568 = vshrl.u32 %v567, 7
    %v569 = vsub.s32 5, %v568
    %v570 = vrot.slane %v545, %v569
    %v571 = vlaneseq
    %v572 = vshrl.u32 %v571, 7
    %v573 = vsub.s32 6, %v572
    %v574 = vrot.slane %v545, %v573
    %v575 = vlaneseq
    %v576 = vshrl.u32 %v575, 7
    %v577 = vsub.s32 7, %v576
    %v578 = vrot.slane %v545, %v577
    %v587 = vsub.f32 %v463, %v550
    %v588 = vsub.f32 %v466, %v554
    %v589 = vsub.f32 %v469, %v558
    %v590 = vsub.f32 %v472, %v562
    %v591 = vsub.f32 %v475, %v566
    %v592 = vsub.f32 %v478, %v570
    %v593 = vsub.f32 %v481, %v574
    %v594 = vsub.f32 %v484, %v578
    %v595 = vmul.f32 %v587, 1.442695
    %v596 = vpow.pop %v595
    %v597 = vmul.f32 %v588, 1.442695
    %v598 = vpow.pop %v597
    %v599 = vmul.f32 %v589, 1.442695
    %v600 = vpow.pop %v599
    %v601 = vmul.f32 %v590, 1.442695
    %v602 = vpow.pop %v601
    %v603 = vmul.f32 %v591, 1.442695
    %v604 = vpow.pop %v603
    %v605 = vmul.f32 %v592, 1.442695
    %v606 = vpow.pop %v605
    %v607 = vmul.f32 %v593, 1.442695
    %v608 = vpow.pop %v607
    %v609 = vmul.f32 %v594, 1.442695
    %v610 = vpow.pop %v609
    %619 = vset.pattern.permute.xlu0 0
    %620 = vperm.xlu0 %619, %v596
    %v621 = vpop.permute.xlu0 %620
    %622 = vset.pattern.permute.xlu0 0
    %623 = vperm.xlu0 %622, %v598
    %v624 = vpop.permute.xlu0 %623
    %625 = vset.pattern.permute.xlu0 0
    %626 = vperm.xlu0 %625, %v600
    %v627 = vpop.permute.xlu0 %626
    %628 = vset.pattern.permute.xlu0 0
    %629 = vperm.xlu0 %628, %v602
    %v630 = vpop.permute.xlu0 %629
    %631 = vset.pattern.permute.xlu0 0
    %632 = vperm.xlu0 %631, %v604
    %v633 = vpop.permute.xlu0 %632
    %634 = vset.pattern.permute.xlu0 0
    %635 = vperm.xlu0 %634, %v606
    %v636 = vpop.permute.xlu0 %635
    %637 = vset.pattern.permute.xlu0 0
    %638 = vperm.xlu0 %637, %v608
    %v639 = vpop.permute.xlu0 %638
    %640 = vset.pattern.permute.xlu0 0
    %641 = vperm.xlu0 %640, %v610
    %v642 = vpop.permute.xlu0 %641
    %v643 = vlaneseq
    %v644 = vshrl.u32 %v643, 7
    %v645 = vsub.s32 %v494, %v644
    %v646 = vrot.slane %v621, %v645
    %v647 = vlaneseq
    %v648 = vshrl.u32 %v647, 7
    %v649 = vsub.s32 %v494, %v648
    %v650 = vrot.slane %v624, %v649
    %v651 = vlaneseq
    %v652 = vshrl.u32 %v651, 7
    %v653 = vsub.s32 %v494, %v652
    %v654 = vrot.slane %v627, %v653
    %v655 = vlaneseq
    %v656 = vshrl.u32 %v655, 7
    %v657 = vsub.s32 %v494, %v656
    %v658 = vrot.slane %v630, %v657
    %v659 = vlaneseq
    %v660 = vshrl.u32 %v659, 7
    %v661 = vsub.s32 %v494, %v660
    %v662 = vrot.slane %v633, %v661
    %v663 = vlaneseq
    %v664 = vshrl.u32 %v663, 7
    %v665 = vsub.s32 %v494, %v664
    %v666 = vrot.slane %v636, %v665
    %v667 = vlaneseq
    %v668 = vshrl.u32 %v667, 7
    %v669 = vsub.s32 %v494, %v668
    %v670 = vrot.slane %v639, %v669
    %v671 = vlaneseq
    %v672 = vshrl.u32 %v671, 7
    %v673 = vsub.s32 %v494, %v672
    %v674 = vrot.slane %v642, %v673
    %v675 = vsel %vm527, %v650, %v646
    %v676 = vsel %vm529, %v654, %v675
    %v677 = vsel %vm531, %v658, %v676
    %v678 = vsel %vm533, %v662, %v677
    %v679 = vsel %vm535, %v666, %v678
    %v680 = vsel %vm537, %v670, %v679
    %v681 = vsel %vm539, %v674, %v680
    %v683 = vsel %vm542, %v681, 0.0
    %684 = vadd.xlane.f32.xlu0 %v683
    %v685 = vpop.xlane.xlu0 %684
    %v687 = vlaneseq
    %v688 = vshrl.u32 %v687, 7
    %v689 = vsub.s32 0, %v688
    %v690 = vrot.slane %v685, %v689
    %v691 = vlaneseq
    %v692 = vshrl.u32 %v691, 7
    %v693 = vsub.s32 1, %v692
    %v694 = vrot.slane %v685, %v693
    %v695 = vlaneseq
    %v696 = vshrl.u32 %v695, 7
    %v697 = vsub.s32 2, %v696
    %v698 = vrot.slane %v685, %v697
    %v699 = vlaneseq
    %v700 = vshrl.u32 %v699, 7
    %v701 = vsub.s32 3, %v700
    %v702 = vrot.slane %v685, %v701
    %v703 = vlaneseq
    %v704 = vshrl.u32 %v703, 7
    %v705 = vsub.s32 4, %v704
    %v706 = vrot.slane %v685, %v705
    %v707 = vlaneseq
    %v708 = vshrl.u32 %v707, 7
    %v709 = vsub.s32 5, %v708
    %v710 = vrot.slane %v685, %v709
    %v711 = vlaneseq
    %v712 = vshrl.u32 %v711, 7
    %v713 = vsub.s32 6, %v712
    %v714 = vrot.slane %v685, %v713
    %v715 = vlaneseq
    %v716 = vshrl.u32 %v715, 7
    %v717 = vsub.s32 7, %v716
    %v718 = vrot.slane %v685, %v717
    %v727 = vrcp.pop %v690
    %v728 = vmul.f32 %v596, %v727
    %v729 = vrcp.pop %v694
    %v730 = vmul.f32 %v598, %v729
    %v731 = vrcp.pop %v698
    %v732 = vmul.f32 %v600, %v731
    %v733 = vrcp.pop %v702
    %v734 = vmul.f32 %v602, %v733
    %v735 = vrcp.pop %v706
    %v736 = vmul.f32 %v604, %v735
    %v737 = vrcp.pop %v710
    %v738 = vmul.f32 %v606, %v737
    %v739 = vrcp.pop %v714
    %v740 = vmul.f32 %v608, %v739
    %v741 = vrcp.pop %v718
    %v742 = vmul.f32 %v610, %v741
    %744 = vset.pattern.permute.xlu0 0
    %745 = vperm.xlu0 %744, %v728
    %v746 = vpop.permute.xlu0 %745
    %749 = vset.pattern.permute.xlu0 0
    %750 = vperm.xlu0 %749, %v730
    %v751 = vpop.permute.xlu0 %750
    %754 = vset.pattern.permute.xlu0 0
    %755 = vperm.xlu0 %754, %v732
    %v756 = vpop.permute.xlu0 %755
    %759 = vset.pattern.permute.xlu0 0
    %760 = vperm.xlu0 %759, %v734
    %v761 = vpop.permute.xlu0 %760
    %764 = vset.pattern.permute.xlu0 0
    %765 = vperm.xlu0 %764, %v736
    %v766 = vpop.permute.xlu0 %765
    %769 = vset.pattern.permute.xlu0 0
    %770 = vperm.xlu0 %769, %v738
    %v771 = vpop.permute.xlu0 %770
    %774 = vset.pattern.permute.xlu0 0
    %775 = vperm.xlu0 %774, %v740
    %v776 = vpop.permute.xlu0 %775
    %779 = vset.pattern.permute.xlu0 0
    %780 = vperm.xlu0 %779, %v742
    %v781 = vpop.permute.xlu0 %780
    %v783 = vmul.f32 %v746, %v107
    %v784 = vmul.f32 %v751, %v108
    %v785 = vmul.f32 %v756, %v109
    %v786 = vmul.f32 %v761, %v110
    %v787 = vmul.f32 %v766, %v111
    %v788 = vmul.f32 %v771, %v112
    %v789 = vmul.f32 %v776, %v113
    %v790 = vmul.f32 %v781, %v114
    %v791 = vsel %vm130, %v783, 0.0
    %v792 = vrot.slane %v791, 4
    %v793 = vadd.f32 %v791, %v792
    %v794 = vrot.slane %v793, 2
    %v795 = vadd.f32 %v793, %v794
    %v796 = vrot.slane %v795, 1
    %v797 = vadd.f32 %v795, %v796
    %v798 = vsel %vm130, %v784, 0.0
    %v799 = vrot.slane %v798, 4
    %v800 = vadd.f32 %v798, %v799
    %v801 = vrot.slane %v800, 2
    %v802 = vadd.f32 %v800, %v801
    %v803 = vrot.slane %v802, 1
    %v804 = vadd.f32 %v802, %v803
    %v805 = vsel %vm130, %v785, 0.0
    %v806 = vrot.slane %v805, 4
    %v807 = vadd.f32 %v805, %v806
    %v808 = vrot.slane %v807, 2
    %v809 = vadd.f32 %v807, %v808
    %v810 = vrot.slane %v809, 1
    %v811 = vadd.f32 %v809, %v810
    %v812 = vsel %vm130, %v786, 0.0
    %v813 = vrot.slane %v812, 4
    %v814 = vadd.f32 %v812, %v813
    %v815 = vrot.slane %v814, 2
    %v816 = vadd.f32 %v814, %v815
    %v817 = vrot.slane %v816, 1
    %v818 = vadd.f32 %v816, %v817
    %v819 = vsel %vm130, %v787, 0.0
    %v820 = vrot.slane %v819, 4
    %v821 = vadd.f32 %v819, %v820
    %v822 = vrot.slane %v821, 2
    %v823 = vadd.f32 %v821, %v822
    %v824 = vrot.slane %v823, 1
    %v825 = vadd.f32 %v823, %v824
    %v826 = vsel %vm130, %v788, 0.0
    %v827 = vrot.slane %v826, 4
    %v828 = vadd.f32 %v826, %v827
    %v829 = vrot.slane %v828, 2
    %v830 = vadd.f32 %v828, %v829
    %v831 = vrot.slane %v830, 1
    %v832 = vadd.f32 %v830, %v831
    %v833 = vsel %vm130, %v789, 0.0
    %v834 = vrot.slane %v833, 4
    %v835 = vadd.f32 %v833, %v834
    %v836 = vrot.slane %v835, 2
    %v837 = vadd.f32 %v835, %v836
    %v838 = vrot.slane %v837, 1
    %v839 = vadd.f32 %v837, %v838
    %v840 = vsel %vm130, %v790, 0.0
    %v841 = vrot.slane %v840, 4
    %v842 = vadd.f32 %v840, %v841
    %v843 = vrot.slane %v842, 2
    %v844 = vadd.f32 %v842, %v843
    %v845 = vrot.slane %v844, 1
    %v846 = vadd.f32 %v844, %v845
    %v855 = vsel %vm527, %v804, %v797
    %v856 = vsel %vm529, %v811, %v855
    %v857 = vsel %vm531, %v818, %v856
    %v858 = vsel %vm533, %v825, %v857
    %v859 = vsel %vm535, %v832, %v858
    %v860 = vsel %vm537, %v839, %v859
    %v861 = vsel %vm539, %v846, %v860
    %v862 = vsel %vm130, %v861, 0
    %864 = vmatprep.subr.mxu0 0.0
    %865 = vmatpush1.msra.mxu0 0.0
    %866 = vmatprep.subr.mxu0 0.0
    %867 = vmatpush1.msra.mxu0 0.0
    %868 = vmatprep.subr.mxu0 0.0
    %869 = vmatpush1.msra.mxu0 0.0
    %870 = vmatprep.subr.mxu0 0.0
    %871 = vmatpush1.msra.mxu0 0.0
    %872 = vmatprep.subr.mxu0 0.0
    %873 = vmatpush1.msra.mxu0 0.0
    %874 = vmatprep.subr.mxu0 0.0
    %875 = vmatpush1.msra.mxu0 0.0
    %876 = vmatprep.subr.mxu0 0.0
    %877 = vmatpush1.msra.mxu0 0.0
    %878 = vmatprep.subr.mxu0 0.0
    %879 = vmatpush1.msra.mxu0 0.0
    %880 = vmatprep.subr.mxu0 0.0
    %881 = vmatpush1.msra.mxu0 0.0
    %882 = vmatprep.subr.mxu0 0.0
    %883 = vmatpush1.msra.mxu0 0.0
    %884 = vmatprep.subr.mxu0 0.0
    %885 = vmatpush1.msra.mxu0 0.0
    %886 = vmatprep.subr.mxu0 0.0
    %887 = vmatpush1.msra.mxu0 0.0
    %888 = vmatprep.subr.mxu0 0.0
    %889 = vmatpush1.msra.mxu0 %v122
    %890 = vmatprep.subr.mxu0 0.0
    %891 = vmatpush1.msra.mxu0 %v121
    %892 = vmatprep.subr.mxu0 0.0
    %893 = vmatpush1.msra.mxu0 %v120
    %894 = vmatprep.subr.mxu0 0.0
    %895 = vmatpush1.msra.mxu0 %v119
    %896 = vmatprep.subr.mxu0 0.0
    %897 = vmatpush2.msra.mxu0 0.0
    %898 = vmatprep.subr.mxu0 0.0
    %899 = vmatpush2.msra.mxu0 0.0
    %900 = vmatprep.subr.mxu0 0.0
    %901 = vmatpush2.msra.mxu0 0.0
    %902 = vmatprep.subr.mxu0 0.0
    %903 = vmatpush2.msra.mxu0 0.0
    %904 = vmatprep.subr.mxu0 0.0
    %905 = vmatpush2.msra.mxu0 0.0
    %906 = vmatprep.subr.mxu0 0.0
    %907 = vmatpush2.msra.mxu0 0.0
    %908 = vmatprep.subr.mxu0 0.0
    %909 = vmatpush2.msra.mxu0 0.0
    %910 = vmatprep.subr.mxu0 0.0
    %911 = vmatpush2.msra.mxu0 0.0
    %912 = vmatprep.subr.mxu0 0.0
    %913 = vmatpush2.msra.mxu0 0.0
    %914 = vmatprep.subr.mxu0 0.0
    %915 = vmatpush2.msra.mxu0 0.0
    %916 = vmatprep.subr.mxu0 0.0
    %917 = vmatpush2.msra.mxu0 0.0
    %918 = vmatprep.subr.mxu0 0.0
    %919 = vmatpush2.msra.mxu0 0.0
    %920 = vmatprep.subr.mxu0 0.0
    %921 = vmatpush2.msra.mxu0 0.0
    %922 = vmatprep.subr.mxu0 0.0
    %923 = vmatpush2.msra.mxu0 0.0
    %924 = vmatprep.subr.mxu0 0.0
    %925 = vmatpush2.msra.mxu0 0.0
    %926 = vmatprep.subr.mxu0 0.0
    %927 = vmatpush2.msra.mxu0 0.0
    %928 = vmatprep.mubr.f32.mxu0 0.0
    %929 = vmatmul.mubr.f32.gmra.mxu0 %v862
    %v930 = vpop.f32.mrf.mxu0
    %v931 = vadd.f32 0.0, %v930
    %v932 = vpop.f32.mrf.mxu0
    %933 = vdwg.mxu0
    %934 = vrot.lane.b32.xlu0 %v298, 32
    %v935 = vpop.permute.xlu0 %934
    %v936 = vsel %vm130, %v935, 0
    %938 = vmatprep.subr.mxu0 0.0
    %939 = vmatpush1.msra.mxu0 0.0
    %940 = vmatprep.subr.mxu0 0.0
    %941 = vmatpush1.msra.mxu0 0.0
    %942 = vmatprep.subr.mxu0 0.0
    %943 = vmatpush1.msra.mxu0 0.0
    %944 = vmatprep.subr.mxu0 0.0
    %945 = vmatpush1.msra.mxu0 0.0
    %946 = vmatprep.subr.mxu0 0.0
    %947 = vmatpush1.msra.mxu0 0.0
    %948 = vmatprep.subr.mxu0 0.0
    %949 = vmatpush1.msra.mxu0 0.0
    %950 = vmatprep.subr.mxu0 0.0
    %951 = vmatpush1.msra.mxu0 0.0
    %952 = vmatprep.subr.mxu0 0.0
    %953 = vmatpush1.msra.mxu0 0.0
    %954 = vmatprep.subr.mxu0 0.0
    %955 = vmatpush1.msra.mxu0 0.0
    %956 = vmatprep.subr.mxu0 0.0
    %957 = vmatpush1.msra.mxu0 0.0
    %958 = vmatprep.subr.mxu0 0.0
    %959 = vmatpush1.msra.mxu0 0.0
    %960 = vmatprep.subr.mxu0 0.0
    %961 = vmatpush1.msra.mxu0 0.0
    %962 = vmatprep.subr.mxu0 0.0
    %963 = vmatpush1.msra.mxu0 %v118
    %964 = vmatprep.subr.mxu0 0.0
    %965 = vmatpush1.msra.mxu0 %v117
    %966 = vmatprep.subr.mxu0 0.0
    %967 = vmatpush1.msra.mxu0 %v116
    %968 = vmatprep.subr.mxu0 0.0
    %969 = vmatpush1.msra.mxu0 %v115
    %970 = vmatprep.subr.mxu0 0.0
    %971 = vmatpush2.msra.mxu0 0.0
    %972 = vmatprep.subr.mxu0 0.0
    %973 = vmatpush2.msra.mxu0 0.0
    %974 = vmatprep.subr.mxu0 0.0
    %975 = vmatpush2.msra.mxu0 0.0
    %976 = vmatprep.subr.mxu0 0.0
    %977 = vmatpush2.msra.mxu0 0.0
    %978 = vmatprep.subr.mxu0 0.0
    %979 = vmatpush2.msra.mxu0 0.0
    %980 = vmatprep.subr.mxu0 0.0
    %981 = vmatpush2.msra.mxu0 0.0
    %982 = vmatprep.subr.mxu0 0.0
    %983 = vmatpush2.msra.mxu0 0.0
    %984 = vmatprep.subr.mxu0 0.0
    %985 = vmatpush2.msra.mxu0 0.0
    %986 = vmatprep.subr.mxu0 0.0
    %987 = vmatpush2.msra.mxu0 0.0
    %988 = vmatprep.subr.mxu0 0.0
    %989 = vmatpush2.msra.mxu0 0.0
    %990 = vmatprep.subr.mxu0 0.0
    %991 = vmatpush2.msra.mxu0 0.0
    %992 = vmatprep.subr.mxu0 0.0
    %993 = vmatpush2.msra.mxu0 0.0
    %994 = vmatprep.subr.mxu0 0.0
    %995 = vmatpush2.msra.mxu0 0.0
    %996 = vmatprep.subr.mxu0 0.0
    %997 = vmatpush2.msra.mxu0 0.0
    %998 = vmatprep.subr.mxu0 0.0
    %999 = vmatpush2.msra.mxu0 0.0
    %1000 = vmatprep.subr.mxu0 0.0
    %1001 = vmatpush2.msra.mxu0 0.0
    %1002 = vmatprep.mubr.f32.mxu0 0.0
    %1003 = vmatmul.mubr.f32.gmra.mxu0 %v936
    %v1004 = vpop.f32.mrf.mxu0
    %v1005 = vadd.f32 %v931, %v1004
    %v1006 = vpop.f32.mrf.mxu0
    %1007 = vdwg.mxu0
    %v1008 = vadd.f32 %v1005, %v128
    %v1009 = vxor.u32 %v1008, 2147483648
    %v1010 = vmul.f32 %v1009, 1.442695
    %v1011 = vpow.pop %v1010
    %v1012 = vadd.f32 %v1011, 1.0
    %v1013 = vrcp.pop %v1012
    %v1014 = vmul.f32 1.0, %v1013
    %v1015 = vtanh.pop %v1008
    %v1016 = vmul.f32 %v1014, %v292
    %1018 = vrot.lane.b32.xlu0 %v1015, 64
    %v1019 = vpop.permute.xlu0 %1018
    %v1021 = vmul.f32 %v1014, %v1019
    %1023 = vrot.lane.b32.xlu0 %v1021, 32
    %v1024 = vpop.permute.xlu0 %1023
    %v1026 = vadd.f32 %v1016, %v1024
    %v1027 = vtanh.pop %v1026
    %1029 = vrot.lane.b32.xlu0 %v1027, 64
    %v1030 = vpop.permute.xlu0 %1029
    %v1032 = vmul.f32 %v1014, %v1030
    %v1034 = vcombine.high %v1032, %v1032
    %v1036 = vunpack.c.l.s4 1966171168
    %v1037 = vunpack.c.0.s8 %v1036
    %v1038 = vlaneseq
    %v1039 = vshrl.u32 %v1038, 7
    %v1040 = vsub.s32 %v1037, %v1039
    %v1041 = vrot.slane %v1032, %v1040
    %v1043 = vunpack.c.l.s4 1966171168
    %v1044 = vunpack.c.0.s8 %v1043
    %v1045 = vlaneseq
    %v1046 = vshrl.u32 %v1045, 7
    %v1047 = vsub.s32 %v1044, %v1046
    %v1048 = vrot.slane %v1034, %v1047
    %v1049 = vcombine.high %v1041, %v1041
    %v1050 = vcombine.high %v1048, %v1048
    %v1052 = vunpack.c.l.s4 1966171168
    %v1053 = vunpack.c.0.s8 %v1052
    %v1054 = vlaneseq
    %v1055 = vshrl.u32 %v1054, 7
    %v1056 = vsub.s32 %v1053, %v1055
    %v1057 = vrot.slane %v1041, %v1056
    %v1059 = vunpack.c.l.s4 1966171168
    %v1060 = vunpack.c.0.s8 %v1059
    %v1061 = vlaneseq
    %v1062 = vshrl.u32 %v1061, 7
    %v1063 = vsub.s32 %v1060, %v1062
    %v1064 = vrot.slane %v1048, %v1063
    %v1066 = vunpack.c.l.s4 1966171168
    %v1067 = vunpack.c.0.s8 %v1066
    %v1068 = vlaneseq
    %v1069 = vshrl.u32 %v1068, 7
    %v1070 = vsub.s32 %v1067, %v1069
    %v1071 = vrot.slane %v1049, %v1070
    %v1073 = vunpack.c.l.s4 1966171168
    %v1074 = vunpack.c.0.s8 %v1073
    %v1075 = vlaneseq
    %v1076 = vshrl.u32 %v1075, 7
    %v1077 = vsub.s32 %v1074, %v1076
    %v1078 = vrot.slane %v1050, %v1077
    %v1079 = vcombine.high %v1057, %v1057
    %v1080 = vcombine.high %v1064, %v1064
    %v1081 = vcombine.high %v1071, %v1071
    %v1082 = vcombine.high %v1078, %v1078
    %v1083 = vlaneseq
    %v1084 = vshrl.u32 %v1083, 7
    %v1085 = vsub.s32 0, %v1084
    %v1086 = vrot.slane %v1057, %v1085
    %v1087 = vlaneseq
    %v1088 = vshrl.u32 %v1087, 7
    %v1089 = vsub.s32 0, %v1088
    %v1090 = vrot.slane %v1071, %v1089
    %v1091 = vlaneseq
    %v1092 = vshrl.u32 %v1091, 7
    %v1093 = vsub.s32 0, %v1092
    %v1094 = vrot.slane %v1079, %v1093
    %v1095 = vlaneseq
    %v1096 = vshrl.u32 %v1095, 7
    %v1097 = vsub.s32 0, %v1096
    %v1098 = vrot.slane %v1081, %v1097
    %v1099 = vlaneseq
    %v1100 = vshrl.u32 %v1099, 7
    %v1101 = vsub.s32 0, %v1100
    %v1102 = vrot.slane %v1064, %v1101
    %v1103 = vlaneseq
    %v1104 = vshrl.u32 %v1103, 7
    %v1105 = vsub.s32 0, %v1104
    %v1106 = vrot.slane %v1078, %v1105
    %v1107 = vlaneseq
    %v1108 = vshrl.u32 %v1107, 7
    %v1109 = vsub.s32 0, %v1108
    %v1110 = vrot.slane %v1080, %v1109
    %v1111 = vlaneseq
    %v1112 = vshrl.u32 %v1111, 7
    %v1113 = vsub.s32 0, %v1112
    %v1114 = vrot.slane %v1082, %v1113
    %v1123 = vmul.f32 %v1086, %v398
    %v1124 = vmul.f32 %v1090, %v400
    %v1125 = vmul.f32 %v1094, %v402
    %v1126 = vmul.f32 %v1098, %v404
    %v1127 = vmul.f32 %v1102, %v406
    %v1128 = vmul.f32 %v1106, %v408
    %v1129 = vmul.f32 %v1110, %v410
    %v1130 = vmul.f32 %v1114, %v412
    %1139 = vrot.lane.b32.xlu0 %v1123, 32
    %v1140 = vpop.permute.xlu0 %1139
    %1141 = vrot.lane.b32.xlu0 %v1124, 32
    %v1142 = vpop.permute.xlu0 %1141
    %1143 = vrot.lane.b32.xlu0 %v1125, 32
    %v1144 = vpop.permute.xlu0 %1143
    %1145 = vrot.lane.b32.xlu0 %v1126, 32
    %v1146 = vpop.permute.xlu0 %1145
    %1147 = vrot.lane.b32.xlu0 %v1127, 32
    %v1148 = vpop.permute.xlu0 %1147
    %1149 = vrot.lane.b32.xlu0 %v1128, 32
    %v1150 = vpop.permute.xlu0 %1149
    %1151 = vrot.lane.b32.xlu0 %v1129, 32
    %v1152 = vpop.permute.xlu0 %1151
    %1153 = vrot.lane.b32.xlu0 %v1130, 32
    %v1154 = vpop.permute.xlu0 %1153
    %v1163 = vsel %vm130, %v1140, 0.0
    %1164 = vadd.xlane.f32.xlu0 %v1163
    %v1165 = vpop.xlane.xlu0 %1164
    %v1166 = vsel %vm130, %v1142, 0.0
    %1167 = vadd.xlane.f32.xlu0 %v1166
    %v1168 = vpop.xlane.xlu0 %1167
    %v1169 = vsel %vm130, %v1144, 0.0
    %1170 = vadd.xlane.f32.xlu0 %v1169
    %v1171 = vpop.xlane.xlu0 %1170
    %v1172 = vsel %vm130, %v1146, 0.0
    %1173 = vadd.xlane.f32.xlu0 %v1172
    %v1174 = vpop.xlane.xlu0 %1173
    %v1175 = vsel %vm130, %v1148, 0.0
    %1176 = vadd.xlane.f32.xlu0 %v1175
    %v1177 = vpop.xlane.xlu0 %1176
    %v1178 = vsel %vm130, %v1150, 0.0
    %1179 = vadd.xlane.f32.xlu0 %v1178
    %v1180 = vpop.xlane.xlu0 %1179
    %v1181 = vsel %vm130, %v1152, 0.0
    %1182 = vadd.xlane.f32.xlu0 %v1181
    %v1183 = vpop.xlane.xlu0 %1182
    %v1184 = vsel %vm130, %v1154, 0.0
    %1185 = vadd.xlane.f32.xlu0 %v1184
    %v1186 = vpop.xlane.xlu0 %1185
    %v1195 = vlaneseq
    %v1196 = vshrl.u32 %v1195, 7
    %v1197 = vsub.s32 %v494, %v1196
    %v1198 = vrot.slane %v1165, %v1197
    %v1199 = vlaneseq
    %v1200 = vshrl.u32 %v1199, 7
    %v1201 = vsub.s32 %v494, %v1200
    %v1202 = vrot.slane %v1168, %v1201
    %v1203 = vlaneseq
    %v1204 = vshrl.u32 %v1203, 7
    %v1205 = vsub.s32 %v494, %v1204
    %v1206 = vrot.slane %v1171, %v1205
    %v1207 = vlaneseq
    %v1208 = vshrl.u32 %v1207, 7
    %v1209 = vsub.s32 %v494, %v1208
    %v1210 = vrot.slane %v1174, %v1209
    %v1211 = vlaneseq
    %v1212 = vshrl.u32 %v1211, 7
    %v1213 = vsub.s32 %v494, %v1212
    %v1214 = vrot.slane %v1177, %v1213
    %v1215 = vlaneseq
    %v1216 = vshrl.u32 %v1215, 7
    %v1217 = vsub.s32 %v494, %v1216
    %v1218 = vrot.slane %v1180, %v1217
    %v1219 = vlaneseq
    %v1220 = vshrl.u32 %v1219, 7
    %v1221 = vsub.s32 %v494, %v1220
    %v1222 = vrot.slane %v1183, %v1221
    %v1223 = vlaneseq
    %v1224 = vshrl.u32 %v1223, 7
    %v1225 = vsub.s32 %v494, %v1224
    %v1226 = vrot.slane %v1186, %v1225
    %v1227 = vsel %vm527, %v1202, %v1198
    %v1228 = vsel %vm529, %v1206, %v1227
    %v1229 = vsel %vm531, %v1210, %v1228
    %v1230 = vsel %vm533, %v1214, %v1229
    %v1231 = vsel %vm535, %v1218, %v1230
    %v1232 = vsel %vm537, %v1222, %v1231
    %v1233 = vsel %vm539, %v1226, %v1232
    %v1235 = vsel %vm542, %v1233, -inf
    %1236 = vmax.xlane.f32.xlu0 %v1235
    %v1237 = vpop.xlane.xlu0 %1236
    %v1239 = vlaneseq
    %v1240 = vshrl.u32 %v1239, 7
    %v1241 = vsub.s32 0, %v1240
    %v1242 = vrot.slane %v1237, %v1241
    %v1243 = vlaneseq
    %v1244 = vshrl.u32 %v1243, 7
    %v1245 = vsub.s32 1, %v1244
    %v1246 = vrot.slane %v1237, %v1245
    %v1247 = vlaneseq
    %v1248 = vshrl.u32 %v1247, 7
    %v1249 = vsub.s32 2, %v1248
    %v1250 = vrot.slane %v1237, %v1249
    %v1251 = vlaneseq
    %v1252 = vshrl.u32 %v1251, 7
    %v1253 = vsub.s32 3, %v1252
    %v1254 = vrot.slane %v1237, %v1253
    %v1255 = vlaneseq
    %v1256 = vshrl.u32 %v1255, 7
    %v1257 = vsub.s32 4, %v1256
    %v1258 = vrot.slane %v1237, %v1257
    %v1259 = vlaneseq
    %v1260 = vshrl.u32 %v1259, 7
    %v1261 = vsub.s32 5, %v1260
    %v1262 = vrot.slane %v1237, %v1261
    %v1263 = vlaneseq
    %v1264 = vshrl.u32 %v1263, 7
    %v1265 = vsub.s32 6, %v1264
    %v1266 = vrot.slane %v1237, %v1265
    %v1267 = vlaneseq
    %v1268 = vshrl.u32 %v1267, 7
    %v1269 = vsub.s32 7, %v1268
    %v1270 = vrot.slane %v1237, %v1269
    %v1279 = vsub.f32 %v1165, %v1242
    %v1280 = vsub.f32 %v1168, %v1246
    %v1281 = vsub.f32 %v1171, %v1250
    %v1282 = vsub.f32 %v1174, %v1254
    %v1283 = vsub.f32 %v1177, %v1258
    %v1284 = vsub.f32 %v1180, %v1262
    %v1285 = vsub.f32 %v1183, %v1266
    %v1286 = vsub.f32 %v1186, %v1270
    %v1287 = vmul.f32 %v1279, 1.442695
    %v1288 = vpow.pop %v1287
    %v1289 = vmul.f32 %v1280, 1.442695
    %v1290 = vpow.pop %v1289
    %v1291 = vmul.f32 %v1281, 1.442695
    %v1292 = vpow.pop %v1291
    %v1293 = vmul.f32 %v1282, 1.442695
    %v1294 = vpow.pop %v1293
    %v1295 = vmul.f32 %v1283, 1.442695
    %v1296 = vpow.pop %v1295
    %v1297 = vmul.f32 %v1284, 1.442695
    %v1298 = vpow.pop %v1297
    %v1299 = vmul.f32 %v1285, 1.442695
    %v1300 = vpow.pop %v1299
    %v1301 = vmul.f32 %v1286, 1.442695
    %v1302 = vpow.pop %v1301
    %1311 = vset.pattern.permute.xlu0 0
    %1312 = vperm.xlu0 %1311, %v1288
    %v1313 = vpop.permute.xlu0 %1312
    %1314 = vset.pattern.permute.xlu0 0
    %1315 = vperm.xlu0 %1314, %v1290
    %v1316 = vpop.permute.xlu0 %1315
    %1317 = vset.pattern.permute.xlu0 0
    %1318 = vperm.xlu0 %1317, %v1292
    %v1319 = vpop.permute.xlu0 %1318
    %1320 = vset.pattern.permute.xlu0 0
    %1321 = vperm.xlu0 %1320, %v1294
    %v1322 = vpop.permute.xlu0 %1321
    %1323 = vset.pattern.permute.xlu0 0
    %1324 = vperm.xlu0 %1323, %v1296
    %v1325 = vpop.permute.xlu0 %1324
    %1326 = vset.pattern.permute.xlu0 0
    %1327 = vperm.xlu0 %1326, %v1298
    %v1328 = vpop.permute.xlu0 %1327
    %1329 = vset.pattern.permute.xlu0 0
    %1330 = vperm.xlu0 %1329, %v1300
    %v1331 = vpop.permute.xlu0 %1330
    %1332 = vset.pattern.permute.xlu0 0
    %1333 = vperm.xlu0 %1332, %v1302
    %v1334 = vpop.permute.xlu0 %1333
    %v1335 = vlaneseq
    %v1336 = vshrl.u32 %v1335, 7
    %v1337 = vsub.s32 %v494, %v1336
    %v1338 = vrot.slane %v1313, %v1337
    %v1339 = vlaneseq
    %v1340 = vshrl.u32 %v1339, 7
    %v1341 = vsub.s32 %v494, %v1340
    %v1342 = vrot.slane %v1316, %v1341
    %v1343 = vlaneseq
    %v1344 = vshrl.u32 %v1343, 7
    %v1345 = vsub.s32 %v494, %v1344
    %v1346 = vrot.slane %v1319, %v1345
    %v1347 = vlaneseq
    %v1348 = vshrl.u32 %v1347, 7
    %v1349 = vsub.s32 %v494, %v1348
    %v1350 = vrot.slane %v1322, %v1349
    %v1351 = vlaneseq
    %v1352 = vshrl.u32 %v1351, 7
    %v1353 = vsub.s32 %v494, %v1352
    %v1354 = vrot.slane %v1325, %v1353
    %v1355 = vlaneseq
    %v1356 = vshrl.u32 %v1355, 7
    %v1357 = vsub.s32 %v494, %v1356
    %v1358 = vrot.slane %v1328, %v1357
    %v1359 = vlaneseq
    %v1360 = vshrl.u32 %v1359, 7
    %v1361 = vsub.s32 %v494, %v1360
    %v1362 = vrot.slane %v1331, %v1361
    %v1363 = vlaneseq
    %v1364 = vshrl.u32 %v1363, 7
    %v1365 = vsub.s32 %v494, %v1364
    %v1366 = vrot.slane %v1334, %v1365
    %v1367 = vsel %vm527, %v1342, %v1338
    %v1368 = vsel %vm529, %v1346, %v1367
    %v1369 = vsel %vm531, %v1350, %v1368
    %v1370 = vsel %vm533, %v1354, %v1369
    %v1371 = vsel %vm535, %v1358, %v1370
    %v1372 = vsel %vm537, %v1362, %v1371
    %v1373 = vsel %vm539, %v1366, %v1372
    %v1375 = vsel %vm542, %v1373, 0.0
    %1376 = vadd.xlane.f32.xlu0 %v1375
    %v1377 = vpop.xlane.xlu0 %1376
    %v1379 = vlaneseq
    %v1380 = vshrl.u32 %v1379, 7
    %v1381 = vsub.s32 0, %v1380
    %v1382 = vrot.slane %v1377, %v1381
    %v1383 = vlaneseq
    %v1384 = vshrl.u32 %v1383, 7
    %v1385 = vsub.s32 1, %v1384
    %v1386 = vrot.slane %v1377, %v1385
    %v1387 = vlaneseq
    %v1388 = vshrl.u32 %v1387, 7
    %v1389 = vsub.s32 2, %v1388
    %v1390 = vrot.slane %v1377, %v1389
    %v1391 = vlaneseq
    %v1392 = vshrl.u32 %v1391, 7
    %v1393 = vsub.s32 3, %v1392
    %v1394 = vrot.slane %v1377, %v1393
    %v1395 = vlaneseq
    %v1396 = vshrl.u32 %v1395, 7
    %v1397 = vsub.s32 4, %v1396
    %v1398 = vrot.slane %v1377, %v1397
    %v1399 = vlaneseq
    %v1400 = vshrl.u32 %v1399, 7
    %v1401 = vsub.s32 5, %v1400
    %v1402 = vrot.slane %v1377, %v1401
    %v1403 = vlaneseq
    %v1404 = vshrl.u32 %v1403, 7
    %v1405 = vsub.s32 6, %v1404
    %v1406 = vrot.slane %v1377, %v1405
    %v1407 = vlaneseq
    %v1408 = vshrl.u32 %v1407, 7
    %v1409 = vsub.s32 7, %v1408
    %v1410 = vrot.slane %v1377, %v1409
    %v1419 = vrcp.pop %v1382
    %v1420 = vmul.f32 %v1288, %v1419
    %v1421 = vrcp.pop %v1386
    %v1422 = vmul.f32 %v1290, %v1421
    %v1423 = vrcp.pop %v1390
    %v1424 = vmul.f32 %v1292, %v1423
    %v1425 = vrcp.pop %v1394
    %v1426 = vmul.f32 %v1294, %v1425
    %v1427 = vrcp.pop %v1398
    %v1428 = vmul.f32 %v1296, %v1427
    %v1429 = vrcp.pop %v1402
    %v1430 = vmul.f32 %v1298, %v1429
    %v1431 = vrcp.pop %v1406
    %v1432 = vmul.f32 %v1300, %v1431
    %v1433 = vrcp.pop %v1410
    %v1434 = vmul.f32 %v1302, %v1433
    %1436 = vset.pattern.permute.xlu0 0
    %1437 = vperm.xlu0 %1436, %v1420
    %v1438 = vpop.permute.xlu0 %1437
    %1441 = vset.pattern.permute.xlu0 0
    %1442 = vperm.xlu0 %1441, %v1422
    %v1443 = vpop.permute.xlu0 %1442
    %1446 = vset.pattern.permute.xlu0 0
    %1447 = vperm.xlu0 %1446, %v1424
    %v1448 = vpop.permute.xlu0 %1447
    %1451 = vset.pattern.permute.xlu0 0
    %1452 = vperm.xlu0 %1451, %v1426
    %v1453 = vpop.permute.xlu0 %1452
    %1456 = vset.pattern.permute.xlu0 0
    %1457 = vperm.xlu0 %1456, %v1428
    %v1458 = vpop.permute.xlu0 %1457
    %1461 = vset.pattern.permute.xlu0 0
    %1462 = vperm.xlu0 %1461, %v1430
    %v1463 = vpop.permute.xlu0 %1462
    %1466 = vset.pattern.permute.xlu0 0
    %1467 = vperm.xlu0 %1466, %v1432
    %v1468 = vpop.permute.xlu0 %1467
    %1471 = vset.pattern.permute.xlu0 0
    %1472 = vperm.xlu0 %1471, %v1434
    %v1473 = vpop.permute.xlu0 %1472
    %v1475 = vmul.f32 %v1438, %v107
    %v1476 = vmul.f32 %v1443, %v108
    %v1477 = vmul.f32 %v1448, %v109
    %v1478 = vmul.f32 %v1453, %v110
    %v1479 = vmul.f32 %v1458, %v111
    %v1480 = vmul.f32 %v1463, %v112
    %v1481 = vmul.f32 %v1468, %v113
    %v1482 = vmul.f32 %v1473, %v114
    %v1483 = vsel %vm130, %v1475, 0.0
    %v1484 = vrot.slane %v1483, 4
    %v1485 = vadd.f32 %v1483, %v1484
    %v1486 = vrot.slane %v1485, 2
    %v1487 = vadd.f32 %v1485, %v1486
    %v1488 = vrot.slane %v1487, 1
    %v1489 = vadd.f32 %v1487, %v1488
    %v1490 = vsel %vm130, %v1476, 0.0
    %v1491 = vrot.slane %v1490, 4
    %v1492 = vadd.f32 %v1490, %v1491
    %v1493 = vrot.slane %v1492, 2
    %v1494 = vadd.f32 %v1492, %v1493
    %v1495 = vrot.slane %v1494, 1
    %v1496 = vadd.f32 %v1494, %v1495
    %v1497 = vsel %vm130, %v1477, 0.0
    %v1498 = vrot.slane %v1497, 4
    %v1499 = vadd.f32 %v1497, %v1498
    %v1500 = vrot.slane %v1499, 2
    %v1501 = vadd.f32 %v1499, %v1500
    %v1502 = vrot.slane %v1501, 1
    %v1503 = vadd.f32 %v1501, %v1502
    %v1504 = vsel %vm130, %v1478, 0.0
    %v1505 = vrot.slane %v1504, 4
    %v1506 = vadd.f32 %v1504, %v1505
    %v1507 = vrot.slane %v1506, 2
    %v1508 = vadd.f32 %v1506, %v1507
    %v1509 = vrot.slane %v1508, 1
    %v1510 = vadd.f32 %v1508, %v1509
    %v1511 = vsel %vm130, %v1479, 0.0
    %v1512 = vrot.slane %v1511, 4
    %v1513 = vadd.f32 %v1511, %v1512
    %v1514 = vrot.slane %v1513, 2
    %v1515 = vadd.f32 %v1513, %v1514
    %v1516 = vrot.slane %v1515, 1
    %v1517 = vadd.f32 %v1515, %v1516
    %v1518 = vsel %vm130, %v1480, 0.0
    %v1519 = vrot.slane %v1518, 4
    %v1520 = vadd.f32 %v1518, %v1519
    %v1521 = vrot.slane %v1520, 2
    %v1522 = vadd.f32 %v1520, %v1521
    %v1523 = vrot.slane %v1522, 1
    %v1524 = vadd.f32 %v1522, %v1523
    %v1525 = vsel %vm130, %v1481, 0.0
    %v1526 = vrot.slane %v1525, 4
    %v1527 = vadd.f32 %v1525, %v1526
    %v1528 = vrot.slane %v1527, 2
    %v1529 = vadd.f32 %v1527, %v1528
    %v1530 = vrot.slane %v1529, 1
    %v1531 = vadd.f32 %v1529, %v1530
    %v1532 = vsel %vm130, %v1482, 0.0
    %v1533 = vrot.slane %v1532, 4
    %v1534 = vadd.f32 %v1532, %v1533
    %v1535 = vrot.slane %v1534, 2
    %v1536 = vadd.f32 %v1534, %v1535
    %v1537 = vrot.slane %v1536, 1
    %v1538 = vadd.f32 %v1536, %v1537
    %v1547 = vsel %vm527, %v1496, %v1489
    %v1548 = vsel %vm529, %v1503, %v1547
    %v1549 = vsel %vm531, %v1510, %v1548
    %v1550 = vsel %vm533, %v1517, %v1549
    %v1551 = vsel %vm535, %v1524, %v1550
    %v1552 = vsel %vm537, %v1531, %v1551
    %v1553 = vsel %vm539, %v1538, %v1552
    %v1554 = vsel %vm130, %v1553, 0
    %1556 = vmatprep.subr.mxu0 0.0
    %1557 = vmatpush1.msra.mxu0 0.0
    %1558 = vmatprep.subr.mxu0 0.0
    %1559 = vmatpush1.msra.mxu0 0.0
    %1560 = vmatprep.subr.mxu0 0.0
    %1561 = vmatpush1.msra.mxu0 0.0
    %1562 = vmatprep.subr.mxu0 0.0
    %1563 = vmatpush1.msra.mxu0 0.0
    %1564 = vmatprep.subr.mxu0 0.0
    %1565 = vmatpush1.msra.mxu0 0.0
    %1566 = vmatprep.subr.mxu0 0.0
    %1567 = vmatpush1.msra.mxu0 0.0
    %1568 = vmatprep.subr.mxu0 0.0
    %1569 = vmatpush1.msra.mxu0 0.0
    %1570 = vmatprep.subr.mxu0 0.0
    %1571 = vmatpush1.msra.mxu0 0.0
    %1572 = vmatprep.subr.mxu0 0.0
    %1573 = vmatpush1.msra.mxu0 0.0
    %1574 = vmatprep.subr.mxu0 0.0
    %1575 = vmatpush1.msra.mxu0 0.0
    %1576 = vmatprep.subr.mxu0 0.0
    %1577 = vmatpush1.msra.mxu0 0.0
    %1578 = vmatprep.subr.mxu0 0.0
    %1579 = vmatpush1.msra.mxu0 0.0
    %1580 = vmatprep.subr.mxu0 0.0
    %1581 = vmatpush1.msra.mxu0 %v122
    %1582 = vmatprep.subr.mxu0 0.0
    %1583 = vmatpush1.msra.mxu0 %v121
    %1584 = vmatprep.subr.mxu0 0.0
    %1585 = vmatpush1.msra.mxu0 %v120
    %1586 = vmatprep.subr.mxu0 0.0
    %1587 = vmatpush1.msra.mxu0 %v119
    %1588 = vmatprep.subr.mxu0 0.0
    %1589 = vmatpush2.msra.mxu0 0.0
    %1590 = vmatprep.subr.mxu0 0.0
    %1591 = vmatpush2.msra.mxu0 0.0
    %1592 = vmatprep.subr.mxu0 0.0
    %1593 = vmatpush2.msra.mxu0 0.0
    %1594 = vmatprep.subr.mxu0 0.0
    %1595 = vmatpush2.msra.mxu0 0.0
    %1596 = vmatprep.subr.mxu0 0.0
    %1597 = vmatpush2.msra.mxu0 0.0
    %1598 = vmatprep.subr.mxu0 0.0
    %1599 = vmatpush2.msra.mxu0 0.0
    %1600 = vmatprep.subr.mxu0 0.0
    %1601 = vmatpush2.msra.mxu0 0.0
    %1602 = vmatprep.subr.mxu0 0.0
    %1603 = vmatpush2.msra.mxu0 0.0
    %1604 = vmatprep.subr.mxu0 0.0
    %1605 = vmatpush2.msra.mxu0 0.0
    %1606 = vmatprep.subr.mxu0 0.0
    %1607 = vmatpush2.msra.mxu0 0.0
    %1608 = vmatprep.subr.mxu0 0.0
    %1609 = vmatpush2.msra.mxu0 0.0
    %1610 = vmatprep.subr.mxu0 0.0
    %1611 = vmatpush2.msra.mxu0 0.0
    %1612 = vmatprep.subr.mxu0 0.0
    %1613 = vmatpush2.msra.mxu0 0.0
    %1614 = vmatprep.subr.mxu0 0.0
    %1615 = vmatpush2.msra.mxu0 0.0
    %1616 = vmatprep.subr.mxu0 0.0
    %1617 = vmatpush2.msra.mxu0 0.0
    %1618 = vmatprep.subr.mxu0 0.0
    %1619 = vmatpush2.msra.mxu0 0.0
    %1620 = vmatprep.mubr.f32.mxu0 0.0
    %1621 = vmatmul.mubr.f32.gmra.mxu0 %v1554
    %v1622 = vpop.f32.mrf.mxu0
    %v1623 = vadd.f32 0.0, %v1622
    %v1624 = vpop.f32.mrf.mxu0
    %1625 = vdwg.mxu0
    %1626 = vrot.lane.b32.xlu0 %v1032, 32
    %v1627 = vpop.permute.xlu0 %1626
    %v1628 = vsel %vm130, %v1627, 0
    %1630 = vmatprep.subr.mxu0 0.0
    %1631 = vmatpush1.msra.mxu0 0.0
    %1632 = vmatprep.subr.mxu0 0.0
    %1633 = vmatpush1.msra.mxu0 0.0
    %1634 = vmatprep.subr.mxu0 0.0
    %1635 = vmatpush1.msra.mxu0 0.0
    %1636 = vmatprep.subr.mxu0 0.0
    %1637 = vmatpush1.msra.mxu0 0.0
    %1638 = vmatprep.subr.mxu0 0.0
    %1639 = vmatpush1.msra.mxu0 0.0
    %1640 = vmatprep.subr.mxu0 0.0
    %1641 = vmatpush1.msra.mxu0 0.0
    %1642 = vmatprep.subr.mxu0 0.0
    %1643 = vmatpush1.msra.mxu0 0.0
    %1644 = vmatprep.subr.mxu0 0.0
    %1645 = vmatpush1.msra.mxu0 0.0
    %1646 = vmatprep.subr.mxu0 0.0
    %1647 = vmatpush1.msra.mxu0 0.0
    %1648 = vmatprep.subr.mxu0 0.0
    %1649 = vmatpush1.msra.mxu0 0.0
    %1650 = vmatprep.subr.mxu0 0.0
    %1651 = vmatpush1.msra.mxu0 0.0
    %1652 = vmatprep.subr.mxu0 0.0
    %1653 = vmatpush1.msra.mxu0 0.0
    %1654 = vmatprep.subr.mxu0 0.0
    %1655 = vmatpush1.msra.mxu0 %v118
    %1656 = vmatprep.subr.mxu0 0.0
    %1657 = vmatpush1.msra.mxu0 %v117
    %1658 = vmatprep.subr.mxu0 0.0
    %1659 = vmatpush1.msra.mxu0 %v116
    %1660 = vmatprep.subr.mxu0 0.0
    %1661 = vmatpush1.msra.mxu0 %v115
    %1662 = vmatprep.subr.mxu0 0.0
    %1663 = vmatpush2.msra.mxu0 0.0
    %1664 = vmatprep.subr.mxu0 0.0
    %1665 = vmatpush2.msra.mxu0 0.0
    %1666 = vmatprep.subr.mxu0 0.0
    %1667 = vmatpush2.msra.mxu0 0.0
    %1668 = vmatprep.subr.mxu0 0.0
    %1669 = vmatpush2.msra.mxu0 0.0
    %1670 = vmatprep.subr.mxu0 0.0
    %1671 = vmatpush2.msra.mxu0 0.0
    %1672 = vmatprep.subr.mxu0 0.0
    %1673 = vmatpush2.msra.mxu0 0.0
    %1674 = vmatprep.subr.mxu0 0.0
    %1675 = vmatpush2.msra.mxu0 0.0
    %1676 = vmatprep.subr.mxu0 0.0
    %1677 = vmatpush2.msra.mxu0 0.0
    %1678 = vmatprep.subr.mxu0 0.0
    %1679 = vmatpush2.msra.mxu0 0.0
    %1680 = vmatprep.subr.mxu0 0.0
    %1681 = vmatpush2.msra.mxu0 0.0
    %1682 = vmatprep.subr.mxu0 0.0
    %1683 = vmatpush2.msra.mxu0 0.0
    %1684 = vmatprep.subr.mxu0 0.0
    %1685 = vmatpush2.msra.mxu0 0.0
    %1686 = vmatprep.subr.mxu0 0.0
    %1687 = vmatpush2.msra.mxu0 0.0
    %1688 = vmatprep.subr.mxu0 0.0
    %1689 = vmatpush2.msra.mxu0 0.0
    %1690 = vmatprep.subr.mxu0 0.0
    %1691 = vmatpush2.msra.mxu0 0.0
    %1692 = vmatprep.subr.mxu0 0.0
    %1693 = vmatpush2.msra.mxu0 0.0
    %1694 = vmatprep.mubr.f32.mxu0 0.0
    %1695 = vmatmul.mubr.f32.gmra.mxu0 %v1628
    %v1696 = vpop.f32.mrf.mxu0
    %v1697 = vadd.f32 %v1623, %v1696
    %v1698 = vpop.f32.mrf.mxu0
    %1699 = vdwg.mxu0
    %v1700 = vadd.f32 %v1697, %v128
    %v1701 = vxor.u32 %v1700, 2147483648
    %v1702 = vmul.f32 %v1701, 1.442695
    %v1703 = vpow.pop %v1702
    %v1704 = vadd.f32 %v1703, 1.0
    %v1705 = vrcp.pop %v1704
    %v1706 = vmul.f32 1.0, %v1705
    %v1707 = vtanh.pop %v1700
    %v1708 = vmul.f32 %v1706, %v1026
    %1710 = vrot.lane.b32.xlu0 %v1707, 64
    %v1711 = vpop.permute.xlu0 %1710
    %v1713 = vmul.f32 %v1706, %v1711
    %1715 = vrot.lane.b32.xlu0 %v1713, 32
    %v1716 = vpop.permute.xlu0 %1715
    %v1718 = vadd.f32 %v1708, %v1716
    %v1719 = vtanh.pop %v1718
    %1721 = vrot.lane.b32.xlu0 %v1719, 64
    %v1722 = vpop.permute.xlu0 %1721
    %v1724 = vmul.f32 %v1706, %v1722
    %v1726 = vcombine.high %v1724, %v1724
    %v1728 = vunpack.c.l.s4 1966171168
    %v1729 = vunpack.c.0.s8 %v1728
    %v1730 = vlaneseq
    %v1731 = vshrl.u32 %v1730, 7
    %v1732 = vsub.s32 %v1729, %v1731
    %v1733 = vrot.slane %v1724, %v1732
    %v1735 = vunpack.c.l.s4 1966171168
    %v1736 = vunpack.c.0.s8 %v1735
    %v1737 = vlaneseq
    %v1738 = vshrl.u32 %v1737, 7
    %v1739 = vsub.s32 %v1736, %v1738
    %v1740 = vrot.slane %v1726, %v1739
    %v1741 = vcombine.high %v1733, %v1733
    %v1742 = vcombine.high %v1740, %v1740
    %v1744 = vunpack.c.l.s4 1966171168
    %v1745 = vunpack.c.0.s8 %v1744
    %v1746 = vlaneseq
    %v1747 = vshrl.u32 %v1746, 7
    %v1748 = vsub.s32 %v1745, %v1747
    %v1749 = vrot.slane %v1733, %v1748
    %v1751 = vunpack.c.l.s4 1966171168
    %v1752 = vunpack.c.0.s8 %v1751
    %v1753 = vlaneseq
    %v1754 = vshrl.u32 %v1753, 7
    %v1755 = vsub.s32 %v1752, %v1754
    %v1756 = vrot.slane %v1740, %v1755
    %v1758 = vunpack.c.l.s4 1966171168
    %v1759 = vunpack.c.0.s8 %v1758
    %v1760 = vlaneseq
    %v1761 = vshrl.u32 %v1760, 7
    %v1762 = vsub.s32 %v1759, %v1761
    %v1763 = vrot.slane %v1741, %v1762
    %v1765 = vunpack.c.l.s4 1966171168
    %v1766 = vunpack.c.0.s8 %v1765
    %v1767 = vlaneseq
    %v1768 = vshrl.u32 %v1767, 7
    %v1769 = vsub.s32 %v1766, %v1768
    %v1770 = vrot.slane %v1742, %v1769
    %v1771 = vcombine.high %v1749, %v1749
    %v1772 = vcombine.high %v1756, %v1756
    %v1773 = vcombine.high %v1763, %v1763
    %v1774 = vcombine.high %v1770, %v1770
    %v1775 = vlaneseq
    %v1776 = vshrl.u32 %v1775, 7
    %v1777 = vsub.s32 0, %v1776
    %v1778 = vrot.slane %v1749, %v1777
    %v1779 = vlaneseq
    %v1780 = vshrl.u32 %v1779, 7
    %v1781 = vsub.s32 0, %v1780
    %v1782 = vrot.slane %v1763, %v1781
    %v1783 = vlaneseq
    %v1784 = vshrl.u32 %v1783, 7
    %v1785 = vsub.s32 0, %v1784
    %v1786 = vrot.slane %v1771, %v1785
    %v1787 = vlaneseq
    %v1788 = vshrl.u32 %v1787, 7
    %v1789 = vsub.s32 0, %v1788
    %v1790 = vrot.slane %v1773, %v1789
    %v1791 = vlaneseq
    %v1792 = vshrl.u32 %v1791, 7
    %v1793 = vsub.s32 0, %v1792
    %v1794 = vrot.slane %v1756, %v1793
    %v1795 = vlaneseq
    %v1796 = vshrl.u32 %v1795, 7
    %v1797 = vsub.s32 0, %v1796
    %v1798 = vrot.slane %v1770, %v1797
    %v1799 = vlaneseq
    %v1800 = vshrl.u32 %v1799, 7
    %v1801 = vsub.s32 0, %v1800
    %v1802 = vrot.slane %v1772, %v1801
    %v1803 = vlaneseq
    %v1804 = vshrl.u32 %v1803, 7
    %v1805 = vsub.s32 0, %v1804
    %v1806 = vrot.slane %v1774, %v1805
    %v1815 = vmul.f32 %v1778, %v398
    %v1816 = vmul.f32 %v1782, %v400
    %v1817 = vmul.f32 %v1786, %v402
    %v1818 = vmul.f32 %v1790, %v404
    %v1819 = vmul.f32 %v1794, %v406
    %v1820 = vmul.f32 %v1798, %v408
    %v1821 = vmul.f32 %v1802, %v410
    %v1822 = vmul.f32 %v1806, %v412
    %1831 = vrot.lane.b32.xlu0 %v1815, 32
    %v1832 = vpop.permute.xlu0 %1831
    %1833 = vrot.lane.b32.xlu0 %v1816, 32
    %v1834 = vpop.permute.xlu0 %1833
    %1835 = vrot.lane.b32.xlu0 %v1817, 32
    %v1836 = vpop.permute.xlu0 %1835
    %1837 = vrot.lane.b32.xlu0 %v1818, 32
    %v1838 = vpop.permute.xlu0 %1837
    %1839 = vrot.lane.b32.xlu0 %v1819, 32
    %v1840 = vpop.permute.xlu0 %1839
    %1841 = vrot.lane.b32.xlu0 %v1820, 32
    %v1842 = vpop.permute.xlu0 %1841
    %1843 = vrot.lane.b32.xlu0 %v1821, 32
    %v1844 = vpop.permute.xlu0 %1843
    %1845 = vrot.lane.b32.xlu0 %v1822, 32
    %v1846 = vpop.permute.xlu0 %1845
    %v1855 = vsel %vm130, %v1832, 0.0
    %1856 = vadd.xlane.f32.xlu0 %v1855
    %v1857 = vpop.xlane.xlu0 %1856
    %v1858 = vsel %vm130, %v1834, 0.0
    %1859 = vadd.xlane.f32.xlu0 %v1858
    %v1860 = vpop.xlane.xlu0 %1859
    %v1861 = vsel %vm130, %v1836, 0.0
    %1862 = vadd.xlane.f32.xlu0 %v1861
    %v1863 = vpop.xlane.xlu0 %1862
    %v1864 = vsel %vm130, %v1838, 0.0
    %1865 = vadd.xlane.f32.xlu0 %v1864
    %v1866 = vpop.xlane.xlu0 %1865
    %v1867 = vsel %vm130, %v1840, 0.0
    %1868 = vadd.xlane.f32.xlu0 %v1867
    %v1869 = vpop.xlane.xlu0 %1868
    %v1870 = vsel %vm130, %v1842, 0.0
    %1871 = vadd.xlane.f32.xlu0 %v1870
    %v1872 = vpop.xlane.xlu0 %1871
    %v1873 = vsel %vm130, %v1844, 0.0
    %1874 = vadd.xlane.f32.xlu0 %v1873
    %v1875 = vpop.xlane.xlu0 %1874
    %v1876 = vsel %vm130, %v1846, 0.0
    %1877 = vadd.xlane.f32.xlu0 %v1876
    %v1878 = vpop.xlane.xlu0 %1877
    %v1887 = vlaneseq
    %v1888 = vshrl.u32 %v1887, 7
    %v1889 = vsub.s32 %v494, %v1888
    %v1890 = vrot.slane %v1857, %v1889
    %v1891 = vlaneseq
    %v1892 = vshrl.u32 %v1891, 7
    %v1893 = vsub.s32 %v494, %v1892
    %v1894 = vrot.slane %v1860, %v1893
    %v1895 = vlaneseq
    %v1896 = vshrl.u32 %v1895, 7
    %v1897 = vsub.s32 %v494, %v1896
    %v1898 = vrot.slane %v1863, %v1897
    %v1899 = vlaneseq
    %v1900 = vshrl.u32 %v1899, 7
    %v1901 = vsub.s32 %v494, %v1900
    %v1902 = vrot.slane %v1866, %v1901
    %v1903 = vlaneseq
    %v1904 = vshrl.u32 %v1903, 7
    %v1905 = vsub.s32 %v494, %v1904
    %v1906 = vrot.slane %v1869, %v1905
    %v1907 = vlaneseq
    %v1908 = vshrl.u32 %v1907, 7
    %v1909 = vsub.s32 %v494, %v1908
    %v1910 = vrot.slane %v1872, %v1909
    %v1911 = vlaneseq
    %v1912 = vshrl.u32 %v1911, 7
    %v1913 = vsub.s32 %v494, %v1912
    %v1914 = vrot.slane %v1875, %v1913
    %v1915 = vlaneseq
    %v1916 = vshrl.u32 %v1915, 7
    %v1917 = vsub.s32 %v494, %v1916
    %v1918 = vrot.slane %v1878, %v1917
    %v1919 = vsel %vm527, %v1894, %v1890
    %v1920 = vsel %vm529, %v1898, %v1919
    %v1921 = vsel %vm531, %v1902, %v1920
    %v1922 = vsel %vm533, %v1906, %v1921
    %v1923 = vsel %vm535, %v1910, %v1922
    %v1924 = vsel %vm537, %v1914, %v1923
    %v1925 = vsel %vm539, %v1918, %v1924
    %v1927 = vsel %vm542, %v1925, -inf
    %1928 = vmax.xlane.f32.xlu0 %v1927
    %v1929 = vpop.xlane.xlu0 %1928
    %v1931 = vlaneseq
    %v1932 = vshrl.u32 %v1931, 7
    %v1933 = vsub.s32 0, %v1932
    %v1934 = vrot.slane %v1929, %v1933
    %v1935 = vlaneseq
    %v1936 = vshrl.u32 %v1935, 7
    %v1937 = vsub.s32 1, %v1936
    %v1938 = vrot.slane %v1929, %v1937
    %v1939 = vlaneseq
    %v1940 = vshrl.u32 %v1939, 7
    %v1941 = vsub.s32 2, %v1940
    %v1942 = vrot.slane %v1929, %v1941
    %v1943 = vlaneseq
    %v1944 = vshrl.u32 %v1943, 7
    %v1945 = vsub.s32 3, %v1944
    %v1946 = vrot.slane %v1929, %v1945
    %v1947 = vlaneseq
    %v1948 = vshrl.u32 %v1947, 7
    %v1949 = vsub.s32 4, %v1948
    %v1950 = vrot.slane %v1929, %v1949
    %v1951 = vlaneseq
    %v1952 = vshrl.u32 %v1951, 7
    %v1953 = vsub.s32 5, %v1952
    %v1954 = vrot.slane %v1929, %v1953
    %v1955 = vlaneseq
    %v1956 = vshrl.u32 %v1955, 7
    %v1957 = vsub.s32 6, %v1956
    %v1958 = vrot.slane %v1929, %v1957
    %v1959 = vlaneseq
    %v1960 = vshrl.u32 %v1959, 7
    %v1961 = vsub.s32 7, %v1960
    %v1962 = vrot.slane %v1929, %v1961
    %v1971 = vsub.f32 %v1857, %v1934
    %v1972 = vsub.f32 %v1860, %v1938
    %v1973 = vsub.f32 %v1863, %v1942
    %v1974 = vsub.f32 %v1866, %v1946
    %v1975 = vsub.f32 %v1869, %v1950
    %v1976 = vsub.f32 %v1872, %v1954
    %v1977 = vsub.f32 %v1875, %v1958
    %v1978 = vsub.f32 %v1878, %v1962
    %v1979 = vmul.f32 %v1971, 1.442695
    %v1980 = vpow.pop %v1979
    %v1981 = vmul.f32 %v1972, 1.442695
    %v1982 = vpow.pop %v1981
    %v1983 = vmul.f32 %v1973, 1.442695
    %v1984 = vpow.pop %v1983
    %v1985 = vmul.f32 %v1974, 1.442695
    %v1986 = vpow.pop %v1985
    %v1987 = vmul.f32 %v1975, 1.442695
    %v1988 = vpow.pop %v1987
    %v1989 = vmul.f32 %v1976, 1.442695
    %v1990 = vpow.pop %v1989
    %v1991 = vmul.f32 %v1977, 1.442695
    %v1992 = vpow.pop %v1991
    %v1993 = vmul.f32 %v1978, 1.442695
    %v1994 = vpow.pop %v1993
    %2003 = vset.pattern.permute.xlu0 0
    %2004 = vperm.xlu0 %2003, %v1980
    %v2005 = vpop.permute.xlu0 %2004
    %2006 = vset.pattern.permute.xlu0 0
    %2007 = vperm.xlu0 %2006, %v1982
    %v2008 = vpop.permute.xlu0 %2007
    %2009 = vset.pattern.permute.xlu0 0
    %2010 = vperm.xlu0 %2009, %v1984
    %v2011 = vpop.permute.xlu0 %2010
    %2012 = vset.pattern.permute.xlu0 0
    %2013 = vperm.xlu0 %2012, %v1986
    %v2014 = vpop.permute.xlu0 %2013
    %2015 = vset.pattern.permute.xlu0 0
    %2016 = vperm.xlu0 %2015, %v1988
    %v2017 = vpop.permute.xlu0 %2016
    %2018 = vset.pattern.permute.xlu0 0
    %2019 = vperm.xlu0 %2018, %v1990
    %v2020 = vpop.permute.xlu0 %2019
    %2021 = vset.pattern.permute.xlu0 0
    %2022 = vperm.xlu0 %2021, %v1992
    %v2023 = vpop.permute.xlu0 %2022
    %2024 = vset.pattern.permute.xlu0 0
    %2025 = vperm.xlu0 %2024, %v1994
    %v2026 = vpop.permute.xlu0 %2025
    %v2027 = vlaneseq
    %v2028 = vshrl.u32 %v2027, 7
    %v2029 = vsub.s32 %v494, %v2028
    %v2030 = vrot.slane %v2005, %v2029
    %v2031 = vlaneseq
    %v2032 = vshrl.u32 %v2031, 7
    %v2033 = vsub.s32 %v494, %v2032
    %v2034 = vrot.slane %v2008, %v2033
    %v2035 = vlaneseq
    %v2036 = vshrl.u32 %v2035, 7
    %v2037 = vsub.s32 %v494, %v2036
    %v2038 = vrot.slane %v2011, %v2037
    %v2039 = vlaneseq
    %v2040 = vshrl.u32 %v2039, 7
    %v2041 = vsub.s32 %v494, %v2040
    %v2042 = vrot.slane %v2014, %v2041
    %v2043 = vlaneseq
    %v2044 = vshrl.u32 %v2043, 7
    %v2045 = vsub.s32 %v494, %v2044
    %v2046 = vrot.slane %v2017, %v2045
    %v2047 = vlaneseq
    %v2048 = vshrl.u32 %v2047, 7
    %v2049 = vsub.s32 %v494, %v2048
    %v2050 = vrot.slane %v2020, %v2049
    %v2051 = vlaneseq
    %v2052 = vshrl.u32 %v2051, 7
    %v2053 = vsub.s32 %v494, %v2052
    %v2054 = vrot.slane %v2023, %v2053
    %v2055 = vlaneseq
    %v2056 = vshrl.u32 %v2055, 7
    %v2057 = vsub.s32 %v494, %v2056
    %v2058 = vrot.slane %v2026, %v2057
    %v2059 = vsel %vm527, %v2034, %v2030
    %v2060 = vsel %vm529, %v2038, %v2059
    %v2061 = vsel %vm531, %v2042, %v2060
    %v2062 = vsel %vm533, %v2046, %v2061
    %v2063 = vsel %vm535, %v2050, %v2062
    %v2064 = vsel %vm537, %v2054, %v2063
    %v2065 = vsel %vm539, %v2058, %v2064
    %v2067 = vsel %vm542, %v2065, 0.0
    %2068 = vadd.xlane.f32.xlu0 %v2067
    %v2069 = vpop.xlane.xlu0 %2068
    %v2071 = vlaneseq
    %v2072 = vshrl.u32 %v2071, 7
    %v2073 = vsub.s32 0, %v2072
    %v2074 = vrot.slane %v2069, %v2073
    %v2075 = vlaneseq
    %v2076 = vshrl.u32 %v2075, 7
    %v2077 = vsub.s32 1, %v2076
    %v2078 = vrot.slane %v2069, %v2077
    %v2079 = vlaneseq
    %v2080 = vshrl.u32 %v2079, 7
    %v2081 = vsub.s32 2, %v2080
    %v2082 = vrot.slane %v2069, %v2081
    %v2083 = vlaneseq
    %v2084 = vshrl.u32 %v2083, 7
    %v2085 = vsub.s32 3, %v2084
    %v2086 = vrot.slane %v2069, %v2085
    %v2087 = vlaneseq
    %v2088 = vshrl.u32 %v2087, 7
    %v2089 = vsub.s32 4, %v2088
    %v2090 = vrot.slane %v2069, %v2089
    %v2091 = vlaneseq
    %v2092 = vshrl.u32 %v2091, 7
    %v2093 = vsub.s32 5, %v2092
    %v2094 = vrot.slane %v2069, %v2093
    %v2095 = vlaneseq
    %v2096 = vshrl.u32 %v2095, 7
    %v2097 = vsub.s32 6, %v2096
    %v2098 = vrot.slane %v2069, %v2097
    %v2099 = vlaneseq
    %v2100 = vshrl.u32 %v2099, 7
    %v2101 = vsub.s32 7, %v2100
    %v2102 = vrot.slane %v2069, %v2101
    %v2111 = vrcp.pop %v2074
    %v2112 = vmul.f32 %v1980, %v2111
    %v2113 = vrcp.pop %v2078
    %v2114 = vmul.f32 %v1982, %v2113
    %v2115 = vrcp.pop %v2082
    %v2116 = vmul.f32 %v1984, %v2115
    %v2117 = vrcp.pop %v2086
    %v2118 = vmul.f32 %v1986, %v2117
    %v2119 = vrcp.pop %v2090
    %v2120 = vmul.f32 %v1988, %v2119
    %v2121 = vrcp.pop %v2094
    %v2122 = vmul.f32 %v1990, %v2121
    %v2123 = vrcp.pop %v2098
    %v2124 = vmul.f32 %v1992, %v2123
    %v2125 = vrcp.pop %v2102
    %v2126 = vmul.f32 %v1994, %v2125
    %2128 = vset.pattern.permute.xlu0 0
    %2129 = vperm.xlu0 %2128, %v2112
    %v2130 = vpop.permute.xlu0 %2129
    %2133 = vset.pattern.permute.xlu0 0
    %2134 = vperm.xlu0 %2133, %v2114
    %v2135 = vpop.permute.xlu0 %2134
    %2138 = vset.pattern.permute.xlu0 0
    %2139 = vperm.xlu0 %2138, %v2116
    %v2140 = vpop.permute.xlu0 %2139
    %2143 = vset.pattern.permute.xlu0 0
    %2144 = vperm.xlu0 %2143, %v2118
    %v2145 = vpop.permute.xlu0 %2144
    %2148 = vset.pattern.permute.xlu0 0
    %2149 = vperm.xlu0 %2148, %v2120
    %v2150 = vpop.permute.xlu0 %2149
    %2153 = vset.pattern.permute.xlu0 0
    %2154 = vperm.xlu0 %2153, %v2122
    %v2155 = vpop.permute.xlu0 %2154
    %2158 = vset.pattern.permute.xlu0 0
    %2159 = vperm.xlu0 %2158, %v2124
    %v2160 = vpop.permute.xlu0 %2159
    %2163 = vset.pattern.permute.xlu0 0
    %2164 = vperm.xlu0 %2163, %v2126
    %v2165 = vpop.permute.xlu0 %2164
    %v2167 = vmul.f32 %v2130, %v107
    %v2168 = vmul.f32 %v2135, %v108
    %v2169 = vmul.f32 %v2140, %v109
    %v2170 = vmul.f32 %v2145, %v110
    %v2171 = vmul.f32 %v2150, %v111
    %v2172 = vmul.f32 %v2155, %v112
    %v2173 = vmul.f32 %v2160, %v113
    %v2174 = vmul.f32 %v2165, %v114
    %v2175 = vsel %vm130, %v2167, 0.0
    %v2176 = vrot.slane %v2175, 4
    %v2177 = vadd.f32 %v2175, %v2176
    %v2178 = vrot.slane %v2177, 2
    %v2179 = vadd.f32 %v2177, %v2178
    %v2180 = vrot.slane %v2179, 1
    %v2181 = vadd.f32 %v2179, %v2180
    %v2182 = vsel %vm130, %v2168, 0.0
    %v2183 = vrot.slane %v2182, 4
    %v2184 = vadd.f32 %v2182, %v2183
    %v2185 = vrot.slane %v2184, 2
    %v2186 = vadd.f32 %v2184, %v2185
    %v2187 = vrot.slane %v2186, 1
    %v2188 = vadd.f32 %v2186, %v2187
    %v2189 = vsel %vm130, %v2169, 0.0
    %v2190 = vrot.slane %v2189, 4
    %v2191 = vadd.f32 %v2189, %v2190
    %v2192 = vrot.slane %v2191, 2
    %v2193 = vadd.f32 %v2191, %v2192
    %v2194 = vrot.slane %v2193, 1
    %v2195 = vadd.f32 %v2193, %v2194
    %v2196 = vsel %vm130, %v2170, 0.0
    %v2197 = vrot.slane %v2196, 4
    %v2198 = vadd.f32 %v2196, %v2197
    %v2199 = vrot.slane %v2198, 2
    %v2200 = vadd.f32 %v2198, %v2199
    %v2201 = vrot.slane %v2200, 1
    %v2202 = vadd.f32 %v2200, %v2201
    %v2203 = vsel %vm130, %v2171, 0.0
    %v2204 = vrot.slane %v2203, 4
    %v2205 = vadd.f32 %v2203, %v2204
    %v2206 = vrot.slane %v2205, 2
    %v2207 = vadd.f32 %v2205, %v2206
    %v2208 = vrot.slane %v2207, 1
    %v2209 = vadd.f32 %v2207, %v2208
    %v2210 = vsel %vm130, %v2172, 0.0
    %v2211 = vrot.slane %v2210, 4
    %v2212 = vadd.f32 %v2210, %v2211
    %v2213 = vrot.slane %v2212, 2
    %v2214 = vadd.f32 %v2212, %v2213
    %v2215 = vrot.slane %v2214, 1
    %v2216 = vadd.f32 %v2214, %v2215
    %v2217 = vsel %vm130, %v2173, 0.0
    %v2218 = vrot.slane %v2217, 4
    %v2219 = vadd.f32 %v2217, %v2218
    %v2220 = vrot.slane %v2219, 2
    %v2221 = vadd.f32 %v2219, %v2220
    %v2222 = vrot.slane %v2221, 1
    %v2223 = vadd.f32 %v2221, %v2222
    %v2224 = vsel %vm130, %v2174, 0.0
    %v2225 = vrot.slane %v2224, 4
    %v2226 = vadd.f32 %v2224, %v2225
    %v2227 = vrot.slane %v2226, 2
    %v2228 = vadd.f32 %v2226, %v2227
    %v2229 = vrot.slane %v2228, 1
    %v2230 = vadd.f32 %v2228, %v2229
    %v2239 = vsel %vm527, %v2188, %v2181
    %v2240 = vsel %vm529, %v2195, %v2239
    %v2241 = vsel %vm531, %v2202, %v2240
    %v2242 = vsel %vm533, %v2209, %v2241
    %v2243 = vsel %vm535, %v2216, %v2242
    %v2244 = vsel %vm537, %v2223, %v2243
    %v2245 = vsel %vm539, %v2230, %v2244
    %v2246 = vsel %vm130, %v2245, 0
    %2248 = vmatprep.subr.mxu0 0.0
    %2249 = vmatpush1.msra.mxu0 0.0
    %2250 = vmatprep.subr.mxu0 0.0
    %2251 = vmatpush1.msra.mxu0 0.0
    %2252 = vmatprep.subr.mxu0 0.0
    %2253 = vmatpush1.msra.mxu0 0.0
    %2254 = vmatprep.subr.mxu0 0.0
    %2255 = vmatpush1.msra.mxu0 0.0
    %2256 = vmatprep.subr.mxu0 0.0
    %2257 = vmatpush1.msra.mxu0 0.0
    %2258 = vmatprep.subr.mxu0 0.0
    %2259 = vmatpush1.msra.mxu0 0.0
    %2260 = vmatprep.subr.mxu0 0.0
    %2261 = vmatpush1.msra.mxu0 0.0
    %2262 = vmatprep.subr.mxu0 0.0
    %2263 = vmatpush1.msra.mxu0 0.0
    %2264 = vmatprep.subr.mxu0 0.0
    %2265 = vmatpush1.msra.mxu0 0.0
    %2266 = vmatprep.subr.mxu0 0.0
    %2267 = vmatpush1.msra.mxu0 0.0
    %2268 = vmatprep.subr.mxu0 0.0
    %2269 = vmatpush1.msra.mxu0 0.0
    %2270 = vmatprep.subr.mxu0 0.0
    %2271 = vmatpush1.msra.mxu0 0.0
    %2272 = vmatprep.subr.mxu0 0.0
    %2273 = vmatpush1.msra.mxu0 %v122
    %2274 = vmatprep.subr.mxu0 0.0
    %2275 = vmatpush1.msra.mxu0 %v121
    %2276 = vmatprep.subr.mxu0 0.0
    %2277 = vmatpush1.msra.mxu0 %v120
    %2278 = vmatprep.subr.mxu0 0.0
    %2279 = vmatpush1.msra.mxu0 %v119
    %2280 = vmatprep.subr.mxu0 0.0
    %2281 = vmatpush2.msra.mxu0 0.0
    %2282 = vmatprep.subr.mxu0 0.0
    %2283 = vmatpush2.msra.mxu0 0.0
    %2284 = vmatprep.subr.mxu0 0.0
    %2285 = vmatpush2.msra.mxu0 0.0
    %2286 = vmatprep.subr.mxu0 0.0
    %2287 = vmatpush2.msra.mxu0 0.0
    %2288 = vmatprep.subr.mxu0 0.0
    %2289 = vmatpush2.msra.mxu0 0.0
    %2290 = vmatprep.subr.mxu0 0.0
    %2291 = vmatpush2.msra.mxu0 0.0
    %2292 = vmatprep.subr.mxu0 0.0
    %2293 = vmatpush2.msra.mxu0 0.0
    %2294 = vmatprep.subr.mxu0 0.0
    %2295 = vmatpush2.msra.mxu0 0.0
    %2296 = vmatprep.subr.mxu0 0.0
    %2297 = vmatpush2.msra.mxu0 0.0
    %2298 = vmatprep.subr.mxu0 0.0
    %2299 = vmatpush2.msra.mxu0 0.0
    %2300 = vmatprep.subr.mxu0 0.0
    %2301 = vmatpush2.msra.mxu0 0.0
    %2302 = vmatprep.subr.mxu0 0.0
    %2303 = vmatpush2.msra.mxu0 0.0
    %2304 = vmatprep.subr.mxu0 0.0
    %2305 = vmatpush2.msra.mxu0 0.0
    %2306 = vmatprep.subr.mxu0 0.0
    %2307 = vmatpush2.msra.mxu0 0.0
    %2308 = vmatprep.subr.mxu0 0.0
    %2309 = vmatpush2.msra.mxu0 0.0
    %2310 = vmatprep.subr.mxu0 0.0
    %2311 = vmatpush2.msra.mxu0 0.0
    %2312 = vmatprep.mubr.f32.mxu0 0.0
    %2313 = vmatmul.mubr.f32.gmra.mxu0 %v2246
    %v2314 = vpop.f32.mrf.mxu0
    %v2315 = vadd.f32 0.0, %v2314
    %v2316 = vpop.f32.mrf.mxu0
    %2317 = vdwg.mxu0
    %2318 = vrot.lane.b32.xlu0 %v1724, 32
    %v2319 = vpop.permute.xlu0 %2318
    %v2320 = vsel %vm130, %v2319, 0
    %2322 = vmatprep.subr.mxu0 0.0
    %2323 = vmatpush1.msra.mxu0 0.0
    %2324 = vmatprep.subr.mxu0 0.0
    %2325 = vmatpush1.msra.mxu0 0.0
    %2326 = vmatprep.subr.mxu0 0.0
    %2327 = vmatpush1.msra.mxu0 0.0
    %2328 = vmatprep.subr.mxu0 0.0
    %2329 = vmatpush1.msra.mxu0 0.0
    %2330 = vmatprep.subr.mxu0 0.0
    %2331 = vmatpush1.msra.mxu0 0.0
    %2332 = vmatprep.subr.mxu0 0.0
    %2333 = vmatpush1.msra.mxu0 0.0
    %2334 = vmatprep.subr.mxu0 0.0
    %2335 = vmatpush1.msra.mxu0 0.0
    %2336 = vmatprep.subr.mxu0 0.0
    %2337 = vmatpush1.msra.mxu0 0.0
    %2338 = vmatprep.subr.mxu0 0.0
    %2339 = vmatpush1.msra.mxu0 0.0
    %2340 = vmatprep.subr.mxu0 0.0
    %2341 = vmatpush1.msra.mxu0 0.0
    %2342 = vmatprep.subr.mxu0 0.0
    %2343 = vmatpush1.msra.mxu0 0.0
    %2344 = vmatprep.subr.mxu0 0.0
    %2345 = vmatpush1.msra.mxu0 0.0
    %2346 = vmatprep.subr.mxu0 0.0
    %2347 = vmatpush1.msra.mxu0 %v118
    %2348 = vmatprep.subr.mxu0 0.0
    %2349 = vmatpush1.msra.mxu0 %v117
    %2350 = vmatprep.subr.mxu0 0.0
    %2351 = vmatpush1.msra.mxu0 %v116
    %2352 = vmatprep.subr.mxu0 0.0
    %2353 = vmatpush1.msra.mxu0 %v115
    %2354 = vmatprep.subr.mxu0 0.0
    %2355 = vmatpush2.msra.mxu0 0.0
    %2356 = vmatprep.subr.mxu0 0.0
    %2357 = vmatpush2.msra.mxu0 0.0
    %2358 = vmatprep.subr.mxu0 0.0
    %2359 = vmatpush2.msra.mxu0 0.0
    %2360 = vmatprep.subr.mxu0 0.0
    %2361 = vmatpush2.msra.mxu0 0.0
    %2362 = vmatprep.subr.mxu0 0.0
    %2363 = vmatpush2.msra.mxu0 0.0
    %2364 = vmatprep.subr.mxu0 0.0
    %2365 = vmatpush2.msra.mxu0 0.0
    %2366 = vmatprep.subr.mxu0 0.0
    %2367 = vmatpush2.msra.mxu0 0.0
    %2368 = vmatprep.subr.mxu0 0.0
    %2369 = vmatpush2.msra.mxu0 0.0
    %2370 = vmatprep.subr.mxu0 0.0
    %2371 = vmatpush2.msra.mxu0 0.0
    %2372 = vmatprep.subr.mxu0 0.0
    %2373 = vmatpush2.msra.mxu0 0.0
    %2374 = vmatprep.subr.mxu0 0.0
    %2375 = vmatpush2.msra.mxu0 0.0
    %2376 = vmatprep.subr.mxu0 0.0
    %2377 = vmatpush2.msra.mxu0 0.0
    %2378 = vmatprep.subr.mxu0 0.0
    %2379 = vmatpush2.msra.mxu0 0.0
    %2380 = vmatprep.subr.mxu0 0.0
    %2381 = vmatpush2.msra.mxu0 0.0
    %2382 = vmatprep.subr.mxu0 0.0
    %2383 = vmatpush2.msra.mxu0 0.0
    %2384 = vmatprep.subr.mxu0 0.0
    %2385 = vmatpush2.msra.mxu0 0.0
    %2386 = vmatprep.mubr.f32.mxu0 0.0
    %2387 = vmatmul.mubr.f32.gmra.mxu0 %v2320
    %v2388 = vpop.f32.mrf.mxu0
    %v2389 = vadd.f32 %v2315, %v2388
    %v2390 = vpop.f32.mrf.mxu0
    %2391 = vdwg.mxu0
    %v2392 = vadd.f32 %v2389, %v128
    %v2393 = vxor.u32 %v2392, 2147483648
    %v2394 = vmul.f32 %v2393, 1.442695
    %v2395 = vpow.pop %v2394
    %v2396 = vadd.f32 %v2395, 1.0
    %v2397 = vrcp.pop %v2396
    %v2398 = vmul.f32 1.0, %v2397
    %v2399 = vtanh.pop %v2392
    %v2400 = vmul.f32 %v2398, %v1718
    %2402 = vrot.lane.b32.xlu0 %v2399, 64
    %v2403 = vpop.permute.xlu0 %2402
    %v2405 = vmul.f32 %v2398, %v2403
    %2407 = vrot.lane.b32.xlu0 %v2405, 32
    %v2408 = vpop.permute.xlu0 %2407
    %v2410 = vadd.f32 %v2400, %v2408
    %v2411 = vtanh.pop %v2410
    %2413 = vrot.lane.b32.xlu0 %v2411, 64
    %v2414 = vpop.permute.xlu0 %2413
    %v2416 = vmul.f32 %v2398, %v2414
    %v2418 = vcombine.high %v2416, %v2416
    %v2420 = vunpack.c.l.s4 1966171168
    %v2421 = vunpack.c.0.s8 %v2420
    %v2422 = vlaneseq
    %v2423 = vshrl.u32 %v2422, 7
    %v2424 = vsub.s32 %v2421, %v2423
    %v2425 = vrot.slane %v2416, %v2424
    %v2427 = vunpack.c.l.s4 1966171168
    %v2428 = vunpack.c.0.s8 %v2427
    %v2429 = vlaneseq
    %v2430 = vshrl.u32 %v2429, 7
    %v2431 = vsub.s32 %v2428, %v2430
    %v2432 = vrot.slane %v2418, %v2431
    %v2433 = vcombine.high %v2425, %v2425
    %v2434 = vcombine.high %v2432, %v2432
    %v2436 = vunpack.c.l.s4 1966171168
    %v2437 = vunpack.c.0.s8 %v2436
    %v2438 = vlaneseq
    %v2439 = vshrl.u32 %v2438, 7
    %v2440 = vsub.s32 %v2437, %v2439
    %v2441 = vrot.slane %v2425, %v2440
    %v2443 = vunpack.c.l.s4 1966171168
    %v2444 = vunpack.c.0.s8 %v2443
    %v2445 = vlaneseq
    %v2446 = vshrl.u32 %v2445, 7
    %v2447 = vsub.s32 %v2444, %v2446
    %v2448 = vrot.slane %v2432, %v2447
    %v2450 = vunpack.c.l.s4 1966171168
    %v2451 = vunpack.c.0.s8 %v2450
    %v2452 = vlaneseq
    %v2453 = vshrl.u32 %v2452, 7
    %v2454 = vsub.s32 %v2451, %v2453
    %v2455 = vrot.slane %v2433, %v2454
    %v2457 = vunpack.c.l.s4 1966171168
    %v2458 = vunpack.c.0.s8 %v2457
    %v2459 = vlaneseq
    %v2460 = vshrl.u32 %v2459, 7
    %v2461 = vsub.s32 %v2458, %v2460
    %v2462 = vrot.slane %v2434, %v2461
    %v2463 = vcombine.high %v2441, %v2441
    %v2464 = vcombine.high %v2448, %v2448
    %v2465 = vcombine.high %v2455, %v2455
    %v2466 = vcombine.high %v2462, %v2462
    %v2467 = vlaneseq
    %v2468 = vshrl.u32 %v2467, 7
    %v2469 = vsub.s32 0, %v2468
    %v2470 = vrot.slane %v2441, %v2469
    %v2471 = vlaneseq
    %v2472 = vshrl.u32 %v2471, 7
    %v2473 = vsub.s32 0, %v2472
    %v2474 = vrot.slane %v2455, %v2473
    %v2475 = vlaneseq
    %v2476 = vshrl.u32 %v2475, 7
    %v2477 = vsub.s32 0, %v2476
    %v2478 = vrot.slane %v2463, %v2477
    %v2479 = vlaneseq
    %v2480 = vshrl.u32 %v2479, 7
    %v2481 = vsub.s32 0, %v2480
    %v2482 = vrot.slane %v2465, %v2481
    %v2483 = vlaneseq
    %v2484 = vshrl.u32 %v2483, 7
    %v2485 = vsub.s32 0, %v2484
    %v2486 = vrot.slane %v2448, %v2485
    %v2487 = vlaneseq
    %v2488 = vshrl.u32 %v2487, 7
    %v2489 = vsub.s32 0, %v2488
    %v2490 = vrot.slane %v2462, %v2489
    %v2491 = vlaneseq
    %v2492 = vshrl.u32 %v2491, 7
    %v2493 = vsub.s32 0, %v2492
    %v2494 = vrot.slane %v2464, %v2493
    %v2495 = vlaneseq
    %v2496 = vshrl.u32 %v2495, 7
    %v2497 = vsub.s32 0, %v2496
    %v2498 = vrot.slane %v2466, %v2497
    %v2507 = vmul.f32 %v2470, %v398
    %v2508 = vmul.f32 %v2474, %v400
    %v2509 = vmul.f32 %v2478, %v402
    %v2510 = vmul.f32 %v2482, %v404
    %v2511 = vmul.f32 %v2486, %v406
    %v2512 = vmul.f32 %v2490, %v408
    %v2513 = vmul.f32 %v2494, %v410
    %v2514 = vmul.f32 %v2498, %v412
    %2523 = vrot.lane.b32.xlu0 %v2507, 32
    %v2524 = vpop.permute.xlu0 %2523
    %2525 = vrot.lane.b32.xlu0 %v2508, 32
    %v2526 = vpop.permute.xlu0 %2525
    %2527 = vrot.lane.b32.xlu0 %v2509, 32
    %v2528 = vpop.permute.xlu0 %2527
    %2529 = vrot.lane.b32.xlu0 %v2510, 32
    %v2530 = vpop.permute.xlu0 %2529
    %2531 = vrot.lane.b32.xlu0 %v2511, 32
    %v2532 = vpop.permute.xlu0 %2531
    %2533 = vrot.lane.b32.xlu0 %v2512, 32
    %v2534 = vpop.permute.xlu0 %2533
    %2535 = vrot.lane.b32.xlu0 %v2513, 32
    %v2536 = vpop.permute.xlu0 %2535
    %2537 = vrot.lane.b32.xlu0 %v2514, 32
    %v2538 = vpop.permute.xlu0 %2537
    %v2547 = vsel %vm130, %v2524, 0.0
    %2548 = vadd.xlane.f32.xlu0 %v2547
    %v2549 = vpop.xlane.xlu0 %2548
    %v2550 = vsel %vm130, %v2526, 0.0
    %2551 = vadd.xlane.f32.xlu0 %v2550
    %v2552 = vpop.xlane.xlu0 %2551
    %v2553 = vsel %vm130, %v2528, 0.0
    %2554 = vadd.xlane.f32.xlu0 %v2553
    %v2555 = vpop.xlane.xlu0 %2554
    %v2556 = vsel %vm130, %v2530, 0.0
    %2557 = vadd.xlane.f32.xlu0 %v2556
    %v2558 = vpop.xlane.xlu0 %2557
    %v2559 = vsel %vm130, %v2532, 0.0
    %2560 = vadd.xlane.f32.xlu0 %v2559
    %v2561 = vpop.xlane.xlu0 %2560
    %v2562 = vsel %vm130, %v2534, 0.0
    %2563 = vadd.xlane.f32.xlu0 %v2562
    %v2564 = vpop.xlane.xlu0 %2563
    %v2565 = vsel %vm130, %v2536, 0.0
    %2566 = vadd.xlane.f32.xlu0 %v2565
    %v2567 = vpop.xlane.xlu0 %2566
    %v2568 = vsel %vm130, %v2538, 0.0
    %2569 = vadd.xlane.f32.xlu0 %v2568
    %v2570 = vpop.xlane.xlu0 %2569
    %v2579 = vlaneseq
    %v2580 = vshrl.u32 %v2579, 7
    %v2581 = vsub.s32 %v494, %v2580
    %v2582 = vrot.slane %v2549, %v2581
    %v2583 = vlaneseq
    %v2584 = vshrl.u32 %v2583, 7
    %v2585 = vsub.s32 %v494, %v2584
    %v2586 = vrot.slane %v2552, %v2585
    %v2587 = vlaneseq
    %v2588 = vshrl.u32 %v2587, 7
    %v2589 = vsub.s32 %v494, %v2588
    %v2590 = vrot.slane %v2555, %v2589
    %v2591 = vlaneseq
    %v2592 = vshrl.u32 %v2591, 7
    %v2593 = vsub.s32 %v494, %v2592
    %v2594 = vrot.slane %v2558, %v2593
    %v2595 = vlaneseq
    %v2596 = vshrl.u32 %v2595, 7
    %v2597 = vsub.s32 %v494, %v2596
    %v2598 = vrot.slane %v2561, %v2597
    %v2599 = vlaneseq
    %v2600 = vshrl.u32 %v2599, 7
    %v2601 = vsub.s32 %v494, %v2600
    %v2602 = vrot.slane %v2564, %v2601
    %v2603 = vlaneseq
    %v2604 = vshrl.u32 %v2603, 7
    %v2605 = vsub.s32 %v494, %v2604
    %v2606 = vrot.slane %v2567, %v2605
    %v2607 = vlaneseq
    %v2608 = vshrl.u32 %v2607, 7
    %v2609 = vsub.s32 %v494, %v2608
    %v2610 = vrot.slane %v2570, %v2609
    %v2611 = vsel %vm527, %v2586, %v2582
    %v2612 = vsel %vm529, %v2590, %v2611
    %v2613 = vsel %vm531, %v2594, %v2612
    %v2614 = vsel %vm533, %v2598, %v2613
    %v2615 = vsel %vm535, %v2602, %v2614
    %v2616 = vsel %vm537, %v2606, %v2615
    %v2617 = vsel %vm539, %v2610, %v2616
    %v2619 = vsel %vm542, %v2617, -inf
    %2620 = vmax.xlane.f32.xlu0 %v2619
    %v2621 = vpop.xlane.xlu0 %2620
    %v2623 = vlaneseq
    %v2624 = vshrl.u32 %v2623, 7
    %v2625 = vsub.s32 0, %v2624
    %v2626 = vrot.slane %v2621, %v2625
    %v2627 = vlaneseq
    %v2628 = vshrl.u32 %v2627, 7
    %v2629 = vsub.s32 1, %v2628
    %v2630 = vrot.slane %v2621, %v2629
    %v2631 = vlaneseq
    %v2632 = vshrl.u32 %v2631, 7
    %v2633 = vsub.s32 2, %v2632
    %v2634 = vrot.slane %v2621, %v2633
    %v2635 = vlaneseq
    %v2636 = vshrl.u32 %v2635, 7
    %v2637 = vsub.s32 3, %v2636
    %v2638 = vrot.slane %v2621, %v2637
    %v2639 = vlaneseq
    %v2640 = vshrl.u32 %v2639, 7
    %v2641 = vsub.s32 4, %v2640
    %v2642 = vrot.slane %v2621, %v2641
    %v2643 = vlaneseq
    %v2644 = vshrl.u32 %v2643, 7
    %v2645 = vsub.s32 5, %v2644
    %v2646 = vrot.slane %v2621, %v2645
    %v2647 = vlaneseq
    %v2648 = vshrl.u32 %v2647, 7
    %v2649 = vsub.s32 6, %v2648
    %v2650 = vrot.slane %v2621, %v2649
    %v2651 = vlaneseq
    %v2652 = vshrl.u32 %v2651, 7
    %v2653 = vsub.s32 7, %v2652
    %v2654 = vrot.slane %v2621, %v2653
    %v2663 = vsub.f32 %v2549, %v2626
    %v2664 = vsub.f32 %v2552, %v2630
    %v2665 = vsub.f32 %v2555, %v2634
    %v2666 = vsub.f32 %v2558, %v2638
    %v2667 = vsub.f32 %v2561, %v2642
    %v2668 = vsub.f32 %v2564, %v2646
    %v2669 = vsub.f32 %v2567, %v2650
    %v2670 = vsub.f32 %v2570, %v2654
    %v2671 = vmul.f32 %v2663, 1.442695
    %v2672 = vpow.pop %v2671
    %v2673 = vmul.f32 %v2664, 1.442695
    %v2674 = vpow.pop %v2673
    %v2675 = vmul.f32 %v2665, 1.442695
    %v2676 = vpow.pop %v2675
    %v2677 = vmul.f32 %v2666, 1.442695
    %v2678 = vpow.pop %v2677
    %v2679 = vmul.f32 %v2667, 1.442695
    %v2680 = vpow.pop %v2679
    %v2681 = vmul.f32 %v2668, 1.442695
    %v2682 = vpow.pop %v2681
    %v2683 = vmul.f32 %v2669, 1.442695
    %v2684 = vpow.pop %v2683
    %v2685 = vmul.f32 %v2670, 1.442695
    %v2686 = vpow.pop %v2685
    %2695 = vset.pattern.permute.xlu0 0
    %2696 = vperm.xlu0 %2695, %v2672
    %v2697 = vpop.permute.xlu0 %2696
    %2698 = vset.pattern.permute.xlu0 0
    %2699 = vperm.xlu0 %2698, %v2674
    %v2700 = vpop.permute.xlu0 %2699
    %2701 = vset.pattern.permute.xlu0 0
    %2702 = vperm.xlu0 %2701, %v2676
    %v2703 = vpop.permute.xlu0 %2702
    %2704 = vset.pattern.permute.xlu0 0
    %2705 = vperm.xlu0 %2704, %v2678
    %v2706 = vpop.permute.xlu0 %2705
    %2707 = vset.pattern.permute.xlu0 0
    %2708 = vperm.xlu0 %2707, %v2680
    %v2709 = vpop.permute.xlu0 %2708
    %2710 = vset.pattern.permute.xlu0 0
    %2711 = vperm.xlu0 %2710, %v2682
    %v2712 = vpop.permute.xlu0 %2711
    %2713 = vset.pattern.permute.xlu0 0
    %2714 = vperm.xlu0 %2713, %v2684
    %v2715 = vpop.permute.xlu0 %2714
    %2716 = vset.pattern.permute.xlu0 0
    %2717 = vperm.xlu0 %2716, %v2686
    %v2718 = vpop.permute.xlu0 %2717
    %v2719 = vlaneseq
    %v2720 = vshrl.u32 %v2719, 7
    %v2721 = vsub.s32 %v494, %v2720
    %v2722 = vrot.slane %v2697, %v2721
    %v2723 = vlaneseq
    %v2724 = vshrl.u32 %v2723, 7
    %v2725 = vsub.s32 %v494, %v2724
    %v2726 = vrot.slane %v2700, %v2725
    %v2727 = vlaneseq
    %v2728 = vshrl.u32 %v2727, 7
    %v2729 = vsub.s32 %v494, %v2728
    %v2730 = vrot.slane %v2703, %v2729
    %v2731 = vlaneseq
    %v2732 = vshrl.u32 %v2731, 7
    %v2733 = vsub.s32 %v494, %v2732
    %v2734 = vrot.slane %v2706, %v2733
    %v2735 = vlaneseq
    %v2736 = vshrl.u32 %v2735, 7
    %v2737 = vsub.s32 %v494, %v2736
    %v2738 = vrot.slane %v2709, %v2737
    %v2739 = vlaneseq
    %v2740 = vshrl.u32 %v2739, 7
    %v2741 = vsub.s32 %v494, %v2740
    %v2742 = vrot.slane %v2712, %v2741
    %v2743 = vlaneseq
    %v2744 = vshrl.u32 %v2743, 7
    %v2745 = vsub.s32 %v494, %v2744
    %v2746 = vrot.slane %v2715, %v2745
    %v2747 = vlaneseq
    %v2748 = vshrl.u32 %v2747, 7
    %v2749 = vsub.s32 %v494, %v2748
    %v2750 = vrot.slane %v2718, %v2749
    %v2751 = vsel %vm527, %v2726, %v2722
    %v2752 = vsel %vm529, %v2730, %v2751
    %v2753 = vsel %vm531, %v2734, %v2752
    %v2754 = vsel %vm533, %v2738, %v2753
    %v2755 = vsel %vm535, %v2742, %v2754
    %v2756 = vsel %vm537, %v2746, %v2755
    %v2757 = vsel %vm539, %v2750, %v2756
    %v2759 = vsel %vm542, %v2757, 0.0
    %2760 = vadd.xlane.f32.xlu0 %v2759
    %v2761 = vpop.xlane.xlu0 %2760
    %v2763 = vlaneseq
    %v2764 = vshrl.u32 %v2763, 7
    %v2765 = vsub.s32 0, %v2764
    %v2766 = vrot.slane %v2761, %v2765
    %v2767 = vlaneseq
    %v2768 = vshrl.u32 %v2767, 7
    %v2769 = vsub.s32 1, %v2768
    %v2770 = vrot.slane %v2761, %v2769
    %v2771 = vlaneseq
    %v2772 = vshrl.u32 %v2771, 7
    %v2773 = vsub.s32 2, %v2772
    %v2774 = vrot.slane %v2761, %v2773
    %v2775 = vlaneseq
    %v2776 = vshrl.u32 %v2775, 7
    %v2777 = vsub.s32 3, %v2776
    %v2778 = vrot.slane %v2761, %v2777
    %v2779 = vlaneseq
    %v2780 = vshrl.u32 %v2779, 7
    %v2781 = vsub.s32 4, %v2780
    %v2782 = vrot.slane %v2761, %v2781
    %v2783 = vlaneseq
    %v2784 = vshrl.u32 %v2783, 7
    %v2785 = vsub.s32 5, %v2784
    %v2786 = vrot.slane %v2761, %v2785
    %v2787 = vlaneseq
    %v2788 = vshrl.u32 %v2787, 7
    %v2789 = vsub.s32 6, %v2788
    %v2790 = vrot.slane %v2761, %v2789
    %v2791 = vlaneseq
    %v2792 = vshrl.u32 %v2791, 7
    %v2793 = vsub.s32 7, %v2792
    %v2794 = vrot.slane %v2761, %v2793
    %v2803 = vrcp.pop %v2766
    %v2804 = vmul.f32 %v2672, %v2803
    %v2805 = vrcp.pop %v2770
    %v2806 = vmul.f32 %v2674, %v2805
    %v2807 = vrcp.pop %v2774
    %v2808 = vmul.f32 %v2676, %v2807
    %v2809 = vrcp.pop %v2778
    %v2810 = vmul.f32 %v2678, %v2809
    %v2811 = vrcp.pop %v2782
    %v2812 = vmul.f32 %v2680, %v2811
    %v2813 = vrcp.pop %v2786
    %v2814 = vmul.f32 %v2682, %v2813
    %v2815 = vrcp.pop %v2790
    %v2816 = vmul.f32 %v2684, %v2815
    %v2817 = vrcp.pop %v2794
    %v2818 = vmul.f32 %v2686, %v2817
    %2820 = vset.pattern.permute.xlu0 0
    %2821 = vperm.xlu0 %2820, %v2804
    %v2822 = vpop.permute.xlu0 %2821
    %2825 = vset.pattern.permute.xlu0 0
    %2826 = vperm.xlu0 %2825, %v2806
    %v2827 = vpop.permute.xlu0 %2826
    %2830 = vset.pattern.permute.xlu0 0
    %2831 = vperm.xlu0 %2830, %v2808
    %v2832 = vpop.permute.xlu0 %2831
    %2835 = vset.pattern.permute.xlu0 0
    %2836 = vperm.xlu0 %2835, %v2810
    %v2837 = vpop.permute.xlu0 %2836
    %2840 = vset.pattern.permute.xlu0 0
    %2841 = vperm.xlu0 %2840, %v2812
    %v2842 = vpop.permute.xlu0 %2841
    %2845 = vset.pattern.permute.xlu0 0
    %2846 = vperm.xlu0 %2845, %v2814
    %v2847 = vpop.permute.xlu0 %2846
    %2850 = vset.pattern.permute.xlu0 0
    %2851 = vperm.xlu0 %2850, %v2816
    %v2852 = vpop.permute.xlu0 %2851
    %2855 = vset.pattern.permute.xlu0 0
    %2856 = vperm.xlu0 %2855, %v2818
    %v2857 = vpop.permute.xlu0 %2856
    %v2859 = vmul.f32 %v2822, %v107
    %v2860 = vmul.f32 %v2827, %v108
    %v2861 = vmul.f32 %v2832, %v109
    %v2862 = vmul.f32 %v2837, %v110
    %v2863 = vmul.f32 %v2842, %v111
    %v2864 = vmul.f32 %v2847, %v112
    %v2865 = vmul.f32 %v2852, %v113
    %v2866 = vmul.f32 %v2857, %v114
    %v2867 = vsel %vm130, %v2859, 0.0
    %v2868 = vrot.slane %v2867, 4
    %v2869 = vadd.f32 %v2867, %v2868
    %v2870 = vrot.slane %v2869, 2
    %v2871 = vadd.f32 %v2869, %v2870
    %v2872 = vrot.slane %v2871, 1
    %v2873 = vadd.f32 %v2871, %v2872
    %v2874 = vsel %vm130, %v2860, 0.0
    %v2875 = vrot.slane %v2874, 4
    %v2876 = vadd.f32 %v2874, %v2875
    %v2877 = vrot.slane %v2876, 2
    %v2878 = vadd.f32 %v2876, %v2877
    %v2879 = vrot.slane %v2878, 1
    %v2880 = vadd.f32 %v2878, %v2879
    %v2881 = vsel %vm130, %v2861, 0.0
    %v2882 = vrot.slane %v2881, 4
    %v2883 = vadd.f32 %v2881, %v2882
    %v2884 = vrot.slane %v2883, 2
    %v2885 = vadd.f32 %v2883, %v2884
    %v2886 = vrot.slane %v2885, 1
    %v2887 = vadd.f32 %v2885, %v2886
    %v2888 = vsel %vm130, %v2862, 0.0
    %v2889 = vrot.slane %v2888, 4
    %v2890 = vadd.f32 %v2888, %v2889
    %v2891 = vrot.slane %v2890, 2
    %v2892 = vadd.f32 %v2890, %v2891
    %v2893 = vrot.slane %v2892, 1
    %v2894 = vadd.f32 %v2892, %v2893
    %v2895 = vsel %vm130, %v2863, 0.0
    %v2896 = vrot.slane %v2895, 4
    %v2897 = vadd.f32 %v2895, %v2896
    %v2898 = vrot.slane %v2897, 2
    %v2899 = vadd.f32 %v2897, %v2898
    %v2900 = vrot.slane %v2899, 1
    %v2901 = vadd.f32 %v2899, %v2900
    %v2902 = vsel %vm130, %v2864, 0.0
    %v2903 = vrot.slane %v2902, 4
    %v2904 = vadd.f32 %v2902, %v2903
    %v2905 = vrot.slane %v2904, 2
    %v2906 = vadd.f32 %v2904, %v2905
    %v2907 = vrot.slane %v2906, 1
    %v2908 = vadd.f32 %v2906, %v2907
    %v2909 = vsel %vm130, %v2865, 0.0
    %v2910 = vrot.slane %v2909, 4
    %v2911 = vadd.f32 %v2909, %v2910
    %v2912 = vrot.slane %v2911, 2
    %v2913 = vadd.f32 %v2911, %v2912
    %v2914 = vrot.slane %v2913, 1
    %v2915 = vadd.f32 %v2913, %v2914
    %v2916 = vsel %vm130, %v2866, 0.0
    %v2917 = vrot.slane %v2916, 4
    %v2918 = vadd.f32 %v2916, %v2917
    %v2919 = vrot.slane %v2918, 2
    %v2920 = vadd.f32 %v2918, %v2919
    %v2921 = vrot.slane %v2920, 1
    %v2922 = vadd.f32 %v2920, %v2921
    %v2931 = vsel %vm527, %v2880, %v2873
    %v2932 = vsel %vm529, %v2887, %v2931
    %v2933 = vsel %vm531, %v2894, %v2932
    %v2934 = vsel %vm533, %v2901, %v2933
    %v2935 = vsel %vm535, %v2908, %v2934
    %v2936 = vsel %vm537, %v2915, %v2935
    %v2937 = vsel %vm539, %v2922, %v2936
    %v2938 = vsel %vm130, %v2937, 0
    %2940 = vmatprep.subr.mxu0 0.0
    %2941 = vmatpush1.msra.mxu0 0.0
    %2942 = vmatprep.subr.mxu0 0.0
    %2943 = vmatpush1.msra.mxu0 0.0
    %2944 = vmatprep.subr.mxu0 0.0
    %2945 = vmatpush1.msra.mxu0 0.0
    %2946 = vmatprep.subr.mxu0 0.0
    %2947 = vmatpush1.msra.mxu0 0.0
    %2948 = vmatprep.subr.mxu0 0.0
    %2949 = vmatpush1.msra.mxu0 0.0
    %2950 = vmatprep.subr.mxu0 0.0
    %2951 = vmatpush1.msra.mxu0 0.0
    %2952 = vmatprep.subr.mxu0 0.0
    %2953 = vmatpush1.msra.mxu0 0.0
    %2954 = vmatprep.subr.mxu0 0.0
    %2955 = vmatpush1.msra.mxu0 0.0
    %2956 = vmatprep.subr.mxu0 0.0
    %2957 = vmatpush1.msra.mxu0 0.0
    %2958 = vmatprep.subr.mxu0 0.0
    %2959 = vmatpush1.msra.mxu0 0.0
    %2960 = vmatprep.subr.mxu0 0.0
    %2961 = vmatpush1.msra.mxu0 0.0
    %2962 = vmatprep.subr.mxu0 0.0
    %2963 = vmatpush1.msra.mxu0 0.0
    %2964 = vmatprep.subr.mxu0 0.0
    %2965 = vmatpush1.msra.mxu0 %v122
    %2966 = vmatprep.subr.mxu0 0.0
    %2967 = vmatpush1.msra.mxu0 %v121
    %2968 = vmatprep.subr.mxu0 0.0
    %2969 = vmatpush1.msra.mxu0 %v120
    %2970 = vmatprep.subr.mxu0 0.0
    %2971 = vmatpush1.msra.mxu0 %v119
    %2972 = vmatprep.subr.mxu0 0.0
    %2973 = vmatpush2.msra.mxu0 0.0
    %2974 = vmatprep.subr.mxu0 0.0
    %2975 = vmatpush2.msra.mxu0 0.0
    %2976 = vmatprep.subr.mxu0 0.0
    %2977 = vmatpush2.msra.mxu0 0.0
    %2978 = vmatprep.subr.mxu0 0.0
    %2979 = vmatpush2.msra.mxu0 0.0
    %2980 = vmatprep.subr.mxu0 0.0
    %2981 = vmatpush2.msra.mxu0 0.0
    %2982 = vmatprep.subr.mxu0 0.0
    %2983 = vmatpush2.msra.mxu0 0.0
    %2984 = vmatprep.subr.mxu0 0.0
    %2985 = vmatpush2.msra.mxu0 0.0
    %2986 = vmatprep.subr.mxu0 0.0
    %2987 = vmatpush2.msra.mxu0 0.0
    %2988 = vmatprep.subr.mxu0 0.0
    %2989 = vmatpush2.msra.mxu0 0.0
    %2990 = vmatprep.subr.mxu0 0.0
    %2991 = vmatpush2.msra.mxu0 0.0
    %2992 = vmatprep.subr.mxu0 0.0
    %2993 = vmatpush2.msra.mxu0 0.0
    %2994 = vmatprep.subr.mxu0 0.0
    %2995 = vmatpush2.msra.mxu0 0.0
    %2996 = vmatprep.subr.mxu0 0.0
    %2997 = vmatpush2.msra.mxu0 0.0
    %2998 = vmatprep.subr.mxu0 0.0
    %2999 = vmatpush2.msra.mxu0 0.0
    %3000 = vmatprep.subr.mxu0 0.0
    %3001 = vmatpush2.msra.mxu0 0.0
    %3002 = vmatprep.subr.mxu0 0.0
    %3003 = vmatpush2.msra.mxu0 0.0
    %3004 = vmatprep.mubr.f32.mxu0 0.0
    %3005 = vmatmul.mubr.f32.gmra.mxu0 %v2938
    %v3006 = vpop.f32.mrf.mxu0
    %v3007 = vadd.f32 0.0, %v3006
    %v3008 = vpop.f32.mrf.mxu0
    %3009 = vdwg.mxu0
    %3010 = vrot.lane.b32.xlu0 %v2416, 32
    %v3011 = vpop.permute.xlu0 %3010
    %v3012 = vsel %vm130, %v3011, 0
    %3014 = vmatprep.subr.mxu0 0.0
    %3015 = vmatpush1.msra.mxu0 0.0
    %3016 = vmatprep.subr.mxu0 0.0
    %3017 = vmatpush1.msra.mxu0 0.0
    %3018 = vmatprep.subr.mxu0 0.0
    %3019 = vmatpush1.msra.mxu0 0.0
    %3020 = vmatprep.subr.mxu0 0.0
    %3021 = vmatpush1.msra.mxu0 0.0
    %3022 = vmatprep.subr.mxu0 0.0
    %3023 = vmatpush1.msra.mxu0 0.0
    %3024 = vmatprep.subr.mxu0 0.0
    %3025 = vmatpush1.msra.mxu0 0.0
    %3026 = vmatprep.subr.mxu0 0.0
    %3027 = vmatpush1.msra.mxu0 0.0
    %3028 = vmatprep.subr.mxu0 0.0
    %3029 = vmatpush1.msra.mxu0 0.0
    %3030 = vmatprep.subr.mxu0 0.0
    %3031 = vmatpush1.msra.mxu0 0.0
    %3032 = vmatprep.subr.mxu0 0.0
    %3033 = vmatpush1.msra.mxu0 0.0
    %3034 = vmatprep.subr.mxu0 0.0
    %3035 = vmatpush1.msra.mxu0 0.0
    %3036 = vmatprep.subr.mxu0 0.0
    %3037 = vmatpush1.msra.mxu0 0.0
    %3038 = vmatprep.subr.mxu0 0.0
    %3039 = vmatpush1.msra.mxu0 %v118
    %3040 = vmatprep.subr.mxu0 0.0
    %3041 = vmatpush1.msra.mxu0 %v117
    %3042 = vmatprep.subr.mxu0 0.0
    %3043 = vmatpush1.msra.mxu0 %v116
    %3044 = vmatprep.subr.mxu0 0.0
    %3045 = vmatpush1.msra.mxu0 %v115
    %3046 = vmatprep.subr.mxu0 0.0
    %3047 = vmatpush2.msra.mxu0 0.0
    %3048 = vmatprep.subr.mxu0 0.0
    %3049 = vmatpush2.msra.mxu0 0.0
    %3050 = vmatprep.subr.mxu0 0.0
    %3051 = vmatpush2.msra.mxu0 0.0
    %3052 = vmatprep.subr.mxu0 0.0
    %3053 = vmatpush2.msra.mxu0 0.0
    %3054 = vmatprep.subr.mxu0 0.0
    %3055 = vmatpush2.msra.mxu0 0.0
    %3056 = vmatprep.subr.mxu0 0.0
    %3057 = vmatpush2.msra.mxu0 0.0
    %3058 = vmatprep.subr.mxu0 0.0
    %3059 = vmatpush2.msra.mxu0 0.0
    %3060 = vmatprep.subr.mxu0 0.0
    %3061 = vmatpush2.msra.mxu0 0.0
    %3062 = vmatprep.subr.mxu0 0.0
    %3063 = vmatpush2.msra.mxu0 0.0
    %3064 = vmatprep.subr.mxu0 0.0
    %3065 = vmatpush2.msra.mxu0 0.0
    %3066 = vmatprep.subr.mxu0 0.0
    %3067 = vmatpush2.msra.mxu0 0.0
    %3068 = vmatprep.subr.mxu0 0.0
    %3069 = vmatpush2.msra.mxu0 0.0
    %3070 = vmatprep.subr.mxu0 0.0
    %3071 = vmatpush2.msra.mxu0 0.0
    %3072 = vmatprep.subr.mxu0 0.0
    %3073 = vmatpush2.msra.mxu0 0.0
    %3074 = vmatprep.subr.mxu0 0.0
    %3075 = vmatpush2.msra.mxu0 0.0
    %3076 = vmatprep.subr.mxu0 0.0
    %3077 = vmatpush2.msra.mxu0 0.0
    %3078 = vmatprep.mubr.f32.mxu0 0.0
    %3079 = vmatmul.mubr.f32.gmra.mxu0 %v3012
    %v3080 = vpop.f32.mrf.mxu0
    %v3081 = vadd.f32 %v3007, %v3080
    %v3082 = vpop.f32.mrf.mxu0
    %3083 = vdwg.mxu0
    %v3084 = vadd.f32 %v3081, %v128
    %v3085 = vxor.u32 %v3084, 2147483648
    %v3086 = vmul.f32 %v3085, 1.442695
    %v3087 = vpow.pop %v3086
    %v3088 = vadd.f32 %v3087, 1.0
    %v3089 = vrcp.pop %v3088
    %v3090 = vmul.f32 1.0, %v3089
    %v3091 = vtanh.pop %v3084
    %v3092 = vmul.f32 %v3090, %v2410
    %3094 = vrot.lane.b32.xlu0 %v3091, 64
    %v3095 = vpop.permute.xlu0 %3094
    %v3097 = vmul.f32 %v3090, %v3095
    %3099 = vrot.lane.b32.xlu0 %v3097, 32
    %v3100 = vpop.permute.xlu0 %3099
    %v3102 = vadd.f32 %v3092, %v3100
    %v3103 = vtanh.pop %v3102
    %3105 = vrot.lane.b32.xlu0 %v3103, 64
    %v3106 = vpop.permute.xlu0 %3105
    %v3108 = vmul.f32 %v3090, %v3106
    %v3110 = vcombine.high %v3108, %v3108
    %v3112 = vunpack.c.l.s4 1966171168
    %v3113 = vunpack.c.0.s8 %v3112
    %v3114 = vlaneseq
    %v3115 = vshrl.u32 %v3114, 7
    %v3116 = vsub.s32 %v3113, %v3115
    %v3117 = vrot.slane %v3108, %v3116
    %v3119 = vunpack.c.l.s4 1966171168
    %v3120 = vunpack.c.0.s8 %v3119
    %v3121 = vlaneseq
    %v3122 = vshrl.u32 %v3121, 7
    %v3123 = vsub.s32 %v3120, %v3122
    %v3124 = vrot.slane %v3110, %v3123
    %v3125 = vcombine.high %v3117, %v3117
    %v3126 = vcombine.high %v3124, %v3124
    %v3128 = vunpack.c.l.s4 1966171168
    %v3129 = vunpack.c.0.s8 %v3128
    %v3130 = vlaneseq
    %v3131 = vshrl.u32 %v3130, 7
    %v3132 = vsub.s32 %v3129, %v3131
    %v3133 = vrot.slane %v3117, %v3132
    %v3135 = vunpack.c.l.s4 1966171168
    %v3136 = vunpack.c.0.s8 %v3135
    %v3137 = vlaneseq
    %v3138 = vshrl.u32 %v3137, 7
    %v3139 = vsub.s32 %v3136, %v3138
    %v3140 = vrot.slane %v3124, %v3139
    %v3142 = vunpack.c.l.s4 1966171168
    %v3143 = vunpack.c.0.s8 %v3142
    %v3144 = vlaneseq
    %v3145 = vshrl.u32 %v3144, 7
    %v3146 = vsub.s32 %v3143, %v3145
    %v3147 = vrot.slane %v3125, %v3146
    %v3149 = vunpack.c.l.s4 1966171168
    %v3150 = vunpack.c.0.s8 %v3149
    %v3151 = vlaneseq
    %v3152 = vshrl.u32 %v3151, 7
    %v3153 = vsub.s32 %v3150, %v3152
    %v3154 = vrot.slane %v3126, %v3153
    %v3155 = vcombine.high %v3133, %v3133
    %v3156 = vcombine.high %v3140, %v3140
    %v3157 = vcombine.high %v3147, %v3147
    %v3158 = vcombine.high %v3154, %v3154
    %v3159 = vlaneseq
    %v3160 = vshrl.u32 %v3159, 7
    %v3161 = vsub.s32 0, %v3160
    %v3162 = vrot.slane %v3133, %v3161
    %v3163 = vlaneseq
    %v3164 = vshrl.u32 %v3163, 7
    %v3165 = vsub.s32 0, %v3164
    %v3166 = vrot.slane %v3147, %v3165
    %v3167 = vlaneseq
    %v3168 = vshrl.u32 %v3167, 7
    %v3169 = vsub.s32 0, %v3168
    %v3170 = vrot.slane %v3155, %v3169
    %v3171 = vlaneseq
    %v3172 = vshrl.u32 %v3171, 7
    %v3173 = vsub.s32 0, %v3172
    %v3174 = vrot.slane %v3157, %v3173
    %v3175 = vlaneseq
    %v3176 = vshrl.u32 %v3175, 7
    %v3177 = vsub.s32 0, %v3176
    %v3178 = vrot.slane %v3140, %v3177
    %v3179 = vlaneseq
    %v3180 = vshrl.u32 %v3179, 7
    %v3181 = vsub.s32 0, %v3180
    %v3182 = vrot.slane %v3154, %v3181
    %v3183 = vlaneseq
    %v3184 = vshrl.u32 %v3183, 7
    %v3185 = vsub.s32 0, %v3184
    %v3186 = vrot.slane %v3156, %v3185
    %v3187 = vlaneseq
    %v3188 = vshrl.u32 %v3187, 7
    %v3189 = vsub.s32 0, %v3188
    %v3190 = vrot.slane %v3158, %v3189
    %v3199 = vmul.f32 %v3162, %v398
    %v3200 = vmul.f32 %v3166, %v400
    %v3201 = vmul.f32 %v3170, %v402
    %v3202 = vmul.f32 %v3174, %v404
    %v3203 = vmul.f32 %v3178, %v406
    %v3204 = vmul.f32 %v3182, %v408
    %v3205 = vmul.f32 %v3186, %v410
    %v3206 = vmul.f32 %v3190, %v412
    %3215 = vrot.lane.b32.xlu0 %v3199, 32
    %v3216 = vpop.permute.xlu0 %3215
    %3217 = vrot.lane.b32.xlu0 %v3200, 32
    %v3218 = vpop.permute.xlu0 %3217
    %3219 = vrot.lane.b32.xlu0 %v3201, 32
    %v3220 = vpop.permute.xlu0 %3219
    %3221 = vrot.lane.b32.xlu0 %v3202, 32
    %v3222 = vpop.permute.xlu0 %3221
    %3223 = vrot.lane.b32.xlu0 %v3203, 32
    %v3224 = vpop.permute.xlu0 %3223
    %3225 = vrot.lane.b32.xlu0 %v3204, 32
    %v3226 = vpop.permute.xlu0 %3225
    %3227 = vrot.lane.b32.xlu0 %v3205, 32
    %v3228 = vpop.permute.xlu0 %3227
    %3229 = vrot.lane.b32.xlu0 %v3206, 32
    %v3230 = vpop.permute.xlu0 %3229
    %v3239 = vsel %vm130, %v3216, 0.0
    %3240 = vadd.xlane.f32.xlu0 %v3239
    %v3241 = vpop.xlane.xlu0 %3240
    %v3242 = vsel %vm130, %v3218, 0.0
    %3243 = vadd.xlane.f32.xlu0 %v3242
    %v3244 = vpop.xlane.xlu0 %3243
    %v3245 = vsel %vm130, %v3220, 0.0
    %3246 = vadd.xlane.f32.xlu0 %v3245
    %v3247 = vpop.xlane.xlu0 %3246
    %v3248 = vsel %vm130, %v3222, 0.0
    %3249 = vadd.xlane.f32.xlu0 %v3248
    %v3250 = vpop.xlane.xlu0 %3249
    %v3251 = vsel %vm130, %v3224, 0.0
    %3252 = vadd.xlane.f32.xlu0 %v3251
    %v3253 = vpop.xlane.xlu0 %3252
    %v3254 = vsel %vm130, %v3226, 0.0
    %3255 = vadd.xlane.f32.xlu0 %v3254
    %v3256 = vpop.xlane.xlu0 %3255
    %v3257 = vsel %vm130, %v3228, 0.0
    %3258 = vadd.xlane.f32.xlu0 %v3257
    %v3259 = vpop.xlane.xlu0 %3258
    %v3260 = vsel %vm130, %v3230, 0.0
    %3261 = vadd.xlane.f32.xlu0 %v3260
    %v3262 = vpop.xlane.xlu0 %3261
    %v3271 = vlaneseq
    %v3272 = vshrl.u32 %v3271, 7
    %v3273 = vsub.s32 %v494, %v3272
    %v3274 = vrot.slane %v3241, %v3273
    %v3275 = vlaneseq
    %v3276 = vshrl.u32 %v3275, 7
    %v3277 = vsub.s32 %v494, %v3276
    %v3278 = vrot.slane %v3244, %v3277
    %v3279 = vlaneseq
    %v3280 = vshrl.u32 %v3279, 7
    %v3281 = vsub.s32 %v494, %v3280
    %v3282 = vrot.slane %v3247, %v3281
    %v3283 = vlaneseq
    %v3284 = vshrl.u32 %v3283, 7
    %v3285 = vsub.s32 %v494, %v3284
    %v3286 = vrot.slane %v3250, %v3285
    %v3287 = vlaneseq
    %v3288 = vshrl.u32 %v3287, 7
    %v3289 = vsub.s32 %v494, %v3288
    %v3290 = vrot.slane %v3253, %v3289
    %v3291 = vlaneseq
    %v3292 = vshrl.u32 %v3291, 7
    %v3293 = vsub.s32 %v494, %v3292
    %v3294 = vrot.slane %v3256, %v3293
    %v3295 = vlaneseq
    %v3296 = vshrl.u32 %v3295, 7
    %v3297 = vsub.s32 %v494, %v3296
    %v3298 = vrot.slane %v3259, %v3297
    %v3299 = vlaneseq
    %v3300 = vshrl.u32 %v3299, 7
    %v3301 = vsub.s32 %v494, %v3300
    %v3302 = vrot.slane %v3262, %v3301
    %v3303 = vsel %vm527, %v3278, %v3274
    %v3304 = vsel %vm529, %v3282, %v3303
    %v3305 = vsel %vm531, %v3286, %v3304
    %v3306 = vsel %vm533, %v3290, %v3305
    %v3307 = vsel %vm535, %v3294, %v3306
    %v3308 = vsel %vm537, %v3298, %v3307
    %v3309 = vsel %vm539, %v3302, %v3308
    %v3311 = vsel %vm542, %v3309, -inf
    %3312 = vmax.xlane.f32.xlu0 %v3311
    %v3313 = vpop.xlane.xlu0 %3312
    %v3315 = vlaneseq
    %v3316 = vshrl.u32 %v3315, 7
    %v3317 = vsub.s32 0, %v3316
    %v3318 = vrot.slane %v3313, %v3317
    %v3319 = vlaneseq
    %v3320 = vshrl.u32 %v3319, 7
    %v3321 = vsub.s32 1, %v3320
    %v3322 = vrot.slane %v3313, %v3321
    %v3323 = vlaneseq
    %v3324 = vshrl.u32 %v3323, 7
    %v3325 = vsub.s32 2, %v3324
    %v3326 = vrot.slane %v3313, %v3325
    %v3327 = vlaneseq
    %v3328 = vshrl.u32 %v3327, 7
    %v3329 = vsub.s32 3, %v3328
    %v3330 = vrot.slane %v3313, %v3329
    %v3331 = vlaneseq
    %v3332 = vshrl.u32 %v3331, 7
    %v3333 = vsub.s32 4, %v3332
    %v3334 = vrot.slane %v3313, %v3333
    %v3335 = vlaneseq
    %v3336 = vshrl.u32 %v3335, 7
    %v3337 = vsub.s32 5, %v3336
    %v3338 = vrot.slane %v3313, %v3337
    %v3339 = vlaneseq
    %v3340 = vshrl.u32 %v3339, 7
    %v3341 = vsub.s32 6, %v3340
    %v3342 = vrot.slane %v3313, %v3341
    %v3343 = vlaneseq
    %v3344 = vshrl.u32 %v3343, 7
    %v3345 = vsub.s32 7, %v3344
    %v3346 = vrot.slane %v3313, %v3345
    %v3355 = vsub.f32 %v3241, %v3318
    %v3356 = vsub.f32 %v3244, %v3322
    %v3357 = vsub.f32 %v3247, %v3326
    %v3358 = vsub.f32 %v3250, %v3330
    %v3359 = vsub.f32 %v3253, %v3334
    %v3360 = vsub.f32 %v3256, %v3338
    %v3361 = vsub.f32 %v3259, %v3342
    %v3362 = vsub.f32 %v3262, %v3346
    %v3363 = vmul.f32 %v3355, 1.442695
    %v3364 = vpow.pop %v3363
    %v3365 = vmul.f32 %v3356, 1.442695
    %v3366 = vpow.pop %v3365
    %v3367 = vmul.f32 %v3357, 1.442695
    %v3368 = vpow.pop %v3367
    %v3369 = vmul.f32 %v3358, 1.442695
    %v3370 = vpow.pop %v3369
    %v3371 = vmul.f32 %v3359, 1.442695
    %v3372 = vpow.pop %v3371
    %v3373 = vmul.f32 %v3360, 1.442695
    %v3374 = vpow.pop %v3373
    %v3375 = vmul.f32 %v3361, 1.442695
    %v3376 = vpow.pop %v3375
    %v3377 = vmul.f32 %v3362, 1.442695
    %v3378 = vpow.pop %v3377
    %3387 = vset.pattern.permute.xlu0 0
    %3388 = vperm.xlu0 %3387, %v3364
    %v3389 = vpop.permute.xlu0 %3388
    %3390 = vset.pattern.permute.xlu0 0
    %3391 = vperm.xlu0 %3390, %v3366
    %v3392 = vpop.permute.xlu0 %3391
    %3393 = vset.pattern.permute.xlu0 0
    %3394 = vperm.xlu0 %3393, %v3368
    %v3395 = vpop.permute.xlu0 %3394
    %3396 = vset.pattern.permute.xlu0 0
    %3397 = vperm.xlu0 %3396, %v3370
    %v3398 = vpop.permute.xlu0 %3397
    %3399 = vset.pattern.permute.xlu0 0
    %3400 = vperm.xlu0 %3399, %v3372
    %v3401 = vpop.permute.xlu0 %3400
    %3402 = vset.pattern.permute.xlu0 0
    %3403 = vperm.xlu0 %3402, %v3374
    %v3404 = vpop.permute.xlu0 %3403
    %3405 = vset.pattern.permute.xlu0 0
    %3406 = vperm.xlu0 %3405, %v3376
    %v3407 = vpop.permute.xlu0 %3406
    %3408 = vset.pattern.permute.xlu0 0
    %3409 = vperm.xlu0 %3408, %v3378
    %v3410 = vpop.permute.xlu0 %3409
    %v3411 = vlaneseq
    %v3412 = vshrl.u32 %v3411, 7
    %v3413 = vsub.s32 %v494, %v3412
    %v3414 = vrot.slane %v3389, %v3413
    %v3415 = vlaneseq
    %v3416 = vshrl.u32 %v3415, 7
    %v3417 = vsub.s32 %v494, %v3416
    %v3418 = vrot.slane %v3392, %v3417
    %v3419 = vlaneseq
    %v3420 = vshrl.u32 %v3419, 7
    %v3421 = vsub.s32 %v494, %v3420
    %v3422 = vrot.slane %v3395, %v3421
    %v3423 = vlaneseq
    %v3424 = vshrl.u32 %v3423, 7
    %v3425 = vsub.s32 %v494, %v3424
    %v3426 = vrot.slane %v3398, %v3425
    %v3427 = vlaneseq
    %v3428 = vshrl.u32 %v3427, 7
    %v3429 = vsub.s32 %v494, %v3428
    %v3430 = vrot.slane %v3401, %v3429
    %v3431 = vlaneseq
    %v3432 = vshrl.u32 %v3431, 7
    %v3433 = vsub.s32 %v494, %v3432
    %v3434 = vrot.slane %v3404, %v3433
    %v3435 = vlaneseq
    %v3436 = vshrl.u32 %v3435, 7
    %v3437 = vsub.s32 %v494, %v3436
    %v3438 = vrot.slane %v3407, %v3437
    %v3439 = vlaneseq
    %v3440 = vshrl.u32 %v3439, 7
    %v3441 = vsub.s32 %v494, %v3440
    %v3442 = vrot.slane %v3410, %v3441
    %v3443 = vsel %vm527, %v3418, %v3414
    %v3444 = vsel %vm529, %v3422, %v3443
    %v3445 = vsel %vm531, %v3426, %v3444
    %v3446 = vsel %vm533, %v3430, %v3445
    %v3447 = vsel %vm535, %v3434, %v3446
    %v3448 = vsel %vm537, %v3438, %v3447
    %v3449 = vsel %vm539, %v3442, %v3448
    %v3451 = vsel %vm542, %v3449, 0.0
    %3452 = vadd.xlane.f32.xlu0 %v3451
    %v3453 = vpop.xlane.xlu0 %3452
    %v3455 = vlaneseq
    %v3456 = vshrl.u32 %v3455, 7
    %v3457 = vsub.s32 0, %v3456
    %v3458 = vrot.slane %v3453, %v3457
    %v3459 = vlaneseq
    %v3460 = vshrl.u32 %v3459, 7
    %v3461 = vsub.s32 1, %v3460
    %v3462 = vrot.slane %v3453, %v3461
    %v3463 = vlaneseq
    %v3464 = vshrl.u32 %v3463, 7
    %v3465 = vsub.s32 2, %v3464
    %v3466 = vrot.slane %v3453, %v3465
    %v3467 = vlaneseq
    %v3468 = vshrl.u32 %v3467, 7
    %v3469 = vsub.s32 3, %v3468
    %v3470 = vrot.slane %v3453, %v3469
    %v3471 = vlaneseq
    %v3472 = vshrl.u32 %v3471, 7
    %v3473 = vsub.s32 4, %v3472
    %v3474 = vrot.slane %v3453, %v3473
    %v3475 = vlaneseq
    %v3476 = vshrl.u32 %v3475, 7
    %v3477 = vsub.s32 5, %v3476
    %v3478 = vrot.slane %v3453, %v3477
    %v3479 = vlaneseq
    %v3480 = vshrl.u32 %v3479, 7
    %v3481 = vsub.s32 6, %v3480
    %v3482 = vrot.slane %v3453, %v3481
    %v3483 = vlaneseq
    %v3484 = vshrl.u32 %v3483, 7
    %v3485 = vsub.s32 7, %v3484
    %v3486 = vrot.slane %v3453, %v3485
    %v3495 = vrcp.pop %v3458
    %v3496 = vmul.f32 %v3364, %v3495
    %v3497 = vrcp.pop %v3462
    %v3498 = vmul.f32 %v3366, %v3497
    %v3499 = vrcp.pop %v3466
    %v3500 = vmul.f32 %v3368, %v3499
    %v3501 = vrcp.pop %v3470
    %v3502 = vmul.f32 %v3370, %v3501
    %v3503 = vrcp.pop %v3474
    %v3504 = vmul.f32 %v3372, %v3503
    %v3505 = vrcp.pop %v3478
    %v3506 = vmul.f32 %v3374, %v3505
    %v3507 = vrcp.pop %v3482
    %v3508 = vmul.f32 %v3376, %v3507
    %v3509 = vrcp.pop %v3486
    %v3510 = vmul.f32 %v3378, %v3509
    %3512 = vset.pattern.permute.xlu0 0
    %3513 = vperm.xlu0 %3512, %v3496
    %v3514 = vpop.permute.xlu0 %3513
    %3517 = vset.pattern.permute.xlu0 0
    %3518 = vperm.xlu0 %3517, %v3498
    %v3519 = vpop.permute.xlu0 %3518
    %3522 = vset.pattern.permute.xlu0 0
    %3523 = vperm.xlu0 %3522, %v3500
    %v3524 = vpop.permute.xlu0 %3523
    %3527 = vset.pattern.permute.xlu0 0
    %3528 = vperm.xlu0 %3527, %v3502
    %v3529 = vpop.permute.xlu0 %3528
    %3532 = vset.pattern.permute.xlu0 0
    %3533 = vperm.xlu0 %3532, %v3504
    %v3534 = vpop.permute.xlu0 %3533
    %3537 = vset.pattern.permute.xlu0 0
    %3538 = vperm.xlu0 %3537, %v3506
    %v3539 = vpop.permute.xlu0 %3538
    %3542 = vset.pattern.permute.xlu0 0
    %3543 = vperm.xlu0 %3542, %v3508
    %v3544 = vpop.permute.xlu0 %3543
    %3547 = vset.pattern.permute.xlu0 0
    %3548 = vperm.xlu0 %3547, %v3510
    %v3549 = vpop.permute.xlu0 %3548
    %v3551 = vmul.f32 %v3514, %v107
    %v3552 = vmul.f32 %v3519, %v108
    %v3553 = vmul.f32 %v3524, %v109
    %v3554 = vmul.f32 %v3529, %v110
    %v3555 = vmul.f32 %v3534, %v111
    %v3556 = vmul.f32 %v3539, %v112
    %v3557 = vmul.f32 %v3544, %v113
    %v3558 = vmul.f32 %v3549, %v114
    %v3559 = vsel %vm130, %v3551, 0.0
    %v3560 = vrot.slane %v3559, 4
    %v3561 = vadd.f32 %v3559, %v3560
    %v3562 = vrot.slane %v3561, 2
    %v3563 = vadd.f32 %v3561, %v3562
    %v3564 = vrot.slane %v3563, 1
    %v3565 = vadd.f32 %v3563, %v3564
    %v3566 = vsel %vm130, %v3552, 0.0
    %v3567 = vrot.slane %v3566, 4
    %v3568 = vadd.f32 %v3566, %v3567
    %v3569 = vrot.slane %v3568, 2
    %v3570 = vadd.f32 %v3568, %v3569
    %v3571 = vrot.slane %v3570, 1
    %v3572 = vadd.f32 %v3570, %v3571
    %v3573 = vsel %vm130, %v3553, 0.0
    %v3574 = vrot.slane %v3573, 4
    %v3575 = vadd.f32 %v3573, %v3574
    %v3576 = vrot.slane %v3575, 2
    %v3577 = vadd.f32 %v3575, %v3576
    %v3578 = vrot.slane %v3577, 1
    %v3579 = vadd.f32 %v3577, %v3578
    %v3580 = vsel %vm130, %v3554, 0.0
    %v3581 = vrot.slane %v3580, 4
    %v3582 = vadd.f32 %v3580, %v3581
    %v3583 = vrot.slane %v3582, 2
    %v3584 = vadd.f32 %v3582, %v3583
    %v3585 = vrot.slane %v3584, 1
    %v3586 = vadd.f32 %v3584, %v3585
    %v3587 = vsel %vm130, %v3555, 0.0
    %v3588 = vrot.slane %v3587, 4
    %v3589 = vadd.f32 %v3587, %v3588
    %v3590 = vrot.slane %v3589, 2
    %v3591 = vadd.f32 %v3589, %v3590
    %v3592 = vrot.slane %v3591, 1
    %v3593 = vadd.f32 %v3591, %v3592
    %v3594 = vsel %vm130, %v3556, 0.0
    %v3595 = vrot.slane %v3594, 4
    %v3596 = vadd.f32 %v3594, %v3595
    %v3597 = vrot.slane %v3596, 2
    %v3598 = vadd.f32 %v3596, %v3597
    %v3599 = vrot.slane %v3598, 1
    %v3600 = vadd.f32 %v3598, %v3599
    %v3601 = vsel %vm130, %v3557, 0.0
    %v3602 = vrot.slane %v3601, 4
    %v3603 = vadd.f32 %v3601, %v3602
    %v3604 = vrot.slane %v3603, 2
    %v3605 = vadd.f32 %v3603, %v3604
    %v3606 = vrot.slane %v3605, 1
    %v3607 = vadd.f32 %v3605, %v3606
    %v3608 = vsel %vm130, %v3558, 0.0
    %v3609 = vrot.slane %v3608, 4
    %v3610 = vadd.f32 %v3608, %v3609
    %v3611 = vrot.slane %v3610, 2
    %v3612 = vadd.f32 %v3610, %v3611
    %v3613 = vrot.slane %v3612, 1
    %v3614 = vadd.f32 %v3612, %v3613
    %v3623 = vsel %vm527, %v3572, %v3565
    %v3624 = vsel %vm529, %v3579, %v3623
    %v3625 = vsel %vm531, %v3586, %v3624
    %v3626 = vsel %vm533, %v3593, %v3625
    %v3627 = vsel %vm535, %v3600, %v3626
    %v3628 = vsel %vm537, %v3607, %v3627
    %v3629 = vsel %vm539, %v3614, %v3628
    %v3630 = vsel %vm130, %v3629, 0
    %3632 = vmatprep.subr.mxu0 0.0
    %3633 = vmatpush1.msra.mxu0 0.0
    %3634 = vmatprep.subr.mxu0 0.0
    %3635 = vmatpush1.msra.mxu0 0.0
    %3636 = vmatprep.subr.mxu0 0.0
    %3637 = vmatpush1.msra.mxu0 0.0
    %3638 = vmatprep.subr.mxu0 0.0
    %3639 = vmatpush1.msra.mxu0 0.0
    %3640 = vmatprep.subr.mxu0 0.0
    %3641 = vmatpush1.msra.mxu0 0.0
    %3642 = vmatprep.subr.mxu0 0.0
    %3643 = vmatpush1.msra.mxu0 0.0
    %3644 = vmatprep.subr.mxu0 0.0
    %3645 = vmatpush1.msra.mxu0 0.0
    %3646 = vmatprep.subr.mxu0 0.0
    %3647 = vmatpush1.msra.mxu0 0.0
    %3648 = vmatprep.subr.mxu0 0.0
    %3649 = vmatpush1.msra.mxu0 0.0
    %3650 = vmatprep.subr.mxu0 0.0
    %3651 = vmatpush1.msra.mxu0 0.0
    %3652 = vmatprep.subr.mxu0 0.0
    %3653 = vmatpush1.msra.mxu0 0.0
    %3654 = vmatprep.subr.mxu0 0.0
    %3655 = vmatpush1.msra.mxu0 0.0
    %3656 = vmatprep.subr.mxu0 0.0
    %3657 = vmatpush1.msra.mxu0 %v122
    %3658 = vmatprep.subr.mxu0 0.0
    %3659 = vmatpush1.msra.mxu0 %v121
    %3660 = vmatprep.subr.mxu0 0.0
    %3661 = vmatpush1.msra.mxu0 %v120
    %3662 = vmatprep.subr.mxu0 0.0
    %3663 = vmatpush1.msra.mxu0 %v119
    %3664 = vmatprep.subr.mxu0 0.0
    %3665 = vmatpush2.msra.mxu0 0.0
    %3666 = vmatprep.subr.mxu0 0.0
    %3667 = vmatpush2.msra.mxu0 0.0
    %3668 = vmatprep.subr.mxu0 0.0
    %3669 = vmatpush2.msra.mxu0 0.0
    %3670 = vmatprep.subr.mxu0 0.0
    %3671 = vmatpush2.msra.mxu0 0.0
    %3672 = vmatprep.subr.mxu0 0.0
    %3673 = vmatpush2.msra.mxu0 0.0
    %3674 = vmatprep.subr.mxu0 0.0
    %3675 = vmatpush2.msra.mxu0 0.0
    %3676 = vmatprep.subr.mxu0 0.0
    %3677 = vmatpush2.msra.mxu0 0.0
    %3678 = vmatprep.subr.mxu0 0.0
    %3679 = vmatpush2.msra.mxu0 0.0
    %3680 = vmatprep.subr.mxu0 0.0
    %3681 = vmatpush2.msra.mxu0 0.0
    %3682 = vmatprep.subr.mxu0 0.0
    %3683 = vmatpush2.msra.mxu0 0.0
    %3684 = vmatprep.subr.mxu0 0.0
    %3685 = vmatpush2.msra.mxu0 0.0
    %3686 = vmatprep.subr.mxu0 0.0
    %3687 = vmatpush2.msra.mxu0 0.0
    %3688 = vmatprep.subr.mxu0 0.0
    %3689 = vmatpush2.msra.mxu0 0.0
    %3690 = vmatprep.subr.mxu0 0.0
    %3691 = vmatpush2.msra.mxu0 0.0
    %3692 = vmatprep.subr.mxu0 0.0
    %3693 = vmatpush2.msra.mxu0 0.0
    %3694 = vmatprep.subr.mxu0 0.0
    %3695 = vmatpush2.msra.mxu0 0.0
    %3696 = vmatprep.mubr.f32.mxu0 0.0
    %3697 = vmatmul.mubr.f32.gmra.mxu0 %v3630
    %v3698 = vpop.f32.mrf.mxu0
    %v3699 = vadd.f32 0.0, %v3698
    %v3700 = vpop.f32.mrf.mxu0
    %3701 = vdwg.mxu0
    %3702 = vrot.lane.b32.xlu0 %v3108, 32
    %v3703 = vpop.permute.xlu0 %3702
    %v3704 = vsel %vm130, %v3703, 0
    %3706 = vmatprep.subr.mxu0 0.0
    %3707 = vmatpush1.msra.mxu0 0.0
    %3708 = vmatprep.subr.mxu0 0.0
    %3709 = vmatpush1.msra.mxu0 0.0
    %3710 = vmatprep.subr.mxu0 0.0
    %3711 = vmatpush1.msra.mxu0 0.0
    %3712 = vmatprep.subr.mxu0 0.0
    %3713 = vmatpush1.msra.mxu0 0.0
    %3714 = vmatprep.subr.mxu0 0.0
    %3715 = vmatpush1.msra.mxu0 0.0
    %3716 = vmatprep.subr.mxu0 0.0
    %3717 = vmatpush1.msra.mxu0 0.0
    %3718 = vmatprep.subr.mxu0 0.0
    %3719 = vmatpush1.msra.mxu0 0.0
    %3720 = vmatprep.subr.mxu0 0.0
    %3721 = vmatpush1.msra.mxu0 0.0
    %3722 = vmatprep.subr.mxu0 0.0
    %3723 = vmatpush1.msra.mxu0 0.0
    %3724 = vmatprep.subr.mxu0 0.0
    %3725 = vmatpush1.msra.mxu0 0.0
    %3726 = vmatprep.subr.mxu0 0.0
    %3727 = vmatpush1.msra.mxu0 0.0
    %3728 = vmatprep.subr.mxu0 0.0
    %3729 = vmatpush1.msra.mxu0 0.0
    %3730 = vmatprep.subr.mxu0 0.0
    %3731 = vmatpush1.msra.mxu0 %v118
    %3732 = vmatprep.subr.mxu0 0.0
    %3733 = vmatpush1.msra.mxu0 %v117
    %3734 = vmatprep.subr.mxu0 0.0
    %3735 = vmatpush1.msra.mxu0 %v116
    %3736 = vmatprep.subr.mxu0 0.0
    %3737 = vmatpush1.msra.mxu0 %v115
    %3738 = vmatprep.subr.mxu0 0.0
    %3739 = vmatpush2.msra.mxu0 0.0
    %3740 = vmatprep.subr.mxu0 0.0
    %3741 = vmatpush2.msra.mxu0 0.0
    %3742 = vmatprep.subr.mxu0 0.0
    %3743 = vmatpush2.msra.mxu0 0.0
    %3744 = vmatprep.subr.mxu0 0.0
    %3745 = vmatpush2.msra.mxu0 0.0
    %3746 = vmatprep.subr.mxu0 0.0
    %3747 = vmatpush2.msra.mxu0 0.0
    %3748 = vmatprep.subr.mxu0 0.0
    %3749 = vmatpush2.msra.mxu0 0.0
    %3750 = vmatprep.subr.mxu0 0.0
    %3751 = vmatpush2.msra.mxu0 0.0
    %3752 = vmatprep.subr.mxu0 0.0
    %3753 = vmatpush2.msra.mxu0 0.0
    %3754 = vmatprep.subr.mxu0 0.0
    %3755 = vmatpush2.msra.mxu0 0.0
    %3756 = vmatprep.subr.mxu0 0.0
    %3757 = vmatpush2.msra.mxu0 0.0
    %3758 = vmatprep.subr.mxu0 0.0
    %3759 = vmatpush2.msra.mxu0 0.0
    %3760 = vmatprep.subr.mxu0 0.0
    %3761 = vmatpush2.msra.mxu0 0.0
    %3762 = vmatprep.subr.mxu0 0.0
    %3763 = vmatpush2.msra.mxu0 0.0
    %3764 = vmatprep.subr.mxu0 0.0
    %3765 = vmatpush2.msra.mxu0 0.0
    %3766 = vmatprep.subr.mxu0 0.0
    %3767 = vmatpush2.msra.mxu0 0.0
    %3768 = vmatprep.subr.mxu0 0.0
    %3769 = vmatpush2.msra.mxu0 0.0
    %3770 = vmatprep.mubr.f32.mxu0 0.0
    %3771 = vmatmul.mubr.f32.gmra.mxu0 %v3704
    %v3772 = vpop.f32.mrf.mxu0
    %v3773 = vadd.f32 %v3699, %v3772
    %v3774 = vpop.f32.mrf.mxu0
    %3775 = vdwg.mxu0
    %v3776 = vadd.f32 %v3773, %v128
    %v3777 = vxor.u32 %v3776, 2147483648
    %v3778 = vmul.f32 %v3777, 1.442695
    %v3779 = vpow.pop %v3778
    %v3780 = vadd.f32 %v3779, 1.0
    %v3781 = vrcp.pop %v3780
    %v3782 = vmul.f32 1.0, %v3781
    %v3783 = vtanh.pop %v3776
    %v3784 = vmul.f32 %v3782, %v3102
    %3786 = vrot.lane.b32.xlu0 %v3783, 64
    %v3787 = vpop.permute.xlu0 %3786
    %v3789 = vmul.f32 %v3782, %v3787
    %3791 = vrot.lane.b32.xlu0 %v3789, 32
    %v3792 = vpop.permute.xlu0 %3791
    %v3794 = vadd.f32 %v3784, %v3792
    %v3795 = vtanh.pop %v3794
    %3797 = vrot.lane.b32.xlu0 %v3795, 64
    %v3798 = vpop.permute.xlu0 %3797
    %v3800 = vmul.f32 %v3782, %v3798
    %v3802 = vcombine.high %v3800, %v3800
    %v3804 = vunpack.c.l.s4 1966171168
    %v3805 = vunpack.c.0.s8 %v3804
    %v3806 = vlaneseq
    %v3807 = vshrl.u32 %v3806, 7
    %v3808 = vsub.s32 %v3805, %v3807
    %v3809 = vrot.slane %v3800, %v3808
    %v3811 = vunpack.c.l.s4 1966171168
    %v3812 = vunpack.c.0.s8 %v3811
    %v3813 = vlaneseq
    %v3814 = vshrl.u32 %v3813, 7
    %v3815 = vsub.s32 %v3812, %v3814
    %v3816 = vrot.slane %v3802, %v3815
    %v3817 = vcombine.high %v3809, %v3809
    %v3818 = vcombine.high %v3816, %v3816
    %v3820 = vunpack.c.l.s4 1966171168
    %v3821 = vunpack.c.0.s8 %v3820
    %v3822 = vlaneseq
    %v3823 = vshrl.u32 %v3822, 7
    %v3824 = vsub.s32 %v3821, %v3823
    %v3825 = vrot.slane %v3809, %v3824
    %v3827 = vunpack.c.l.s4 1966171168
    %v3828 = vunpack.c.0.s8 %v3827
    %v3829 = vlaneseq
    %v3830 = vshrl.u32 %v3829, 7
    %v3831 = vsub.s32 %v3828, %v3830
    %v3832 = vrot.slane %v3816, %v3831
    %v3834 = vunpack.c.l.s4 1966171168
    %v3835 = vunpack.c.0.s8 %v3834
    %v3836 = vlaneseq
    %v3837 = vshrl.u32 %v3836, 7
    %v3838 = vsub.s32 %v3835, %v3837
    %v3839 = vrot.slane %v3817, %v3838
    %v3841 = vunpack.c.l.s4 1966171168
    %v3842 = vunpack.c.0.s8 %v3841
    %v3843 = vlaneseq
    %v3844 = vshrl.u32 %v3843, 7
    %v3845 = vsub.s32 %v3842, %v3844
    %v3846 = vrot.slane %v3818, %v3845
    %v3847 = vcombine.high %v3825, %v3825
    %v3848 = vcombine.high %v3832, %v3832
    %v3849 = vcombine.high %v3839, %v3839
    %v3850 = vcombine.high %v3846, %v3846
    %v3851 = vlaneseq
    %v3852 = vshrl.u32 %v3851, 7
    %v3853 = vsub.s32 0, %v3852
    %v3854 = vrot.slane %v3825, %v3853
    %v3855 = vlaneseq
    %v3856 = vshrl.u32 %v3855, 7
    %v3857 = vsub.s32 0, %v3856
    %v3858 = vrot.slane %v3839, %v3857
    %v3859 = vlaneseq
    %v3860 = vshrl.u32 %v3859, 7
    %v3861 = vsub.s32 0, %v3860
    %v3862 = vrot.slane %v3847, %v3861
    %v3863 = vlaneseq
    %v3864 = vshrl.u32 %v3863, 7
    %v3865 = vsub.s32 0, %v3864
    %v3866 = vrot.slane %v3849, %v3865
    %v3867 = vlaneseq
    %v3868 = vshrl.u32 %v3867, 7
    %v3869 = vsub.s32 0, %v3868
    %v3870 = vrot.slane %v3832, %v3869
    %v3871 = vlaneseq
    %v3872 = vshrl.u32 %v3871, 7
    %v3873 = vsub.s32 0, %v3872
    %v3874 = vrot.slane %v3846, %v3873
    %v3875 = vlaneseq
    %v3876 = vshrl.u32 %v3875, 7
    %v3877 = vsub.s32 0, %v3876
    %v3878 = vrot.slane %v3848, %v3877
    %v3879 = vlaneseq
    %v3880 = vshrl.u32 %v3879, 7
    %v3881 = vsub.s32 0, %v3880
    %v3882 = vrot.slane %v3850, %v3881
    %v3891 = vmul.f32 %v3854, %v398
    %v3892 = vmul.f32 %v3858, %v400
    %v3893 = vmul.f32 %v3862, %v402
    %v3894 = vmul.f32 %v3866, %v404
    %v3895 = vmul.f32 %v3870, %v406
    %v3896 = vmul.f32 %v3874, %v408
    %v3897 = vmul.f32 %v3878, %v410
    %v3898 = vmul.f32 %v3882, %v412
    %3907 = vrot.lane.b32.xlu0 %v3891, 32
    %v3908 = vpop.permute.xlu0 %3907
    %3909 = vrot.lane.b32.xlu0 %v3892, 32
    %v3910 = vpop.permute.xlu0 %3909
    %3911 = vrot.lane.b32.xlu0 %v3893, 32
    %v3912 = vpop.permute.xlu0 %3911
    %3913 = vrot.lane.b32.xlu0 %v3894, 32
    %v3914 = vpop.permute.xlu0 %3913
    %3915 = vrot.lane.b32.xlu0 %v3895, 32
    %v3916 = vpop.permute.xlu0 %3915
    %3917 = vrot.lane.b32.xlu0 %v3896, 32
    %v3918 = vpop.permute.xlu0 %3917
    %3919 = vrot.lane.b32.xlu0 %v3897, 32
    %v3920 = vpop.permute.xlu0 %3919
    %3921 = vrot.lane.b32.xlu0 %v3898, 32
    %v3922 = vpop.permute.xlu0 %3921
    %v3931 = vsel %vm130, %v3908, 0.0
    %3932 = vadd.xlane.f32.xlu0 %v3931
    %v3933 = vpop.xlane.xlu0 %3932
    %v3934 = vsel %vm130, %v3910, 0.0
    %3935 = vadd.xlane.f32.xlu0 %v3934
    %v3936 = vpop.xlane.xlu0 %3935
    %v3937 = vsel %vm130, %v3912, 0.0
    %3938 = vadd.xlane.f32.xlu0 %v3937
    %v3939 = vpop.xlane.xlu0 %3938
    %v3940 = vsel %vm130, %v3914, 0.0
    %3941 = vadd.xlane.f32.xlu0 %v3940
    %v3942 = vpop.xlane.xlu0 %3941
    %v3943 = vsel %vm130, %v3916, 0.0
    %3944 = vadd.xlane.f32.xlu0 %v3943
    %v3945 = vpop.xlane.xlu0 %3944
    %v3946 = vsel %vm130, %v3918, 0.0
    %3947 = vadd.xlane.f32.xlu0 %v3946
    %v3948 = vpop.xlane.xlu0 %3947
    %v3949 = vsel %vm130, %v3920, 0.0
    %3950 = vadd.xlane.f32.xlu0 %v3949
    %v3951 = vpop.xlane.xlu0 %3950
    %v3952 = vsel %vm130, %v3922, 0.0
    %3953 = vadd.xlane.f32.xlu0 %v3952
    %v3954 = vpop.xlane.xlu0 %3953
    %v3963 = vlaneseq
    %v3964 = vshrl.u32 %v3963, 7
    %v3965 = vsub.s32 %v494, %v3964
    %v3966 = vrot.slane %v3933, %v3965
    %v3967 = vlaneseq
    %v3968 = vshrl.u32 %v3967, 7
    %v3969 = vsub.s32 %v494, %v3968
    %v3970 = vrot.slane %v3936, %v3969
    %v3971 = vlaneseq
    %v3972 = vshrl.u32 %v3971, 7
    %v3973 = vsub.s32 %v494, %v3972
    %v3974 = vrot.slane %v3939, %v3973
    %v3975 = vlaneseq
    %v3976 = vshrl.u32 %v3975, 7
    %v3977 = vsub.s32 %v494, %v3976
    %v3978 = vrot.slane %v3942, %v3977
    %v3979 = vlaneseq
    %v3980 = vshrl.u32 %v3979, 7
    %v3981 = vsub.s32 %v494, %v3980
    %v3982 = vrot.slane %v3945, %v3981
    %v3983 = vlaneseq
    %v3984 = vshrl.u32 %v3983, 7
    %v3985 = vsub.s32 %v494, %v3984
    %v3986 = vrot.slane %v3948, %v3985
    %v3987 = vlaneseq
    %v3988 = vshrl.u32 %v3987, 7
    %v3989 = vsub.s32 %v494, %v3988
    %v3990 = vrot.slane %v3951, %v3989
    %v3991 = vlaneseq
    %v3992 = vshrl.u32 %v3991, 7
    %v3993 = vsub.s32 %v494, %v3992
    %v3994 = vrot.slane %v3954, %v3993
    %v3995 = vsel %vm527, %v3970, %v3966
    %v3996 = vsel %vm529, %v3974, %v3995
    %v3997 = vsel %vm531, %v3978, %v3996
    %v3998 = vsel %vm533, %v3982, %v3997
    %v3999 = vsel %vm535, %v3986, %v3998
    %v4000 = vsel %vm537, %v3990, %v3999
    %v4001 = vsel %vm539, %v3994, %v4000
    %v4003 = vsel %vm542, %v4001, -inf
    %4004 = vmax.xlane.f32.xlu0 %v4003
    %v4005 = vpop.xlane.xlu0 %4004
    %v4007 = vlaneseq
    %v4008 = vshrl.u32 %v4007, 7
    %v4009 = vsub.s32 0, %v4008
    %v4010 = vrot.slane %v4005, %v4009
    %v4011 = vlaneseq
    %v4012 = vshrl.u32 %v4011, 7
    %v4013 = vsub.s32 1, %v4012
    %v4014 = vrot.slane %v4005, %v4013
    %v4015 = vlaneseq
    %v4016 = vshrl.u32 %v4015, 7
    %v4017 = vsub.s32 2, %v4016
    %v4018 = vrot.slane %v4005, %v4017
    %v4019 = vlaneseq
    %v4020 = vshrl.u32 %v4019, 7
    %v4021 = vsub.s32 3, %v4020
    %v4022 = vrot.slane %v4005, %v4021
    %v4023 = vlaneseq
    %v4024 = vshrl.u32 %v4023, 7
    %v4025 = vsub.s32 4, %v4024
    %v4026 = vrot.slane %v4005, %v4025
    %v4027 = vlaneseq
    %v4028 = vshrl.u32 %v4027, 7
    %v4029 = vsub.s32 5, %v4028
    %v4030 = vrot.slane %v4005, %v4029
    %v4031 = vlaneseq
    %v4032 = vshrl.u32 %v4031, 7
    %v4033 = vsub.s32 6, %v4032
    %v4034 = vrot.slane %v4005, %v4033
    %v4035 = vlaneseq
    %v4036 = vshrl.u32 %v4035, 7
    %v4037 = vsub.s32 7, %v4036
    %v4038 = vrot.slane %v4005, %v4037
    %v4047 = vsub.f32 %v3933, %v4010
    %v4048 = vsub.f32 %v3936, %v4014
    %v4049 = vsub.f32 %v3939, %v4018
    %v4050 = vsub.f32 %v3942, %v4022
    %v4051 = vsub.f32 %v3945, %v4026
    %v4052 = vsub.f32 %v3948, %v4030
    %v4053 = vsub.f32 %v3951, %v4034
    %v4054 = vsub.f32 %v3954, %v4038
    %v4055 = vmul.f32 %v4047, 1.442695
    %v4056 = vpow.pop %v4055
    %v4057 = vmul.f32 %v4048, 1.442695
    %v4058 = vpow.pop %v4057
    %v4059 = vmul.f32 %v4049, 1.442695
    %v4060 = vpow.pop %v4059
    %v4061 = vmul.f32 %v4050, 1.442695
    %v4062 = vpow.pop %v4061
    %v4063 = vmul.f32 %v4051, 1.442695
    %v4064 = vpow.pop %v4063
    %v4065 = vmul.f32 %v4052, 1.442695
    %v4066 = vpow.pop %v4065
    %v4067 = vmul.f32 %v4053, 1.442695
    %v4068 = vpow.pop %v4067
    %v4069 = vmul.f32 %v4054, 1.442695
    %v4070 = vpow.pop %v4069
    %4079 = vset.pattern.permute.xlu0 0
    %4080 = vperm.xlu0 %4079, %v4056
    %v4081 = vpop.permute.xlu0 %4080
    %4082 = vset.pattern.permute.xlu0 0
    %4083 = vperm.xlu0 %4082, %v4058
    %v4084 = vpop.permute.xlu0 %4083
    %4085 = vset.pattern.permute.xlu0 0
    %4086 = vperm.xlu0 %4085, %v4060
    %v4087 = vpop.permute.xlu0 %4086
    %4088 = vset.pattern.permute.xlu0 0
    %4089 = vperm.xlu0 %4088, %v4062
    %v4090 = vpop.permute.xlu0 %4089
    %4091 = vset.pattern.permute.xlu0 0
    %4092 = vperm.xlu0 %4091, %v4064
    %v4093 = vpop.permute.xlu0 %4092
    %4094 = vset.pattern.permute.xlu0 0
    %4095 = vperm.xlu0 %4094, %v4066
    %v4096 = vpop.permute.xlu0 %4095
    %4097 = vset.pattern.permute.xlu0 0
    %4098 = vperm.xlu0 %4097, %v4068
    %v4099 = vpop.permute.xlu0 %4098
    %4100 = vset.pattern.permute.xlu0 0
    %4101 = vperm.xlu0 %4100, %v4070
    %v4102 = vpop.permute.xlu0 %4101
    %v4103 = vlaneseq
    %v4104 = vshrl.u32 %v4103, 7
    %v4105 = vsub.s32 %v494, %v4104
    %v4106 = vrot.slane %v4081, %v4105
    %v4107 = vlaneseq
    %v4108 = vshrl.u32 %v4107, 7
    %v4109 = vsub.s32 %v494, %v4108
    %v4110 = vrot.slane %v4084, %v4109
    %v4111 = vlaneseq
    %v4112 = vshrl.u32 %v4111, 7
    %v4113 = vsub.s32 %v494, %v4112
    %v4114 = vrot.slane %v4087, %v4113
    %v4115 = vlaneseq
    %v4116 = vshrl.u32 %v4115, 7
    %v4117 = vsub.s32 %v494, %v4116
    %v4118 = vrot.slane %v4090, %v4117
    %v4119 = vlaneseq
    %v4120 = vshrl.u32 %v4119, 7
    %v4121 = vsub.s32 %v494, %v4120
    %v4122 = vrot.slane %v4093, %v4121
    %v4123 = vlaneseq
    %v4124 = vshrl.u32 %v4123, 7
    %v4125 = vsub.s32 %v494, %v4124
    %v4126 = vrot.slane %v4096, %v4125
    %v4127 = vlaneseq
    %v4128 = vshrl.u32 %v4127, 7
    %v4129 = vsub.s32 %v494, %v4128
    %v4130 = vrot.slane %v4099, %v4129
    %v4131 = vlaneseq
    %v4132 = vshrl.u32 %v4131, 7
    %v4133 = vsub.s32 %v494, %v4132
    %v4134 = vrot.slane %v4102, %v4133
    %v4135 = vsel %vm527, %v4110, %v4106
    %v4136 = vsel %vm529, %v4114, %v4135
    %v4137 = vsel %vm531, %v4118, %v4136
    %v4138 = vsel %vm533, %v4122, %v4137
    %v4139 = vsel %vm535, %v4126, %v4138
    %v4140 = vsel %vm537, %v4130, %v4139
    %v4141 = vsel %vm539, %v4134, %v4140
    %v4143 = vsel %vm542, %v4141, 0.0
    %4144 = vadd.xlane.f32.xlu0 %v4143
    %v4145 = vpop.xlane.xlu0 %4144
    %v4147 = vlaneseq
    %v4148 = vshrl.u32 %v4147, 7
    %v4149 = vsub.s32 0, %v4148
    %v4150 = vrot.slane %v4145, %v4149
    %v4151 = vlaneseq
    %v4152 = vshrl.u32 %v4151, 7
    %v4153 = vsub.s32 1, %v4152
    %v4154 = vrot.slane %v4145, %v4153
    %v4155 = vlaneseq
    %v4156 = vshrl.u32 %v4155, 7
    %v4157 = vsub.s32 2, %v4156
    %v4158 = vrot.slane %v4145, %v4157
    %v4159 = vlaneseq
    %v4160 = vshrl.u32 %v4159, 7
    %v4161 = vsub.s32 3, %v4160
    %v4162 = vrot.slane %v4145, %v4161
    %v4163 = vlaneseq
    %v4164 = vshrl.u32 %v4163, 7
    %v4165 = vsub.s32 4, %v4164
    %v4166 = vrot.slane %v4145, %v4165
    %v4167 = vlaneseq
    %v4168 = vshrl.u32 %v4167, 7
    %v4169 = vsub.s32 5, %v4168
    %v4170 = vrot.slane %v4145, %v4169
    %v4171 = vlaneseq
    %v4172 = vshrl.u32 %v4171, 7
    %v4173 = vsub.s32 6, %v4172
    %v4174 = vrot.slane %v4145, %v4173
    %v4175 = vlaneseq
    %v4176 = vshrl.u32 %v4175, 7
    %v4177 = vsub.s32 7, %v4176
    %v4178 = vrot.slane %v4145, %v4177
    %v4187 = vrcp.pop %v4150
    %v4188 = vmul.f32 %v4056, %v4187
    %v4189 = vrcp.pop %v4154
    %v4190 = vmul.f32 %v4058, %v4189
    %v4191 = vrcp.pop %v4158
    %v4192 = vmul.f32 %v4060, %v4191
    %v4193 = vrcp.pop %v4162
    %v4194 = vmul.f32 %v4062, %v4193
    %v4195 = vrcp.pop %v4166
    %v4196 = vmul.f32 %v4064, %v4195
    %v4197 = vrcp.pop %v4170
    %v4198 = vmul.f32 %v4066, %v4197
    %v4199 = vrcp.pop %v4174
    %v4200 = vmul.f32 %v4068, %v4199
    %v4201 = vrcp.pop %v4178
    %v4202 = vmul.f32 %v4070, %v4201
    %4204 = vset.pattern.permute.xlu0 0
    %4205 = vperm.xlu0 %4204, %v4188
    %v4206 = vpop.permute.xlu0 %4205
    %4209 = vset.pattern.permute.xlu0 0
    %4210 = vperm.xlu0 %4209, %v4190
    %v4211 = vpop.permute.xlu0 %4210
    %4214 = vset.pattern.permute.xlu0 0
    %4215 = vperm.xlu0 %4214, %v4192
    %v4216 = vpop.permute.xlu0 %4215
    %4219 = vset.pattern.permute.xlu0 0
    %4220 = vperm.xlu0 %4219, %v4194
    %v4221 = vpop.permute.xlu0 %4220
    %4224 = vset.pattern.permute.xlu0 0
    %4225 = vperm.xlu0 %4224, %v4196
    %v4226 = vpop.permute.xlu0 %4225
    %4229 = vset.pattern.permute.xlu0 0
    %4230 = vperm.xlu0 %4229, %v4198
    %v4231 = vpop.permute.xlu0 %4230
    %4234 = vset.pattern.permute.xlu0 0
    %4235 = vperm.xlu0 %4234, %v4200
    %v4236 = vpop.permute.xlu0 %4235
    %4239 = vset.pattern.permute.xlu0 0
    %4240 = vperm.xlu0 %4239, %v4202
    %v4241 = vpop.permute.xlu0 %4240
    %v4243 = vmul.f32 %v4206, %v107
    %v4244 = vmul.f32 %v4211, %v108
    %v4245 = vmul.f32 %v4216, %v109
    %v4246 = vmul.f32 %v4221, %v110
    %v4247 = vmul.f32 %v4226, %v111
    %v4248 = vmul.f32 %v4231, %v112
    %v4249 = vmul.f32 %v4236, %v113
    %v4250 = vmul.f32 %v4241, %v114
    %v4251 = vsel %vm130, %v4243, 0.0
    %v4252 = vrot.slane %v4251, 4
    %v4253 = vadd.f32 %v4251, %v4252
    %v4254 = vrot.slane %v4253, 2
    %v4255 = vadd.f32 %v4253, %v4254
    %v4256 = vrot.slane %v4255, 1
    %v4257 = vadd.f32 %v4255, %v4256
    %v4258 = vsel %vm130, %v4244, 0.0
    %v4259 = vrot.slane %v4258, 4
    %v4260 = vadd.f32 %v4258, %v4259
    %v4261 = vrot.slane %v4260, 2
    %v4262 = vadd.f32 %v4260, %v4261
    %v4263 = vrot.slane %v4262, 1
    %v4264 = vadd.f32 %v4262, %v4263
    %v4265 = vsel %vm130, %v4245, 0.0
    %v4266 = vrot.slane %v4265, 4
    %v4267 = vadd.f32 %v4265, %v4266
    %v4268 = vrot.slane %v4267, 2
    %v4269 = vadd.f32 %v4267, %v4268
    %v4270 = vrot.slane %v4269, 1
    %v4271 = vadd.f32 %v4269, %v4270
    %v4272 = vsel %vm130, %v4246, 0.0
    %v4273 = vrot.slane %v4272, 4
    %v4274 = vadd.f32 %v4272, %v4273
    %v4275 = vrot.slane %v4274, 2
    %v4276 = vadd.f32 %v4274, %v4275
    %v4277 = vrot.slane %v4276, 1
    %v4278 = vadd.f32 %v4276, %v4277
    %v4279 = vsel %vm130, %v4247, 0.0
    %v4280 = vrot.slane %v4279, 4
    %v4281 = vadd.f32 %v4279, %v4280
    %v4282 = vrot.slane %v4281, 2
    %v4283 = vadd.f32 %v4281, %v4282
    %v4284 = vrot.slane %v4283, 1
    %v4285 = vadd.f32 %v4283, %v4284
    %v4286 = vsel %vm130, %v4248, 0.0
    %v4287 = vrot.slane %v4286, 4
    %v4288 = vadd.f32 %v4286, %v4287
    %v4289 = vrot.slane %v4288, 2
    %v4290 = vadd.f32 %v4288, %v4289
    %v4291 = vrot.slane %v4290, 1
    %v4292 = vadd.f32 %v4290, %v4291
    %v4293 = vsel %vm130, %v4249, 0.0
    %v4294 = vrot.slane %v4293, 4
    %v4295 = vadd.f32 %v4293, %v4294
    %v4296 = vrot.slane %v4295, 2
    %v4297 = vadd.f32 %v4295, %v4296
    %v4298 = vrot.slane %v4297, 1
    %v4299 = vadd.f32 %v4297, %v4298
    %v4300 = vsel %vm130, %v4250, 0.0
    %v4301 = vrot.slane %v4300, 4
    %v4302 = vadd.f32 %v4300, %v4301
    %v4303 = vrot.slane %v4302, 2
    %v4304 = vadd.f32 %v4302, %v4303
    %v4305 = vrot.slane %v4304, 1
    %v4306 = vadd.f32 %v4304, %v4305
    %v4315 = vsel %vm527, %v4264, %v4257
    %v4316 = vsel %vm529, %v4271, %v4315
    %v4317 = vsel %vm531, %v4278, %v4316
    %v4318 = vsel %vm533, %v4285, %v4317
    %v4319 = vsel %vm535, %v4292, %v4318
    %v4320 = vsel %vm537, %v4299, %v4319
    %v4321 = vsel %vm539, %v4306, %v4320
    %v4322 = vsel %vm130, %v4321, 0
    %4324 = vmatprep.subr.mxu0 0.0
    %4325 = vmatpush1.msra.mxu0 0.0
    %4326 = vmatprep.subr.mxu0 0.0
    %4327 = vmatpush1.msra.mxu0 0.0
    %4328 = vmatprep.subr.mxu0 0.0
    %4329 = vmatpush1.msra.mxu0 0.0
    %4330 = vmatprep.subr.mxu0 0.0
    %4331 = vmatpush1.msra.mxu0 0.0
    %4332 = vmatprep.subr.mxu0 0.0
    %4333 = vmatpush1.msra.mxu0 0.0
    %4334 = vmatprep.subr.mxu0 0.0
    %4335 = vmatpush1.msra.mxu0 0.0
    %4336 = vmatprep.subr.mxu0 0.0
    %4337 = vmatpush1.msra.mxu0 0.0
    %4338 = vmatprep.subr.mxu0 0.0
    %4339 = vmatpush1.msra.mxu0 0.0
    %4340 = vmatprep.subr.mxu0 0.0
    %4341 = vmatpush1.msra.mxu0 0.0
    %4342 = vmatprep.subr.mxu0 0.0
    %4343 = vmatpush1.msra.mxu0 0.0
    %4344 = vmatprep.subr.mxu0 0.0
    %4345 = vmatpush1.msra.mxu0 0.0
    %4346 = vmatprep.subr.mxu0 0.0
    %4347 = vmatpush1.msra.mxu0 0.0
    %4348 = vmatprep.subr.mxu0 0.0
    %4349 = vmatpush1.msra.mxu0 %v122
    %4350 = vmatprep.subr.mxu0 0.0
    %4351 = vmatpush1.msra.mxu0 %v121
    %4352 = vmatprep.subr.mxu0 0.0
    %4353 = vmatpush1.msra.mxu0 %v120
    %4354 = vmatprep.subr.mxu0 0.0
    %4355 = vmatpush1.msra.mxu0 %v119
    %4356 = vmatprep.subr.mxu0 0.0
    %4357 = vmatpush2.msra.mxu0 0.0
    %4358 = vmatprep.subr.mxu0 0.0
    %4359 = vmatpush2.msra.mxu0 0.0
    %4360 = vmatprep.subr.mxu0 0.0
    %4361 = vmatpush2.msra.mxu0 0.0
    %4362 = vmatprep.subr.mxu0 0.0
    %4363 = vmatpush2.msra.mxu0 0.0
    %4364 = vmatprep.subr.mxu0 0.0
    %4365 = vmatpush2.msra.mxu0 0.0
    %4366 = vmatprep.subr.mxu0 0.0
    %4367 = vmatpush2.msra.mxu0 0.0
    %4368 = vmatprep.subr.mxu0 0.0
    %4369 = vmatpush2.msra.mxu0 0.0
    %4370 = vmatprep.subr.mxu0 0.0
    %4371 = vmatpush2.msra.mxu0 0.0
    %4372 = vmatprep.subr.mxu0 0.0
    %4373 = vmatpush2.msra.mxu0 0.0
    %4374 = vmatprep.subr.mxu0 0.0
    %4375 = vmatpush2.msra.mxu0 0.0
    %4376 = vmatprep.subr.mxu0 0.0
    %4377 = vmatpush2.msra.mxu0 0.0
    %4378 = vmatprep.subr.mxu0 0.0
    %4379 = vmatpush2.msra.mxu0 0.0
    %4380 = vmatprep.subr.mxu0 0.0
    %4381 = vmatpush2.msra.mxu0 0.0
    %4382 = vmatprep.subr.mxu0 0.0
    %4383 = vmatpush2.msra.mxu0 0.0
    %4384 = vmatprep.subr.mxu0 0.0
    %4385 = vmatpush2.msra.mxu0 0.0
    %4386 = vmatprep.subr.mxu0 0.0
    %4387 = vmatpush2.msra.mxu0 0.0
    %4388 = vmatprep.mubr.f32.mxu0 0.0
    %4389 = vmatmul.mubr.f32.gmra.mxu0 %v4322
    %v4390 = vpop.f32.mrf.mxu0
    %v4391 = vadd.f32 0.0, %v4390
    %v4392 = vpop.f32.mrf.mxu0
    %4393 = vdwg.mxu0
    %4394 = vrot.lane.b32.xlu0 %v3800, 32
    %v4395 = vpop.permute.xlu0 %4394
    %v4396 = vsel %vm130, %v4395, 0
    %4398 = vmatprep.subr.mxu0 0.0
    %4399 = vmatpush1.msra.mxu0 0.0
    %4400 = vmatprep.subr.mxu0 0.0
    %4401 = vmatpush1.msra.mxu0 0.0
    %4402 = vmatprep.subr.mxu0 0.0
    %4403 = vmatpush1.msra.mxu0 0.0
    %4404 = vmatprep.subr.mxu0 0.0
    %4405 = vmatpush1.msra.mxu0 0.0
    %4406 = vmatprep.subr.mxu0 0.0
    %4407 = vmatpush1.msra.mxu0 0.0
    %4408 = vmatprep.subr.mxu0 0.0
    %4409 = vmatpush1.msra.mxu0 0.0
    %4410 = vmatprep.subr.mxu0 0.0
    %4411 = vmatpush1.msra.mxu0 0.0
    %4412 = vmatprep.subr.mxu0 0.0
    %4413 = vmatpush1.msra.mxu0 0.0
    %4414 = vmatprep.subr.mxu0 0.0
    %4415 = vmatpush1.msra.mxu0 0.0
    %4416 = vmatprep.subr.mxu0 0.0
    %4417 = vmatpush1.msra.mxu0 0.0
    %4418 = vmatprep.subr.mxu0 0.0
    %4419 = vmatpush1.msra.mxu0 0.0
    %4420 = vmatprep.subr.mxu0 0.0
    %4421 = vmatpush1.msra.mxu0 0.0
    %4422 = vmatprep.subr.mxu0 0.0
    %4423 = vmatpush1.msra.mxu0 %v118
    %4424 = vmatprep.subr.mxu0 0.0
    %4425 = vmatpush1.msra.mxu0 %v117
    %4426 = vmatprep.subr.mxu0 0.0
    %4427 = vmatpush1.msra.mxu0 %v116
    %4428 = vmatprep.subr.mxu0 0.0
    %4429 = vmatpush1.msra.mxu0 %v115
    %4430 = vmatprep.subr.mxu0 0.0
    %4431 = vmatpush2.msra.mxu0 0.0
    %4432 = vmatprep.subr.mxu0 0.0
    %4433 = vmatpush2.msra.mxu0 0.0
    %4434 = vmatprep.subr.mxu0 0.0
    %4435 = vmatpush2.msra.mxu0 0.0
    %4436 = vmatprep.subr.mxu0 0.0
    %4437 = vmatpush2.msra.mxu0 0.0
    %4438 = vmatprep.subr.mxu0 0.0
    %4439 = vmatpush2.msra.mxu0 0.0
    %4440 = vmatprep.subr.mxu0 0.0
    %4441 = vmatpush2.msra.mxu0 0.0
    %4442 = vmatprep.subr.mxu0 0.0
    %4443 = vmatpush2.msra.mxu0 0.0
    %4444 = vmatprep.subr.mxu0 0.0
    %4445 = vmatpush2.msra.mxu0 0.0
    %4446 = vmatprep.subr.mxu0 0.0
    %4447 = vmatpush2.msra.mxu0 0.0
    %4448 = vmatprep.subr.mxu0 0.0
    %4449 = vmatpush2.msra.mxu0 0.0
    %4450 = vmatprep.subr.mxu0 0.0
    %4451 = vmatpush2.msra.mxu0 0.0
    %4452 = vmatprep.subr.mxu0 0.0
    %4453 = vmatpush2.msra.mxu0 0.0
    %4454 = vmatprep.subr.mxu0 0.0
    %4455 = vmatpush2.msra.mxu0 0.0
    %4456 = vmatprep.subr.mxu0 0.0
    %4457 = vmatpush2.msra.mxu0 0.0
    %4458 = vmatprep.subr.mxu0 0.0
    %4459 = vmatpush2.msra.mxu0 0.0
    %4460 = vmatprep.subr.mxu0 0.0
    %4461 = vmatpush2.msra.mxu0 0.0
    %4462 = vmatprep.mubr.f32.mxu0 0.0
    %4463 = vmatmul.mubr.f32.gmra.mxu0 %v4396
    %v4464 = vpop.f32.mrf.mxu0
    %v4465 = vadd.f32 %v4391, %v4464
    %v4466 = vpop.f32.mrf.mxu0
    %4467 = vdwg.mxu0
    %v4468 = vadd.f32 %v4465, %v128
    %v4469 = vxor.u32 %v4468, 2147483648
    %v4470 = vmul.f32 %v4469, 1.442695
    %v4471 = vpow.pop %v4470
    %v4472 = vadd.f32 %v4471, 1.0
    %v4473 = vrcp.pop %v4472
    %v4474 = vmul.f32 1.0, %v4473
    %v4475 = vtanh.pop %v4468
    %v4476 = vmul.f32 %v4474, %v3794
    %4478 = vrot.lane.b32.xlu0 %v4475, 64
    %v4479 = vpop.permute.xlu0 %4478
    %v4481 = vmul.f32 %v4474, %v4479
    %4483 = vrot.lane.b32.xlu0 %v4481, 32
    %v4484 = vpop.permute.xlu0 %4483
    %v4486 = vadd.f32 %v4476, %v4484
    %v4487 = vtanh.pop %v4486
    %4489 = vrot.lane.b32.xlu0 %v4487, 64
    %v4490 = vpop.permute.xlu0 %4489
    %v4492 = vmul.f32 %v4474, %v4490
    %v4494 = vcombine.high %v4492, %v4492
    %v4496 = vunpack.c.l.s4 1966171168
    %v4497 = vunpack.c.0.s8 %v4496
    %v4498 = vlaneseq
    %v4499 = vshrl.u32 %v4498, 7
    %v4500 = vsub.s32 %v4497, %v4499
    %v4501 = vrot.slane %v4492, %v4500
    %v4503 = vunpack.c.l.s4 1966171168
    %v4504 = vunpack.c.0.s8 %v4503
    %v4505 = vlaneseq
    %v4506 = vshrl.u32 %v4505, 7
    %v4507 = vsub.s32 %v4504, %v4506
    %v4508 = vrot.slane %v4494, %v4507
    %v4509 = vcombine.high %v4501, %v4501
    %v4510 = vcombine.high %v4508, %v4508
    %v4512 = vunpack.c.l.s4 1966171168
    %v4513 = vunpack.c.0.s8 %v4512
    %v4514 = vlaneseq
    %v4515 = vshrl.u32 %v4514, 7
    %v4516 = vsub.s32 %v4513, %v4515
    %v4517 = vrot.slane %v4501, %v4516
    %v4519 = vunpack.c.l.s4 1966171168
    %v4520 = vunpack.c.0.s8 %v4519
    %v4521 = vlaneseq
    %v4522 = vshrl.u32 %v4521, 7
    %v4523 = vsub.s32 %v4520, %v4522
    %v4524 = vrot.slane %v4508, %v4523
    %v4526 = vunpack.c.l.s4 1966171168
    %v4527 = vunpack.c.0.s8 %v4526
    %v4528 = vlaneseq
    %v4529 = vshrl.u32 %v4528, 7
    %v4530 = vsub.s32 %v4527, %v4529
    %v4531 = vrot.slane %v4509, %v4530
    %v4533 = vunpack.c.l.s4 1966171168
    %v4534 = vunpack.c.0.s8 %v4533
    %v4535 = vlaneseq
    %v4536 = vshrl.u32 %v4535, 7
    %v4537 = vsub.s32 %v4534, %v4536
    %v4538 = vrot.slane %v4510, %v4537
    %v4539 = vcombine.high %v4517, %v4517
    %v4540 = vcombine.high %v4524, %v4524
    %v4541 = vcombine.high %v4531, %v4531
    %v4542 = vcombine.high %v4538, %v4538
    %v4543 = vlaneseq
    %v4544 = vshrl.u32 %v4543, 7
    %v4545 = vsub.s32 0, %v4544
    %v4546 = vrot.slane %v4517, %v4545
    %v4547 = vlaneseq
    %v4548 = vshrl.u32 %v4547, 7
    %v4549 = vsub.s32 0, %v4548
    %v4550 = vrot.slane %v4531, %v4549
    %v4551 = vlaneseq
    %v4552 = vshrl.u32 %v4551, 7
    %v4553 = vsub.s32 0, %v4552
    %v4554 = vrot.slane %v4539, %v4553
    %v4555 = vlaneseq
    %v4556 = vshrl.u32 %v4555, 7
    %v4557 = vsub.s32 0, %v4556
    %v4558 = vrot.slane %v4541, %v4557
    %v4559 = vlaneseq
    %v4560 = vshrl.u32 %v4559, 7
    %v4561 = vsub.s32 0, %v4560
    %v4562 = vrot.slane %v4524, %v4561
    %v4563 = vlaneseq
    %v4564 = vshrl.u32 %v4563, 7
    %v4565 = vsub.s32 0, %v4564
    %v4566 = vrot.slane %v4538, %v4565
    %v4567 = vlaneseq
    %v4568 = vshrl.u32 %v4567, 7
    %v4569 = vsub.s32 0, %v4568
    %v4570 = vrot.slane %v4540, %v4569
    %v4571 = vlaneseq
    %v4572 = vshrl.u32 %v4571, 7
    %v4573 = vsub.s32 0, %v4572
    %v4574 = vrot.slane %v4542, %v4573
    %v4583 = vmul.f32 %v4546, %v398
    %v4584 = vmul.f32 %v4550, %v400
    %v4585 = vmul.f32 %v4554, %v402
    %v4586 = vmul.f32 %v4558, %v404
    %v4587 = vmul.f32 %v4562, %v406
    %v4588 = vmul.f32 %v4566, %v408
    %v4589 = vmul.f32 %v4570, %v410
    %v4590 = vmul.f32 %v4574, %v412
    %4599 = vrot.lane.b32.xlu0 %v4583, 32
    %v4600 = vpop.permute.xlu0 %4599
    %4601 = vrot.lane.b32.xlu0 %v4584, 32
    %v4602 = vpop.permute.xlu0 %4601
    %4603 = vrot.lane.b32.xlu0 %v4585, 32
    %v4604 = vpop.permute.xlu0 %4603
    %4605 = vrot.lane.b32.xlu0 %v4586, 32
    %v4606 = vpop.permute.xlu0 %4605
    %4607 = vrot.lane.b32.xlu0 %v4587, 32
    %v4608 = vpop.permute.xlu0 %4607
    %4609 = vrot.lane.b32.xlu0 %v4588, 32
    %v4610 = vpop.permute.xlu0 %4609
    %4611 = vrot.lane.b32.xlu0 %v4589, 32
    %v4612 = vpop.permute.xlu0 %4611
    %4613 = vrot.lane.b32.xlu0 %v4590, 32
    %v4614 = vpop.permute.xlu0 %4613
    %v4623 = vsel %vm130, %v4600, 0.0
    %4624 = vadd.xlane.f32.xlu0 %v4623
    %v4625 = vpop.xlane.xlu0 %4624
    %v4626 = vsel %vm130, %v4602, 0.0
    %4627 = vadd.xlane.f32.xlu0 %v4626
    %v4628 = vpop.xlane.xlu0 %4627
    %v4629 = vsel %vm130, %v4604, 0.0
    %4630 = vadd.xlane.f32.xlu0 %v4629
    %v4631 = vpop.xlane.xlu0 %4630
    %v4632 = vsel %vm130, %v4606, 0.0
    %4633 = vadd.xlane.f32.xlu0 %v4632
    %v4634 = vpop.xlane.xlu0 %4633
    %v4635 = vsel %vm130, %v4608, 0.0
    %4636 = vadd.xlane.f32.xlu0 %v4635
    %v4637 = vpop.xlane.xlu0 %4636
    %v4638 = vsel %vm130, %v4610, 0.0
    %4639 = vadd.xlane.f32.xlu0 %v4638
    %v4640 = vpop.xlane.xlu0 %4639
    %v4641 = vsel %vm130, %v4612, 0.0
    %4642 = vadd.xlane.f32.xlu0 %v4641
    %v4643 = vpop.xlane.xlu0 %4642
    %v4644 = vsel %vm130, %v4614, 0.0
    %4645 = vadd.xlane.f32.xlu0 %v4644
    %v4646 = vpop.xlane.xlu0 %4645
    %v4655 = vlaneseq
    %v4656 = vshrl.u32 %v4655, 7
    %v4657 = vsub.s32 %v494, %v4656
    %v4658 = vrot.slane %v4625, %v4657
    %v4659 = vlaneseq
    %v4660 = vshrl.u32 %v4659, 7
    %v4661 = vsub.s32 %v494, %v4660
    %v4662 = vrot.slane %v4628, %v4661
    %v4663 = vlaneseq
    %v4664 = vshrl.u32 %v4663, 7
    %v4665 = vsub.s32 %v494, %v4664
    %v4666 = vrot.slane %v4631, %v4665
    %v4667 = vlaneseq
    %v4668 = vshrl.u32 %v4667, 7
    %v4669 = vsub.s32 %v494, %v4668
    %v4670 = vrot.slane %v4634, %v4669
    %v4671 = vlaneseq
    %v4672 = vshrl.u32 %v4671, 7
    %v4673 = vsub.s32 %v494, %v4672
    %v4674 = vrot.slane %v4637, %v4673
    %v4675 = vlaneseq
    %v4676 = vshrl.u32 %v4675, 7
    %v4677 = vsub.s32 %v494, %v4676
    %v4678 = vrot.slane %v4640, %v4677
    %v4679 = vlaneseq
    %v4680 = vshrl.u32 %v4679, 7
    %v4681 = vsub.s32 %v494, %v4680
    %v4682 = vrot.slane %v4643, %v4681
    %v4683 = vlaneseq
    %v4684 = vshrl.u32 %v4683, 7
    %v4685 = vsub.s32 %v494, %v4684
    %v4686 = vrot.slane %v4646, %v4685
    %v4687 = vsel %vm527, %v4662, %v4658
    %v4688 = vsel %vm529, %v4666, %v4687
    %v4689 = vsel %vm531, %v4670, %v4688
    %v4690 = vsel %vm533, %v4674, %v4689
    %v4691 = vsel %vm535, %v4678, %v4690
    %v4692 = vsel %vm537, %v4682, %v4691
    %v4693 = vsel %vm539, %v4686, %v4692
    %v4695 = vsel %vm542, %v4693, -inf
    %4696 = vmax.xlane.f32.xlu0 %v4695
    %v4697 = vpop.xlane.xlu0 %4696
    %v4699 = vlaneseq
    %v4700 = vshrl.u32 %v4699, 7
    %v4701 = vsub.s32 0, %v4700
    %v4702 = vrot.slane %v4697, %v4701
    %v4703 = vlaneseq
    %v4704 = vshrl.u32 %v4703, 7
    %v4705 = vsub.s32 1, %v4704
    %v4706 = vrot.slane %v4697, %v4705
    %v4707 = vlaneseq
    %v4708 = vshrl.u32 %v4707, 7
    %v4709 = vsub.s32 2, %v4708
    %v4710 = vrot.slane %v4697, %v4709
    %v4711 = vlaneseq
    %v4712 = vshrl.u32 %v4711, 7
    %v4713 = vsub.s32 3, %v4712
    %v4714 = vrot.slane %v4697, %v4713
    %v4715 = vlaneseq
    %v4716 = vshrl.u32 %v4715, 7
    %v4717 = vsub.s32 4, %v4716
    %v4718 = vrot.slane %v4697, %v4717
    %v4719 = vlaneseq
    %v4720 = vshrl.u32 %v4719, 7
    %v4721 = vsub.s32 5, %v4720
    %v4722 = vrot.slane %v4697, %v4721
    %v4723 = vlaneseq
    %v4724 = vshrl.u32 %v4723, 7
    %v4725 = vsub.s32 6, %v4724
    %v4726 = vrot.slane %v4697, %v4725
    %v4727 = vlaneseq
    %v4728 = vshrl.u32 %v4727, 7
    %v4729 = vsub.s32 7, %v4728
    %v4730 = vrot.slane %v4697, %v4729
    %v4739 = vsub.f32 %v4625, %v4702
    %v4740 = vsub.f32 %v4628, %v4706
    %v4741 = vsub.f32 %v4631, %v4710
    %v4742 = vsub.f32 %v4634, %v4714
    %v4743 = vsub.f32 %v4637, %v4718
    %v4744 = vsub.f32 %v4640, %v4722
    %v4745 = vsub.f32 %v4643, %v4726
    %v4746 = vsub.f32 %v4646, %v4730
    %v4747 = vmul.f32 %v4739, 1.442695
    %v4748 = vpow.pop %v4747
    %v4749 = vmul.f32 %v4740, 1.442695
    %v4750 = vpow.pop %v4749
    %v4751 = vmul.f32 %v4741, 1.442695
    %v4752 = vpow.pop %v4751
    %v4753 = vmul.f32 %v4742, 1.442695
    %v4754 = vpow.pop %v4753
    %v4755 = vmul.f32 %v4743, 1.442695
    %v4756 = vpow.pop %v4755
    %v4757 = vmul.f32 %v4744, 1.442695
    %v4758 = vpow.pop %v4757
    %v4759 = vmul.f32 %v4745, 1.442695
    %v4760 = vpow.pop %v4759
    %v4761 = vmul.f32 %v4746, 1.442695
    %v4762 = vpow.pop %v4761
    %4771 = vset.pattern.permute.xlu0 0
    %4772 = vperm.xlu0 %4771, %v4748
    %v4773 = vpop.permute.xlu0 %4772
    %4774 = vset.pattern.permute.xlu0 0
    %4775 = vperm.xlu0 %4774, %v4750
    %v4776 = vpop.permute.xlu0 %4775
    %4777 = vset.pattern.permute.xlu0 0
    %4778 = vperm.xlu0 %4777, %v4752
    %v4779 = vpop.permute.xlu0 %4778
    %4780 = vset.pattern.permute.xlu0 0
    %4781 = vperm.xlu0 %4780, %v4754
    %v4782 = vpop.permute.xlu0 %4781
    %4783 = vset.pattern.permute.xlu0 0
    %4784 = vperm.xlu0 %4783, %v4756
    %v4785 = vpop.permute.xlu0 %4784
    %4786 = vset.pattern.permute.xlu0 0
    %4787 = vperm.xlu0 %4786, %v4758
    %v4788 = vpop.permute.xlu0 %4787
    %4789 = vset.pattern.permute.xlu0 0
    %4790 = vperm.xlu0 %4789, %v4760
    %v4791 = vpop.permute.xlu0 %4790
    %4792 = vset.pattern.permute.xlu0 0
    %4793 = vperm.xlu0 %4792, %v4762
    %v4794 = vpop.permute.xlu0 %4793
    %v4795 = vlaneseq
    %v4796 = vshrl.u32 %v4795, 7
    %v4797 = vsub.s32 %v494, %v4796
    %v4798 = vrot.slane %v4773, %v4797
    %v4799 = vlaneseq
    %v4800 = vshrl.u32 %v4799, 7
    %v4801 = vsub.s32 %v494, %v4800
    %v4802 = vrot.slane %v4776, %v4801
    %v4803 = vlaneseq
    %v4804 = vshrl.u32 %v4803, 7
    %v4805 = vsub.s32 %v494, %v4804
    %v4806 = vrot.slane %v4779, %v4805
    %v4807 = vlaneseq
    %v4808 = vshrl.u32 %v4807, 7
    %v4809 = vsub.s32 %v494, %v4808
    %v4810 = vrot.slane %v4782, %v4809
    %v4811 = vlaneseq
    %v4812 = vshrl.u32 %v4811, 7
    %v4813 = vsub.s32 %v494, %v4812
    %v4814 = vrot.slane %v4785, %v4813
    %v4815 = vlaneseq
    %v4816 = vshrl.u32 %v4815, 7
    %v4817 = vsub.s32 %v494, %v4816
    %v4818 = vrot.slane %v4788, %v4817
    %v4819 = vlaneseq
    %v4820 = vshrl.u32 %v4819, 7
    %v4821 = vsub.s32 %v494, %v4820
    %v4822 = vrot.slane %v4791, %v4821
    %v4823 = vlaneseq
    %v4824 = vshrl.u32 %v4823, 7
    %v4825 = vsub.s32 %v494, %v4824
    %v4826 = vrot.slane %v4794, %v4825
    %v4827 = vsel %vm527, %v4802, %v4798
    %v4828 = vsel %vm529, %v4806, %v4827
    %v4829 = vsel %vm531, %v4810, %v4828
    %v4830 = vsel %vm533, %v4814, %v4829
    %v4831 = vsel %vm535, %v4818, %v4830
    %v4832 = vsel %vm537, %v4822, %v4831
    %v4833 = vsel %vm539, %v4826, %v4832
    %v4835 = vsel %vm542, %v4833, 0.0
    %4836 = vadd.xlane.f32.xlu0 %v4835
    %v4837 = vpop.xlane.xlu0 %4836
    %v4839 = vlaneseq
    %v4840 = vshrl.u32 %v4839, 7
    %v4841 = vsub.s32 0, %v4840
    %v4842 = vrot.slane %v4837, %v4841
    %v4843 = vlaneseq
    %v4844 = vshrl.u32 %v4843, 7
    %v4845 = vsub.s32 1, %v4844
    %v4846 = vrot.slane %v4837, %v4845
    %v4847 = vlaneseq
    %v4848 = vshrl.u32 %v4847, 7
    %v4849 = vsub.s32 2, %v4848
    %v4850 = vrot.slane %v4837, %v4849
    %v4851 = vlaneseq
    %v4852 = vshrl.u32 %v4851, 7
    %v4853 = vsub.s32 3, %v4852
    %v4854 = vrot.slane %v4837, %v4853
    %v4855 = vlaneseq
    %v4856 = vshrl.u32 %v4855, 7
    %v4857 = vsub.s32 4, %v4856
    %v4858 = vrot.slane %v4837, %v4857
    %v4859 = vlaneseq
    %v4860 = vshrl.u32 %v4859, 7
    %v4861 = vsub.s32 5, %v4860
    %v4862 = vrot.slane %v4837, %v4861
    %v4863 = vlaneseq
    %v4864 = vshrl.u32 %v4863, 7
    %v4865 = vsub.s32 6, %v4864
    %v4866 = vrot.slane %v4837, %v4865
    %v4867 = vlaneseq
    %v4868 = vshrl.u32 %v4867, 7
    %v4869 = vsub.s32 7, %v4868
    %v4870 = vrot.slane %v4837, %v4869
    %v4879 = vrcp.pop %v4842
    %v4880 = vmul.f32 %v4748, %v4879
    %v4881 = vrcp.pop %v4846
    %v4882 = vmul.f32 %v4750, %v4881
    %v4883 = vrcp.pop %v4850
    %v4884 = vmul.f32 %v4752, %v4883
    %v4885 = vrcp.pop %v4854
    %v4886 = vmul.f32 %v4754, %v4885
    %v4887 = vrcp.pop %v4858
    %v4888 = vmul.f32 %v4756, %v4887
    %v4889 = vrcp.pop %v4862
    %v4890 = vmul.f32 %v4758, %v4889
    %v4891 = vrcp.pop %v4866
    %v4892 = vmul.f32 %v4760, %v4891
    %v4893 = vrcp.pop %v4870
    %v4894 = vmul.f32 %v4762, %v4893
    %4896 = vset.pattern.permute.xlu0 0
    %4897 = vperm.xlu0 %4896, %v4880
    %v4898 = vpop.permute.xlu0 %4897
    %4901 = vset.pattern.permute.xlu0 0
    %4902 = vperm.xlu0 %4901, %v4882
    %v4903 = vpop.permute.xlu0 %4902
    %4906 = vset.pattern.permute.xlu0 0
    %4907 = vperm.xlu0 %4906, %v4884
    %v4908 = vpop.permute.xlu0 %4907
    %4911 = vset.pattern.permute.xlu0 0
    %4912 = vperm.xlu0 %4911, %v4886
    %v4913 = vpop.permute.xlu0 %4912
    %4916 = vset.pattern.permute.xlu0 0
    %4917 = vperm.xlu0 %4916, %v4888
    %v4918 = vpop.permute.xlu0 %4917
    %4921 = vset.pattern.permute.xlu0 0
    %4922 = vperm.xlu0 %4921, %v4890
    %v4923 = vpop.permute.xlu0 %4922
    %4926 = vset.pattern.permute.xlu0 0
    %4927 = vperm.xlu0 %4926, %v4892
    %v4928 = vpop.permute.xlu0 %4927
    %4931 = vset.pattern.permute.xlu0 0
    %4932 = vperm.xlu0 %4931, %v4894
    %v4933 = vpop.permute.xlu0 %4932
    %v4935 = vmul.f32 %v4898, %v107
    %v4936 = vmul.f32 %v4903, %v108
    %v4937 = vmul.f32 %v4908, %v109
    %v4938 = vmul.f32 %v4913, %v110
    %v4939 = vmul.f32 %v4918, %v111
    %v4940 = vmul.f32 %v4923, %v112
    %v4941 = vmul.f32 %v4928, %v113
    %v4942 = vmul.f32 %v4933, %v114
    %v4943 = vsel %vm130, %v4935, 0.0
    %v4944 = vrot.slane %v4943, 4
    %v4945 = vadd.f32 %v4943, %v4944
    %v4946 = vrot.slane %v4945, 2
    %v4947 = vadd.f32 %v4945, %v4946
    %v4948 = vrot.slane %v4947, 1
    %v4949 = vadd.f32 %v4947, %v4948
    %v4950 = vsel %vm130, %v4936, 0.0
    %v4951 = vrot.slane %v4950, 4
    %v4952 = vadd.f32 %v4950, %v4951
    %v4953 = vrot.slane %v4952, 2
    %v4954 = vadd.f32 %v4952, %v4953
    %v4955 = vrot.slane %v4954, 1
    %v4956 = vadd.f32 %v4954, %v4955
    %v4957 = vsel %vm130, %v4937, 0.0
    %v4958 = vrot.slane %v4957, 4
    %v4959 = vadd.f32 %v4957, %v4958
    %v4960 = vrot.slane %v4959, 2
    %v4961 = vadd.f32 %v4959, %v4960
    %v4962 = vrot.slane %v4961, 1
    %v4963 = vadd.f32 %v4961, %v4962
    %v4964 = vsel %vm130, %v4938, 0.0
    %v4965 = vrot.slane %v4964, 4
    %v4966 = vadd.f32 %v4964, %v4965
    %v4967 = vrot.slane %v4966, 2
    %v4968 = vadd.f32 %v4966, %v4967
    %v4969 = vrot.slane %v4968, 1
    %v4970 = vadd.f32 %v4968, %v4969
    %v4971 = vsel %vm130, %v4939, 0.0
    %v4972 = vrot.slane %v4971, 4
    %v4973 = vadd.f32 %v4971, %v4972
    %v4974 = vrot.slane %v4973, 2
    %v4975 = vadd.f32 %v4973, %v4974
    %v4976 = vrot.slane %v4975, 1
    %v4977 = vadd.f32 %v4975, %v4976
    %v4978 = vsel %vm130, %v4940, 0.0
    %v4979 = vrot.slane %v4978, 4
    %v4980 = vadd.f32 %v4978, %v4979
    %v4981 = vrot.slane %v4980, 2
    %v4982 = vadd.f32 %v4980, %v4981
    %v4983 = vrot.slane %v4982, 1
    %v4984 = vadd.f32 %v4982, %v4983
    %v4985 = vsel %vm130, %v4941, 0.0
    %v4986 = vrot.slane %v4985, 4
    %v4987 = vadd.f32 %v4985, %v4986
    %v4988 = vrot.slane %v4987, 2
    %v4989 = vadd.f32 %v4987, %v4988
    %v4990 = vrot.slane %v4989, 1
    %v4991 = vadd.f32 %v4989, %v4990
    %v4992 = vsel %vm130, %v4942, 0.0
    %v4993 = vrot.slane %v4992, 4
    %v4994 = vadd.f32 %v4992, %v4993
    %v4995 = vrot.slane %v4994, 2
    %v4996 = vadd.f32 %v4994, %v4995
    %v4997 = vrot.slane %v4996, 1
    %v4998 = vadd.f32 %v4996, %v4997
    %v5007 = vsel %vm527, %v4956, %v4949
    %v5008 = vsel %vm529, %v4963, %v5007
    %v5009 = vsel %vm531, %v4970, %v5008
    %v5010 = vsel %vm533, %v4977, %v5009
    %v5011 = vsel %vm535, %v4984, %v5010
    %v5012 = vsel %vm537, %v4991, %v5011
    %v5013 = vsel %vm539, %v4998, %v5012
    %v5014 = vsel %vm130, %v5013, 0
    %5016 = vmatprep.subr.mxu0 0.0
    %5017 = vmatpush1.msra.mxu0 0.0
    %5018 = vmatprep.subr.mxu0 0.0
    %5019 = vmatpush1.msra.mxu0 0.0
    %5020 = vmatprep.subr.mxu0 0.0
    %5021 = vmatpush1.msra.mxu0 0.0
    %5022 = vmatprep.subr.mxu0 0.0
    %5023 = vmatpush1.msra.mxu0 0.0
    %5024 = vmatprep.subr.mxu0 0.0
    %5025 = vmatpush1.msra.mxu0 0.0
    %5026 = vmatprep.subr.mxu0 0.0
    %5027 = vmatpush1.msra.mxu0 0.0
    %5028 = vmatprep.subr.mxu0 0.0
    %5029 = vmatpush1.msra.mxu0 0.0
    %5030 = vmatprep.subr.mxu0 0.0
    %5031 = vmatpush1.msra.mxu0 0.0
    %5032 = vmatprep.subr.mxu0 0.0
    %5033 = vmatpush1.msra.mxu0 0.0
    %5034 = vmatprep.subr.mxu0 0.0
    %5035 = vmatpush1.msra.mxu0 0.0
    %5036 = vmatprep.subr.mxu0 0.0
    %5037 = vmatpush1.msra.mxu0 0.0
    %5038 = vmatprep.subr.mxu0 0.0
    %5039 = vmatpush1.msra.mxu0 0.0
    %5040 = vmatprep.subr.mxu0 0.0
    %5041 = vmatpush1.msra.mxu0 %v122
    %5042 = vmatprep.subr.mxu0 0.0
    %5043 = vmatpush1.msra.mxu0 %v121
    %5044 = vmatprep.subr.mxu0 0.0
    %5045 = vmatpush1.msra.mxu0 %v120
    %5046 = vmatprep.subr.mxu0 0.0
    %5047 = vmatpush1.msra.mxu0 %v119
    %5048 = vmatprep.subr.mxu0 0.0
    %5049 = vmatpush2.msra.mxu0 0.0
    %5050 = vmatprep.subr.mxu0 0.0
    %5051 = vmatpush2.msra.mxu0 0.0
    %5052 = vmatprep.subr.mxu0 0.0
    %5053 = vmatpush2.msra.mxu0 0.0
    %5054 = vmatprep.subr.mxu0 0.0
    %5055 = vmatpush2.msra.mxu0 0.0
    %5056 = vmatprep.subr.mxu0 0.0
    %5057 = vmatpush2.msra.mxu0 0.0
    %5058 = vmatprep.subr.mxu0 0.0
    %5059 = vmatpush2.msra.mxu0 0.0
    %5060 = vmatprep.subr.mxu0 0.0
    %5061 = vmatpush2.msra.mxu0 0.0
    %5062 = vmatprep.subr.mxu0 0.0
    %5063 = vmatpush2.msra.mxu0 0.0
    %5064 = vmatprep.subr.mxu0 0.0
    %5065 = vmatpush2.msra.mxu0 0.0
    %5066 = vmatprep.subr.mxu0 0.0
    %5067 = vmatpush2.msra.mxu0 0.0
    %5068 = vmatprep.subr.mxu0 0.0
    %5069 = vmatpush2.msra.mxu0 0.0
    %5070 = vmatprep.subr.mxu0 0.0
    %5071 = vmatpush2.msra.mxu0 0.0
    %5072 = vmatprep.subr.mxu0 0.0
    %5073 = vmatpush2.msra.mxu0 0.0
    %5074 = vmatprep.subr.mxu0 0.0
    %5075 = vmatpush2.msra.mxu0 0.0
    %5076 = vmatprep.subr.mxu0 0.0
    %5077 = vmatpush2.msra.mxu0 0.0
    %5078 = vmatprep.subr.mxu0 0.0
    %5079 = vmatpush2.msra.mxu0 0.0
    %5080 = vmatprep.mubr.f32.mxu0 0.0
    %5081 = vmatmul.mubr.f32.gmra.mxu0 %v5014
    %v5082 = vpop.f32.mrf.mxu0
    %v5083 = vadd.f32 0.0, %v5082
    %v5084 = vpop.f32.mrf.mxu0
    %5085 = vdwg.mxu0
    %5086 = vrot.lane.b32.xlu0 %v4492, 32
    %v5087 = vpop.permute.xlu0 %5086
    %v5088 = vsel %vm130, %v5087, 0
    %5090 = vmatprep.subr.mxu0 0.0
    %5091 = vmatpush1.msra.mxu0 0.0
    %5092 = vmatprep.subr.mxu0 0.0
    %5093 = vmatpush1.msra.mxu0 0.0
    %5094 = vmatprep.subr.mxu0 0.0
    %5095 = vmatpush1.msra.mxu0 0.0
    %5096 = vmatprep.subr.mxu0 0.0
    %5097 = vmatpush1.msra.mxu0 0.0
    %5098 = vmatprep.subr.mxu0 0.0
    %5099 = vmatpush1.msra.mxu0 0.0
    %5100 = vmatprep.subr.mxu0 0.0
    %5101 = vmatpush1.msra.mxu0 0.0
    %5102 = vmatprep.subr.mxu0 0.0
    %5103 = vmatpush1.msra.mxu0 0.0
    %5104 = vmatprep.subr.mxu0 0.0
    %5105 = vmatpush1.msra.mxu0 0.0
    %5106 = vmatprep.subr.mxu0 0.0
    %5107 = vmatpush1.msra.mxu0 0.0
    %5108 = vmatprep.subr.mxu0 0.0
    %5109 = vmatpush1.msra.mxu0 0.0
    %5110 = vmatprep.subr.mxu0 0.0
    %5111 = vmatpush1.msra.mxu0 0.0
    %5112 = vmatprep.subr.mxu0 0.0
    %5113 = vmatpush1.msra.mxu0 0.0
    %5114 = vmatprep.subr.mxu0 0.0
    %5115 = vmatpush1.msra.mxu0 %v118
    %5116 = vmatprep.subr.mxu0 0.0
    %5117 = vmatpush1.msra.mxu0 %v117
    %5118 = vmatprep.subr.mxu0 0.0
    %5119 = vmatpush1.msra.mxu0 %v116
    %5120 = vmatprep.subr.mxu0 0.0
    %5121 = vmatpush1.msra.mxu0 %v115
    %5122 = vmatprep.subr.mxu0 0.0
    %5123 = vmatpush2.msra.mxu0 0.0
    %5124 = vmatprep.subr.mxu0 0.0
    %5125 = vmatpush2.msra.mxu0 0.0
    %5126 = vmatprep.subr.mxu0 0.0
    %5127 = vmatpush2.msra.mxu0 0.0
    %5128 = vmatprep.subr.mxu0 0.0
    %5129 = vmatpush2.msra.mxu0 0.0
    %5130 = vmatprep.subr.mxu0 0.0
    %5131 = vmatpush2.msra.mxu0 0.0
    %5132 = vmatprep.subr.mxu0 0.0
    %5133 = vmatpush2.msra.mxu0 0.0
    %5134 = vmatprep.subr.mxu0 0.0
    %5135 = vmatpush2.msra.mxu0 0.0
    %5136 = vmatprep.subr.mxu0 0.0
    %5137 = vmatpush2.msra.mxu0 0.0
    %5138 = vmatprep.subr.mxu0 0.0
    %5139 = vmatpush2.msra.mxu0 0.0
    %5140 = vmatprep.subr.mxu0 0.0
    %5141 = vmatpush2.msra.mxu0 0.0
    %5142 = vmatprep.subr.mxu0 0.0
    %5143 = vmatpush2.msra.mxu0 0.0
    %5144 = vmatprep.subr.mxu0 0.0
    %5145 = vmatpush2.msra.mxu0 0.0
    %5146 = vmatprep.subr.mxu0 0.0
    %5147 = vmatpush2.msra.mxu0 0.0
    %5148 = vmatprep.subr.mxu0 0.0
    %5149 = vmatpush2.msra.mxu0 0.0
    %5150 = vmatprep.subr.mxu0 0.0
    %5151 = vmatpush2.msra.mxu0 0.0
    %5152 = vmatprep.subr.mxu0 0.0
    %5153 = vmatpush2.msra.mxu0 0.0
    %5154 = vmatprep.mubr.f32.mxu0 0.0
    %5155 = vmatmul.mubr.f32.gmra.mxu0 %v5088
    %v5156 = vpop.f32.mrf.mxu0
    %v5157 = vadd.f32 %v5083, %v5156
    %v5158 = vpop.f32.mrf.mxu0
    %5159 = vdwg.mxu0
    %v5160 = vadd.f32 %v5157, %v128
    %v5161 = vxor.u32 %v5160, 2147483648
    %v5162 = vmul.f32 %v5161, 1.442695
    %v5163 = vpow.pop %v5162
    %v5164 = vadd.f32 %v5163, 1.0
    %v5165 = vrcp.pop %v5164
    %v5166 = vmul.f32 1.0, %v5165
    %v5167 = vtanh.pop %v5160
    %v5168 = vmul.f32 %v5166, %v4486
    %5170 = vrot.lane.b32.xlu0 %v5167, 64
    %v5171 = vpop.permute.xlu0 %5170
    %v5173 = vmul.f32 %v5166, %v5171
    %5175 = vrot.lane.b32.xlu0 %v5173, 32
    %v5176 = vpop.permute.xlu0 %5175
    %v5178 = vadd.f32 %v5168, %v5176
    %v5179 = vtanh.pop %v5178
    %5181 = vrot.lane.b32.xlu0 %v5179, 64
    %v5182 = vpop.permute.xlu0 %5181
    %v5184 = vmul.f32 %v5166, %v5182
    %v5186 = vcombine.high %v5184, %v5184
    %v5188 = vunpack.c.l.s4 1966171168
    %v5189 = vunpack.c.0.s8 %v5188
    %v5190 = vlaneseq
    %v5191 = vshrl.u32 %v5190, 7
    %v5192 = vsub.s32 %v5189, %v5191
    %v5193 = vrot.slane %v5184, %v5192
    %v5195 = vunpack.c.l.s4 1966171168
    %v5196 = vunpack.c.0.s8 %v5195
    %v5197 = vlaneseq
    %v5198 = vshrl.u32 %v5197, 7
    %v5199 = vsub.s32 %v5196, %v5198
    %v5200 = vrot.slane %v5186, %v5199
    %v5201 = vcombine.high %v5193, %v5193
    %v5202 = vcombine.high %v5200, %v5200
    %v5204 = vunpack.c.l.s4 1966171168
    %v5205 = vunpack.c.0.s8 %v5204
    %v5206 = vlaneseq
    %v5207 = vshrl.u32 %v5206, 7
    %v5208 = vsub.s32 %v5205, %v5207
    %v5209 = vrot.slane %v5193, %v5208
    %v5211 = vunpack.c.l.s4 1966171168
    %v5212 = vunpack.c.0.s8 %v5211
    %v5213 = vlaneseq
    %v5214 = vshrl.u32 %v5213, 7
    %v5215 = vsub.s32 %v5212, %v5214
    %v5216 = vrot.slane %v5200, %v5215
    %v5218 = vunpack.c.l.s4 1966171168
    %v5219 = vunpack.c.0.s8 %v5218
    %v5220 = vlaneseq
    %v5221 = vshrl.u32 %v5220, 7
    %v5222 = vsub.s32 %v5219, %v5221
    %v5223 = vrot.slane %v5201, %v5222
    %v5225 = vunpack.c.l.s4 1966171168
    %v5226 = vunpack.c.0.s8 %v5225
    %v5227 = vlaneseq
    %v5228 = vshrl.u32 %v5227, 7
    %v5229 = vsub.s32 %v5226, %v5228
    %v5230 = vrot.slane %v5202, %v5229
    %v5231 = vcombine.high %v5209, %v5209
    %v5232 = vcombine.high %v5216, %v5216
    %v5233 = vcombine.high %v5223, %v5223
    %v5234 = vcombine.high %v5230, %v5230
    %v5235 = vlaneseq
    %v5236 = vshrl.u32 %v5235, 7
    %v5237 = vsub.s32 0, %v5236
    %v5238 = vrot.slane %v5209, %v5237
    %v5239 = vlaneseq
    %v5240 = vshrl.u32 %v5239, 7
    %v5241 = vsub.s32 0, %v5240
    %v5242 = vrot.slane %v5223, %v5241
    %v5243 = vlaneseq
    %v5244 = vshrl.u32 %v5243, 7
    %v5245 = vsub.s32 0, %v5244
    %v5246 = vrot.slane %v5231, %v5245
    %v5247 = vlaneseq
    %v5248 = vshrl.u32 %v5247, 7
    %v5249 = vsub.s32 0, %v5248
    %v5250 = vrot.slane %v5233, %v5249
    %v5251 = vlaneseq
    %v5252 = vshrl.u32 %v5251, 7
    %v5253 = vsub.s32 0, %v5252
    %v5254 = vrot.slane %v5216, %v5253
    %v5255 = vlaneseq
    %v5256 = vshrl.u32 %v5255, 7
    %v5257 = vsub.s32 0, %v5256
    %v5258 = vrot.slane %v5230, %v5257
    %v5259 = vlaneseq
    %v5260 = vshrl.u32 %v5259, 7
    %v5261 = vsub.s32 0, %v5260
    %v5262 = vrot.slane %v5232, %v5261
    %v5263 = vlaneseq
    %v5264 = vshrl.u32 %v5263, 7
    %v5265 = vsub.s32 0, %v5264
    %v5266 = vrot.slane %v5234, %v5265
    %v5275 = vmul.f32 %v5238, %v398
    %v5276 = vmul.f32 %v5242, %v400
    %v5277 = vmul.f32 %v5246, %v402
    %v5278 = vmul.f32 %v5250, %v404
    %v5279 = vmul.f32 %v5254, %v406
    %v5280 = vmul.f32 %v5258, %v408
    %v5281 = vmul.f32 %v5262, %v410
    %v5282 = vmul.f32 %v5266, %v412
    %5291 = vrot.lane.b32.xlu0 %v5275, 32
    %v5292 = vpop.permute.xlu0 %5291
    %5293 = vrot.lane.b32.xlu0 %v5276, 32
    %v5294 = vpop.permute.xlu0 %5293
    %5295 = vrot.lane.b32.xlu0 %v5277, 32
    %v5296 = vpop.permute.xlu0 %5295
    %5297 = vrot.lane.b32.xlu0 %v5278, 32
    %v5298 = vpop.permute.xlu0 %5297
    %5299 = vrot.lane.b32.xlu0 %v5279, 32
    %v5300 = vpop.permute.xlu0 %5299
    %5301 = vrot.lane.b32.xlu0 %v5280, 32
    %v5302 = vpop.permute.xlu0 %5301
    %5303 = vrot.lane.b32.xlu0 %v5281, 32
    %v5304 = vpop.permute.xlu0 %5303
    %5305 = vrot.lane.b32.xlu0 %v5282, 32
    %v5306 = vpop.permute.xlu0 %5305
    %v5315 = vsel %vm130, %v5292, 0.0
    %5316 = vadd.xlane.f32.xlu0 %v5315
    %v5317 = vpop.xlane.xlu0 %5316
    %v5318 = vsel %vm130, %v5294, 0.0
    %5319 = vadd.xlane.f32.xlu0 %v5318
    %v5320 = vpop.xlane.xlu0 %5319
    %v5321 = vsel %vm130, %v5296, 0.0
    %5322 = vadd.xlane.f32.xlu0 %v5321
    %v5323 = vpop.xlane.xlu0 %5322
    %v5324 = vsel %vm130, %v5298, 0.0
    %5325 = vadd.xlane.f32.xlu0 %v5324
    %v5326 = vpop.xlane.xlu0 %5325
    %v5327 = vsel %vm130, %v5300, 0.0
    %5328 = vadd.xlane.f32.xlu0 %v5327
    %v5329 = vpop.xlane.xlu0 %5328
    %v5330 = vsel %vm130, %v5302, 0.0
    %5331 = vadd.xlane.f32.xlu0 %v5330
    %v5332 = vpop.xlane.xlu0 %5331
    %v5333 = vsel %vm130, %v5304, 0.0
    %5334 = vadd.xlane.f32.xlu0 %v5333
    %v5335 = vpop.xlane.xlu0 %5334
    %v5336 = vsel %vm130, %v5306, 0.0
    %5337 = vadd.xlane.f32.xlu0 %v5336
    %v5338 = vpop.xlane.xlu0 %5337
    %v5347 = vlaneseq
    %v5348 = vshrl.u32 %v5347, 7
    %v5349 = vsub.s32 %v494, %v5348
    %v5350 = vrot.slane %v5317, %v5349
    %v5351 = vlaneseq
    %v5352 = vshrl.u32 %v5351, 7
    %v5353 = vsub.s32 %v494, %v5352
    %v5354 = vrot.slane %v5320, %v5353
    %v5355 = vlaneseq
    %v5356 = vshrl.u32 %v5355, 7
    %v5357 = vsub.s32 %v494, %v5356
    %v5358 = vrot.slane %v5323, %v5357
    %v5359 = vlaneseq
    %v5360 = vshrl.u32 %v5359, 7
    %v5361 = vsub.s32 %v494, %v5360
    %v5362 = vrot.slane %v5326, %v5361
    %v5363 = vlaneseq
    %v5364 = vshrl.u32 %v5363, 7
    %v5365 = vsub.s32 %v494, %v5364
    %v5366 = vrot.slane %v5329, %v5365
    %v5367 = vlaneseq
    %v5368 = vshrl.u32 %v5367, 7
    %v5369 = vsub.s32 %v494, %v5368
    %v5370 = vrot.slane %v5332, %v5369
    %v5371 = vlaneseq
    %v5372 = vshrl.u32 %v5371, 7
    %v5373 = vsub.s32 %v494, %v5372
    %v5374 = vrot.slane %v5335, %v5373
    %v5375 = vlaneseq
    %v5376 = vshrl.u32 %v5375, 7
    %v5377 = vsub.s32 %v494, %v5376
    %v5378 = vrot.slane %v5338, %v5377
    %v5379 = vsel %vm527, %v5354, %v5350
    %v5380 = vsel %vm529, %v5358, %v5379
    %v5381 = vsel %vm531, %v5362, %v5380
    %v5382 = vsel %vm533, %v5366, %v5381
    %v5383 = vsel %vm535, %v5370, %v5382
    %v5384 = vsel %vm537, %v5374, %v5383
    %v5385 = vsel %vm539, %v5378, %v5384
    %v5387 = vsel %vm542, %v5385, -inf
    %5388 = vmax.xlane.f32.xlu0 %v5387
    %v5389 = vpop.xlane.xlu0 %5388
    %v5391 = vlaneseq
    %v5392 = vshrl.u32 %v5391, 7
    %v5393 = vsub.s32 0, %v5392
    %v5394 = vrot.slane %v5389, %v5393
    %v5395 = vlaneseq
    %v5396 = vshrl.u32 %v5395, 7
    %v5397 = vsub.s32 1, %v5396
    %v5398 = vrot.slane %v5389, %v5397
    %v5399 = vlaneseq
    %v5400 = vshrl.u32 %v5399, 7
    %v5401 = vsub.s32 2, %v5400
    %v5402 = vrot.slane %v5389, %v5401
    %v5403 = vlaneseq
    %v5404 = vshrl.u32 %v5403, 7
    %v5405 = vsub.s32 3, %v5404
    %v5406 = vrot.slane %v5389, %v5405
    %v5407 = vlaneseq
    %v5408 = vshrl.u32 %v5407, 7
    %v5409 = vsub.s32 4, %v5408
    %v5410 = vrot.slane %v5389, %v5409
    %v5411 = vlaneseq
    %v5412 = vshrl.u32 %v5411, 7
    %v5413 = vsub.s32 5, %v5412
    %v5414 = vrot.slane %v5389, %v5413
    %v5415 = vlaneseq
    %v5416 = vshrl.u32 %v5415, 7
    %v5417 = vsub.s32 6, %v5416
    %v5418 = vrot.slane %v5389, %v5417
    %v5419 = vlaneseq
    %v5420 = vshrl.u32 %v5419, 7
    %v5421 = vsub.s32 7, %v5420
    %v5422 = vrot.slane %v5389, %v5421
    %v5431 = vsub.f32 %v5317, %v5394
    %v5432 = vsub.f32 %v5320, %v5398
    %v5433 = vsub.f32 %v5323, %v5402
    %v5434 = vsub.f32 %v5326, %v5406
    %v5435 = vsub.f32 %v5329, %v5410
    %v5436 = vsub.f32 %v5332, %v5414
    %v5437 = vsub.f32 %v5335, %v5418
    %v5438 = vsub.f32 %v5338, %v5422
    %v5439 = vmul.f32 %v5431, 1.442695
    %v5440 = vpow.pop %v5439
    %v5441 = vmul.f32 %v5432, 1.442695
    %v5442 = vpow.pop %v5441
    %v5443 = vmul.f32 %v5433, 1.442695
    %v5444 = vpow.pop %v5443
    %v5445 = vmul.f32 %v5434, 1.442695
    %v5446 = vpow.pop %v5445
    %v5447 = vmul.f32 %v5435, 1.442695
    %v5448 = vpow.pop %v5447
    %v5449 = vmul.f32 %v5436, 1.442695
    %v5450 = vpow.pop %v5449
    %v5451 = vmul.f32 %v5437, 1.442695
    %v5452 = vpow.pop %v5451
    %v5453 = vmul.f32 %v5438, 1.442695
    %v5454 = vpow.pop %v5453
    %5463 = vset.pattern.permute.xlu0 0
    %5464 = vperm.xlu0 %5463, %v5440
    %v5465 = vpop.permute.xlu0 %5464
    %5466 = vset.pattern.permute.xlu0 0
    %5467 = vperm.xlu0 %5466, %v5442
    %v5468 = vpop.permute.xlu0 %5467
    %5469 = vset.pattern.permute.xlu0 0
    %5470 = vperm.xlu0 %5469, %v5444
    %v5471 = vpop.permute.xlu0 %5470
    %5472 = vset.pattern.permute.xlu0 0
    %5473 = vperm.xlu0 %5472, %v5446
    %v5474 = vpop.permute.xlu0 %5473
    %5475 = vset.pattern.permute.xlu0 0
    %5476 = vperm.xlu0 %5475, %v5448
    %v5477 = vpop.permute.xlu0 %5476
    %5478 = vset.pattern.permute.xlu0 0
    %5479 = vperm.xlu0 %5478, %v5450
    %v5480 = vpop.permute.xlu0 %5479
    %5481 = vset.pattern.permute.xlu0 0
    %5482 = vperm.xlu0 %5481, %v5452
    %v5483 = vpop.permute.xlu0 %5482
    %5484 = vset.pattern.permute.xlu0 0
    %5485 = vperm.xlu0 %5484, %v5454
    %v5486 = vpop.permute.xlu0 %5485
    %v5487 = vlaneseq
    %v5488 = vshrl.u32 %v5487, 7
    %v5489 = vsub.s32 %v494, %v5488
    %v5490 = vrot.slane %v5465, %v5489
    %v5491 = vlaneseq
    %v5492 = vshrl.u32 %v5491, 7
    %v5493 = vsub.s32 %v494, %v5492
    %v5494 = vrot.slane %v5468, %v5493
    %v5495 = vlaneseq
    %v5496 = vshrl.u32 %v5495, 7
    %v5497 = vsub.s32 %v494, %v5496
    %v5498 = vrot.slane %v5471, %v5497
    %v5499 = vlaneseq
    %v5500 = vshrl.u32 %v5499, 7
    %v5501 = vsub.s32 %v494, %v5500
    %v5502 = vrot.slane %v5474, %v5501
    %v5503 = vlaneseq
    %v5504 = vshrl.u32 %v5503, 7
    %v5505 = vsub.s32 %v494, %v5504
    %v5506 = vrot.slane %v5477, %v5505
    %v5507 = vlaneseq
    %v5508 = vshrl.u32 %v5507, 7
    %v5509 = vsub.s32 %v494, %v5508
    %v5510 = vrot.slane %v5480, %v5509
    %v5511 = vlaneseq
    %v5512 = vshrl.u32 %v5511, 7
    %v5513 = vsub.s32 %v494, %v5512
    %v5514 = vrot.slane %v5483, %v5513
    %v5515 = vlaneseq
    %v5516 = vshrl.u32 %v5515, 7
    %v5517 = vsub.s32 %v494, %v5516
    %v5518 = vrot.slane %v5486, %v5517
    %v5519 = vsel %vm527, %v5494, %v5490
    %v5520 = vsel %vm529, %v5498, %v5519
    %v5521 = vsel %vm531, %v5502, %v5520
    %v5522 = vsel %vm533, %v5506, %v5521
    %v5523 = vsel %vm535, %v5510, %v5522
    %v5524 = vsel %vm537, %v5514, %v5523
    %v5525 = vsel %vm539, %v5518, %v5524
    %v5527 = vsel %vm542, %v5525, 0.0
    %5528 = vadd.xlane.f32.xlu0 %v5527
    %v5529 = vpop.xlane.xlu0 %5528
    %v5531 = vlaneseq
    %v5532 = vshrl.u32 %v5531, 7
    %v5533 = vsub.s32 0, %v5532
    %v5534 = vrot.slane %v5529, %v5533
    %v5535 = vlaneseq
    %v5536 = vshrl.u32 %v5535, 7
    %v5537 = vsub.s32 1, %v5536
    %v5538 = vrot.slane %v5529, %v5537
    %v5539 = vlaneseq
    %v5540 = vshrl.u32 %v5539, 7
    %v5541 = vsub.s32 2, %v5540
    %v5542 = vrot.slane %v5529, %v5541
    %v5543 = vlaneseq
    %v5544 = vshrl.u32 %v5543, 7
    %v5545 = vsub.s32 3, %v5544
    %v5546 = vrot.slane %v5529, %v5545
    %v5547 = vlaneseq
    %v5548 = vshrl.u32 %v5547, 7
    %v5549 = vsub.s32 4, %v5548
    %v5550 = vrot.slane %v5529, %v5549
    %v5551 = vlaneseq
    %v5552 = vshrl.u32 %v5551, 7
    %v5553 = vsub.s32 5, %v5552
    %v5554 = vrot.slane %v5529, %v5553
    %v5555 = vlaneseq
    %v5556 = vshrl.u32 %v5555, 7
    %v5557 = vsub.s32 6, %v5556
    %v5558 = vrot.slane %v5529, %v5557
    %v5559 = vlaneseq
    %v5560 = vshrl.u32 %v5559, 7
    %v5561 = vsub.s32 7, %v5560
    %v5562 = vrot.slane %v5529, %v5561
    %v5571 = vrcp.pop %v5534
    %v5572 = vmul.f32 %v5440, %v5571
    %v5573 = vrcp.pop %v5538
    %v5574 = vmul.f32 %v5442, %v5573
    %v5575 = vrcp.pop %v5542
    %v5576 = vmul.f32 %v5444, %v5575
    %v5577 = vrcp.pop %v5546
    %v5578 = vmul.f32 %v5446, %v5577
    %v5579 = vrcp.pop %v5550
    %v5580 = vmul.f32 %v5448, %v5579
    %v5581 = vrcp.pop %v5554
    %v5582 = vmul.f32 %v5450, %v5581
    %v5583 = vrcp.pop %v5558
    %v5584 = vmul.f32 %v5452, %v5583
    %v5585 = vrcp.pop %v5562
    %v5586 = vmul.f32 %v5454, %v5585
    %5588 = vset.pattern.permute.xlu0 0
    %5589 = vperm.xlu0 %5588, %v5572
    %v5590 = vpop.permute.xlu0 %5589
    %5593 = vset.pattern.permute.xlu0 0
    %5594 = vperm.xlu0 %5593, %v5574
    %v5595 = vpop.permute.xlu0 %5594
    %5598 = vset.pattern.permute.xlu0 0
    %5599 = vperm.xlu0 %5598, %v5576
    %v5600 = vpop.permute.xlu0 %5599
    %5603 = vset.pattern.permute.xlu0 0
    %5604 = vperm.xlu0 %5603, %v5578
    %v5605 = vpop.permute.xlu0 %5604
    %5608 = vset.pattern.permute.xlu0 0
    %5609 = vperm.xlu0 %5608, %v5580
    %v5610 = vpop.permute.xlu0 %5609
    %5613 = vset.pattern.permute.xlu0 0
    %5614 = vperm.xlu0 %5613, %v5582
    %v5615 = vpop.permute.xlu0 %5614
    %5618 = vset.pattern.permute.xlu0 0
    %5619 = vperm.xlu0 %5618, %v5584
    %v5620 = vpop.permute.xlu0 %5619
    %5623 = vset.pattern.permute.xlu0 0
    %5624 = vperm.xlu0 %5623, %v5586
    %v5625 = vpop.permute.xlu0 %5624
    %v5627 = vmul.f32 %v5590, %v107
    %v5628 = vmul.f32 %v5595, %v108
    %v5629 = vmul.f32 %v5600, %v109
    %v5630 = vmul.f32 %v5605, %v110
    %v5631 = vmul.f32 %v5610, %v111
    %v5632 = vmul.f32 %v5615, %v112
    %v5633 = vmul.f32 %v5620, %v113
    %v5634 = vmul.f32 %v5625, %v114
    %v5635 = vsel %vm130, %v5627, 0.0
    %v5636 = vrot.slane %v5635, 4
    %v5637 = vadd.f32 %v5635, %v5636
    %v5638 = vrot.slane %v5637, 2
    %v5639 = vadd.f32 %v5637, %v5638
    %v5640 = vrot.slane %v5639, 1
    %v5641 = vadd.f32 %v5639, %v5640
    %v5642 = vsel %vm130, %v5628, 0.0
    %v5643 = vrot.slane %v5642, 4
    %v5644 = vadd.f32 %v5642, %v5643
    %v5645 = vrot.slane %v5644, 2
    %v5646 = vadd.f32 %v5644, %v5645
    %v5647 = vrot.slane %v5646, 1
    %v5648 = vadd.f32 %v5646, %v5647
    %v5649 = vsel %vm130, %v5629, 0.0
    %v5650 = vrot.slane %v5649, 4
    %v5651 = vadd.f32 %v5649, %v5650
    %v5652 = vrot.slane %v5651, 2
    %v5653 = vadd.f32 %v5651, %v5652
    %v5654 = vrot.slane %v5653, 1
    %v5655 = vadd.f32 %v5653, %v5654
    %v5656 = vsel %vm130, %v5630, 0.0
    %v5657 = vrot.slane %v5656, 4
    %v5658 = vadd.f32 %v5656, %v5657
    %v5659 = vrot.slane %v5658, 2
    %v5660 = vadd.f32 %v5658, %v5659
    %v5661 = vrot.slane %v5660, 1
    %v5662 = vadd.f32 %v5660, %v5661
    %v5663 = vsel %vm130, %v5631, 0.0
    %v5664 = vrot.slane %v5663, 4
    %v5665 = vadd.f32 %v5663, %v5664
    %v5666 = vrot.slane %v5665, 2
    %v5667 = vadd.f32 %v5665, %v5666
    %v5668 = vrot.slane %v5667, 1
    %v5669 = vadd.f32 %v5667, %v5668
    %v5670 = vsel %vm130, %v5632, 0.0
    %v5671 = vrot.slane %v5670, 4
    %v5672 = vadd.f32 %v5670, %v5671
    %v5673 = vrot.slane %v5672, 2
    %v5674 = vadd.f32 %v5672, %v5673
    %v5675 = vrot.slane %v5674, 1
    %v5676 = vadd.f32 %v5674, %v5675
    %v5677 = vsel %vm130, %v5633, 0.0
    %v5678 = vrot.slane %v5677, 4
    %v5679 = vadd.f32 %v5677, %v5678
    %v5680 = vrot.slane %v5679, 2
    %v5681 = vadd.f32 %v5679, %v5680
    %v5682 = vrot.slane %v5681, 1
    %v5683 = vadd.f32 %v5681, %v5682
    %v5684 = vsel %vm130, %v5634, 0.0
    %v5685 = vrot.slane %v5684, 4
    %v5686 = vadd.f32 %v5684, %v5685
    %v5687 = vrot.slane %v5686, 2
    %v5688 = vadd.f32 %v5686, %v5687
    %v5689 = vrot.slane %v5688, 1
    %v5690 = vadd.f32 %v5688, %v5689
    %v5691 = vld [vmem:[#allocation7] sm:$0xff]
    %v5692 = vld [vmem:[#allocation7 + $0x8] sm:$0xff]
    %v5693 = vld [vmem:[#allocation7 + $0x10] sm:$0xff]
    %v5694 = vld [vmem:[#allocation7 + $0x18] sm:$0xff]
    %v5695 = vld [vmem:[#allocation8] sm:$0xff]
    %v5696 = vld [vmem:[#allocation8 + $0x8] sm:$0xff]
    %v5697 = vld [vmem:[#allocation8 + $0x10] sm:$0xff]
    %v5698 = vld [vmem:[#allocation8 + $0x18] sm:$0xff]
    %v5707 = vsel %vm527, %v5648, %v5641
    %v5708 = vsel %vm529, %v5655, %v5707
    %v5709 = vsel %vm531, %v5662, %v5708
    %v5710 = vsel %vm533, %v5669, %v5709
    %v5711 = vsel %vm535, %v5676, %v5710
    %v5712 = vsel %vm537, %v5683, %v5711
    %v5713 = vsel %vm539, %v5690, %v5712
    %v5714 = vsel %vm130, %v5713, 0
    %5716 = vmatprep.subr.mxu0 0.0
    %5717 = vmatpush1.msra.mxu0 0.0
    %5718 = vmatprep.subr.mxu0 0.0
    %5719 = vmatpush1.msra.mxu0 0.0
    %5720 = vmatprep.subr.mxu0 0.0
    %5721 = vmatpush1.msra.mxu0 0.0
    %5722 = vmatprep.subr.mxu0 0.0
    %5723 = vmatpush1.msra.mxu0 0.0
    %5724 = vmatprep.subr.mxu0 0.0
    %5725 = vmatpush1.msra.mxu0 0.0
    %5726 = vmatprep.subr.mxu0 0.0
    %5727 = vmatpush1.msra.mxu0 0.0
    %5728 = vmatprep.subr.mxu0 0.0
    %5729 = vmatpush1.msra.mxu0 0.0
    %5730 = vmatprep.subr.mxu0 0.0
    %5731 = vmatpush1.msra.mxu0 0.0
    %5732 = vmatprep.subr.mxu0 0.0
    %5733 = vmatpush1.msra.mxu0 0.0
    %5734 = vmatprep.subr.mxu0 0.0
    %5735 = vmatpush1.msra.mxu0 0.0
    %5736 = vmatprep.subr.mxu0 0.0
    %5737 = vmatpush1.msra.mxu0 0.0
    %5738 = vmatprep.subr.mxu0 0.0
    %5739 = vmatpush1.msra.mxu0 0.0
    %5740 = vmatprep.subr.mxu0 0.0
    %5741 = vmatpush1.msra.mxu0 %v5698
    %5742 = vmatprep.subr.mxu0 0.0
    %5743 = vmatpush1.msra.mxu0 %v5697
    %5744 = vmatprep.subr.mxu0 0.0
    %5745 = vmatpush1.msra.mxu0 %v5696
    %5746 = vmatprep.subr.mxu0 0.0
    %5747 = vmatpush1.msra.mxu0 %v5695
    %5748 = vmatprep.subr.mxu0 0.0
    %5749 = vmatpush2.msra.mxu0 0.0
    %5750 = vmatprep.subr.mxu0 0.0
    %5751 = vmatpush2.msra.mxu0 0.0
    %5752 = vmatprep.subr.mxu0 0.0
    %5753 = vmatpush2.msra.mxu0 0.0
    %5754 = vmatprep.subr.mxu0 0.0
    %5755 = vmatpush2.msra.mxu0 0.0
    %5756 = vmatprep.subr.mxu0 0.0
    %5757 = vmatpush2.msra.mxu0 0.0
    %5758 = vmatprep.subr.mxu0 0.0
    %5759 = vmatpush2.msra.mxu0 0.0
    %5760 = vmatprep.subr.mxu0 0.0
    %5761 = vmatpush2.msra.mxu0 0.0
    %5762 = vmatprep.subr.mxu0 0.0
    %5763 = vmatpush2.msra.mxu0 0.0
    %5764 = vmatprep.subr.mxu0 0.0
    %5765 = vmatpush2.msra.mxu0 0.0
    %5766 = vmatprep.subr.mxu0 0.0
    %5767 = vmatpush2.msra.mxu0 0.0
    %5768 = vmatprep.subr.mxu0 0.0
    %5769 = vmatpush2.msra.mxu0 0.0
    %5770 = vmatprep.subr.mxu0 0.0
    %5771 = vmatpush2.msra.mxu0 0.0
    %5772 = vmatprep.subr.mxu0 0.0
    %5773 = vmatpush2.msra.mxu0 0.0
    %5774 = vmatprep.subr.mxu0 0.0
    %5775 = vmatpush2.msra.mxu0 0.0
    %5776 = vmatprep.subr.mxu0 0.0
    %5777 = vmatpush2.msra.mxu0 0.0
    %5778 = vmatprep.subr.mxu0 0.0
    %5779 = vmatpush2.msra.mxu0 0.0
    %5780 = vmatprep.mubr.f32.mxu0 0.0
    %5781 = vmatmul.mubr.f32.gmra.mxu0 %v5714
    %v5782 = vpop.f32.mrf.mxu0
    %v5783 = vadd.f32 0.0, %v5782
    %v5784 = vpop.f32.mrf.mxu0
    %5785 = vdwg.mxu0
    %5786 = vrot.lane.b32.xlu0 %v5184, 32
    %v5787 = vpop.permute.xlu0 %5786
    %v5788 = vsel %vm130, %v5787, 0
    %5790 = vmatprep.subr.mxu0 0.0
    %5791 = vmatpush1.msra.mxu0 0.0
    %5792 = vmatprep.subr.mxu0 0.0
    %5793 = vmatpush1.msra.mxu0 0.0
    %5794 = vmatprep.subr.mxu0 0.0
    %5795 = vmatpush1.msra.mxu0 0.0
    %5796 = vmatprep.subr.mxu0 0.0
    %5797 = vmatpush1.msra.mxu0 0.0
    %5798 = vmatprep.subr.mxu0 0.0
    %5799 = vmatpush1.msra.mxu0 0.0
    %5800 = vmatprep.subr.mxu0 0.0
    %5801 = vmatpush1.msra.mxu0 0.0
    %5802 = vmatprep.subr.mxu0 0.0
    %5803 = vmatpush1.msra.mxu0 0.0
    %5804 = vmatprep.subr.mxu0 0.0
    %5805 = vmatpush1.msra.mxu0 0.0
    %5806 = vmatprep.subr.mxu0 0.0
    %5807 = vmatpush1.msra.mxu0 0.0
    %5808 = vmatprep.subr.mxu0 0.0
    %5809 = vmatpush1.msra.mxu0 0.0
    %5810 = vmatprep.subr.mxu0 0.0
    %5811 = vmatpush1.msra.mxu0 0.0
    %5812 = vmatprep.subr.mxu0 0.0
    %5813 = vmatpush1.msra.mxu0 0.0
    %5814 = vmatprep.subr.mxu0 0.0
    %5815 = vmatpush1.msra.mxu0 %v5694
    %5816 = vmatprep.subr.mxu0 0.0
    %5817 = vmatpush1.msra.mxu0 %v5693
    %5818 = vmatprep.subr.mxu0 0.0
    %5819 = vmatpush1.msra.mxu0 %v5692
    %5820 = vmatprep.subr.mxu0 0.0
    %5821 = vmatpush1.msra.mxu0 %v5691
    %5822 = vmatprep.subr.mxu0 0.0
    %5823 = vmatpush2.msra.mxu0 0.0
    %5824 = vmatprep.subr.mxu0 0.0
    %5825 = vmatpush2.msra.mxu0 0.0
    %5826 = vmatprep.subr.mxu0 0.0
    %5827 = vmatpush2.msra.mxu0 0.0
    %5828 = vmatprep.subr.mxu0 0.0
    %5829 = vmatpush2.msra.mxu0 0.0
    %5830 = vmatprep.subr.mxu0 0.0
    %5831 = vmatpush2.msra.mxu0 0.0
    %5832 = vmatprep.subr.mxu0 0.0
    %5833 = vmatpush2.msra.mxu0 0.0
    %5834 = vmatprep.subr.mxu0 0.0
    %5835 = vmatpush2.msra.mxu0 0.0
    %5836 = vmatprep.subr.mxu0 0.0
    %5837 = vmatpush2.msra.mxu0 0.0
    %5838 = vmatprep.subr.mxu0 0.0
    %5839 = vmatpush2.msra.mxu0 0.0
    %5840 = vmatprep.subr.mxu0 0.0
    %5841 = vmatpush2.msra.mxu0 0.0
    %5842 = vmatprep.subr.mxu0 0.0
    %5843 = vmatpush2.msra.mxu0 0.0
    %5844 = vmatprep.subr.mxu0 0.0
    %5845 = vmatpush2.msra.mxu0 0.0
    %5846 = vmatprep.subr.mxu0 0.0
    %5847 = vmatpush2.msra.mxu0 0.0
    %5848 = vmatprep.subr.mxu0 0.0
    %5849 = vmatpush2.msra.mxu0 0.0
    %5850 = vmatprep.subr.mxu0 0.0
    %5851 = vmatpush2.msra.mxu0 0.0
    %5852 = vmatprep.subr.mxu0 0.0
    %5853 = vmatpush2.msra.mxu0 0.0
    %5854 = vmatprep.mubr.f32.mxu0 0.0
    %5855 = vmatmul.mubr.f32.gmra.mxu0 %v5788
    %v5856 = vpop.f32.mrf.mxu0
    %v5857 = vadd.f32 %v5783, %v5856
    %v5858 = vpop.f32.mrf.mxu0
    %5859 = vdwg.mxu0
    %v5860 = vld [vmem:[%s6] sm:$0x1]
    %v5862 = vlaneseq
    %v5863 = vshrl.u32 %v5862, 7
    %v5864 = vsub.s32 0, %v5863
    %v5865 = vrot.slane %v5860, %v5864
    %v5867 = vadd.f32 %v5857, %v5865
    %v5868 = vmax.f32 %v5867, 0.0
    %v5869 = vld [vmem:[#allocation10] sm:$0xff]
    %v5870 = vld [vmem:[#allocation10 + $0x8] sm:$0xff]
    %v5871 = vld [vmem:[#allocation10 + $0x10] sm:$0xff]
    %v5872 = vld [vmem:[#allocation10 + $0x18] sm:$0xff]
    %v5873 = vld [vmem:[#allocation10 + $0x20] sm:$0xff]
    %v5874 = vld [vmem:[#allocation10 + $0x28] sm:$0xff]
    %v5875 = vld [vmem:[#allocation10 + $0x30] sm:$0xff]
    %v5876 = vld [vmem:[#allocation10 + $0x38] sm:$0xff]
    %v5877 = vld [vmem:[%s8] sm:$0x1]
    %v5879 = vlaneseq
    %v5880 = vshrl.u32 %v5879, 7
    %v5881 = vsub.s32 0, %v5880
    %v5882 = vrot.slane %v5877, %v5881
    %vm5884 = vcmask 523264
    %v5886 = vsel %vm5884, %v5868, 0
    %5888 = vmatprep.subr.mxu0 0.0
    %5889 = vmatpush1.msra.mxu0 0.0
    %5890 = vmatprep.subr.mxu0 0.0
    %5891 = vmatpush1.msra.mxu0 0.0
    %5892 = vmatprep.subr.mxu0 0.0
    %5893 = vmatpush1.msra.mxu0 0.0
    %5894 = vmatprep.subr.mxu0 0.0
    %5895 = vmatpush1.msra.mxu0 0.0
    %5896 = vmatprep.subr.mxu0 0.0
    %5897 = vmatpush1.msra.mxu0 0.0
    %5898 = vmatprep.subr.mxu0 0.0
    %5899 = vmatpush1.msra.mxu0 0.0
    %5900 = vmatprep.subr.mxu0 0.0
    %5901 = vmatpush1.msra.mxu0 0.0
    %5902 = vmatprep.subr.mxu0 0.0
    %5903 = vmatpush1.msra.mxu0 0.0
    %5904 = vmatprep.subr.mxu0 0.0
    %5905 = vmatpush1.msra.mxu0 %v5876
    %5906 = vmatprep.subr.mxu0 0.0
    %5907 = vmatpush1.msra.mxu0 %v5875
    %5908 = vmatprep.subr.mxu0 0.0
    %5909 = vmatpush1.msra.mxu0 %v5874
    %5910 = vmatprep.subr.mxu0 0.0
    %5911 = vmatpush1.msra.mxu0 %v5873
    %5912 = vmatprep.subr.mxu0 0.0
    %5913 = vmatpush1.msra.mxu0 %v5872
    %5914 = vmatprep.subr.mxu0 0.0
    %5915 = vmatpush1.msra.mxu0 %v5871
    %5916 = vmatprep.subr.mxu0 0.0
    %5917 = vmatpush1.msra.mxu0 %v5870
    %5918 = vmatprep.subr.mxu0 0.0
    %5919 = vmatpush1.msra.mxu0 %v5869
    %5920 = vmatprep.subr.mxu0 0.0
    %5921 = vmatpush2.msra.mxu0 0.0
    %5922 = vmatprep.subr.mxu0 0.0
    %5923 = vmatpush2.msra.mxu0 0.0
    %5924 = vmatprep.subr.mxu0 0.0
    %5925 = vmatpush2.msra.mxu0 0.0
    %5926 = vmatprep.subr.mxu0 0.0
    %5927 = vmatpush2.msra.mxu0 0.0
    %5928 = vmatprep.subr.mxu0 0.0
    %5929 = vmatpush2.msra.mxu0 0.0
    %5930 = vmatprep.subr.mxu0 0.0
    %5931 = vmatpush2.msra.mxu0 0.0
    %5932 = vmatprep.subr.mxu0 0.0
    %5933 = vmatpush2.msra.mxu0 0.0
    %5934 = vmatprep.subr.mxu0 0.0
    %5935 = vmatpush2.msra.mxu0 0.0
    %5936 = vmatprep.subr.mxu0 0.0
    %5937 = vmatpush2.msra.mxu0 0.0
    %5938 = vmatprep.subr.mxu0 0.0
    %5939 = vmatpush2.msra.mxu0 0.0
    %5940 = vmatprep.subr.mxu0 0.0
    %5941 = vmatpush2.msra.mxu0 0.0
    %5942 = vmatprep.subr.mxu0 0.0
    %5943 = vmatpush2.msra.mxu0 0.0
    %5944 = vmatprep.subr.mxu0 0.0
    %5945 = vmatpush2.msra.mxu0 0.0
    %5946 = vmatprep.subr.mxu0 0.0
    %5947 = vmatpush2.msra.mxu0 0.0
    %5948 = vmatprep.subr.mxu0 0.0
    %5949 = vmatpush2.msra.mxu0 0.0
    %5950 = vmatprep.subr.mxu0 0.0
    %5951 = vmatpush2.msra.mxu0 0.0
    %5952 = vmatprep.mubr.f32.mxu0 0.0
    %5953 = vmatmul.mubr.f32.gmra.mxu0 %v5886
    %v5954 = vpop.f32.mrf.mxu0
    %v5955 = vadd.f32 %v5882, %v5954
    %v5956 = vpop.f32.mrf.mxu0
    %5957 = vdwg.mxu0
    %v5958 = vmax.f32 %v5955, 0.0
    %v5959 = vld [vmem:[%s9] sm:$0xff]
    %v5960 = vld [vmem:[%s9 + $0x8] sm:$0xff]
    %v5961 = vld [vmem:[%s9 + $0x10] sm:$0xff]
    %v5962 = vld [vmem:[%s9 + $0x18] sm:$0xff]
    %v5963 = vld [vmem:[%s9 + $0x20] sm:$0xff]
    %v5964 = vld [vmem:[%s9 + $0x28] sm:$0xff]
    %v5965 = vld [vmem:[%s9 + $0x30] sm:$0xff]
    %v5966 = vld [vmem:[%s9 + $0x38] sm:$0xff]
    %v5967 = vld [vmem:[%s10] sm:$0x1]
    %v5969 = vlaneseq
    %v5970 = vshrl.u32 %v5969, 7
    %v5971 = vsub.s32 0, %v5970
    %v5972 = vrot.slane %v5967, %v5971
    %v5975 = vsel %vm5884, %v5958, 0
    %5977 = vmatprep.subr.mxu0 0.0
    %5978 = vmatpush1.msra.mxu0 0.0
    %5979 = vmatprep.subr.mxu0 0.0
    %5980 = vmatpush1.msra.mxu0 0.0
    %5981 = vmatprep.subr.mxu0 0.0
    %5982 = vmatpush1.msra.mxu0 0.0
    %5983 = vmatprep.subr.mxu0 0.0
    %5984 = vmatpush1.msra.mxu0 0.0
    %5985 = vmatprep.subr.mxu0 0.0
    %5986 = vmatpush1.msra.mxu0 0.0
    %5987 = vmatprep.subr.mxu0 0.0
    %5988 = vmatpush1.msra.mxu0 0.0
    %5989 = vmatprep.subr.mxu0 0.0
    %5990 = vmatpush1.msra.mxu0 0.0
    %5991 = vmatprep.subr.mxu0 0.0
    %5992 = vmatpush1.msra.mxu0 0.0
    %5993 = vmatprep.subr.mxu0 0.0
    %5994 = vmatpush1.msra.mxu0 %v5966
    %5995 = vmatprep.subr.mxu0 0.0
    %5996 = vmatpush1.msra.mxu0 %v5965
    %5997 = vmatprep.subr.mxu0 0.0
    %5998 = vmatpush1.msra.mxu0 %v5964
    %5999 = vmatprep.subr.mxu0 0.0
    %6000 = vmatpush1.msra.mxu0 %v5963
    %6001 = vmatprep.subr.mxu0 0.0
    %6002 = vmatpush1.msra.mxu0 %v5962
    %6003 = vmatprep.subr.mxu0 0.0
    %6004 = vmatpush1.msra.mxu0 %v5961
    %6005 = vmatprep.subr.mxu0 0.0
    %6006 = vmatpush1.msra.mxu0 %v5960
    %6007 = vmatprep.subr.mxu0 0.0
    %6008 = vmatpush1.msra.mxu0 %v5959
    %6009 = vmatprep.subr.mxu0 0.0
    %6010 = vmatpush2.msra.mxu0 0.0
    %6011 = vmatprep.subr.mxu0 0.0
    %6012 = vmatpush2.msra.mxu0 0.0
    %6013 = vmatprep.subr.mxu0 0.0
    %6014 = vmatpush2.msra.mxu0 0.0
    %6015 = vmatprep.subr.mxu0 0.0
    %6016 = vmatpush2.msra.mxu0 0.0
    %6017 = vmatprep.subr.mxu0 0.0
    %6018 = vmatpush2.msra.mxu0 0.0
    %6019 = vmatprep.subr.mxu0 0.0
    %6020 = vmatpush2.msra.mxu0 0.0
    %6021 = vmatprep.subr.mxu0 0.0
    %6022 = vmatpush2.msra.mxu0 0.0
    %6023 = vmatprep.subr.mxu0 0.0
    %6024 = vmatpush2.msra.mxu0 0.0
    %6025 = vmatprep.subr.mxu0 0.0
    %6026 = vmatpush2.msra.mxu0 0.0
    %6027 = vmatprep.subr.mxu0 0.0
    %6028 = vmatpush2.msra.mxu0 0.0
    %6029 = vmatprep.subr.mxu0 0.0
    %6030 = vmatpush2.msra.mxu0 0.0
    %6031 = vmatprep.subr.mxu0 0.0
    %6032 = vmatpush2.msra.mxu0 0.0
    %6033 = vmatprep.subr.mxu0 0.0
    %6034 = vmatpush2.msra.mxu0 0.0
    %6035 = vmatprep.subr.mxu0 0.0
    %6036 = vmatpush2.msra.mxu0 0.0
    %6037 = vmatprep.subr.mxu0 0.0
    %6038 = vmatpush2.msra.mxu0 0.0
    %6039 = vmatprep.subr.mxu0 0.0
    %6040 = vmatpush2.msra.mxu0 0.0
    %6041 = vmatprep.mubr.f32.mxu0 0.0
    %6042 = vmatmul.mubr.f32.gmra.mxu0 %v5975
    %v6043 = vpop.f32.mrf.mxu0
    %v6044 = vadd.f32 %v5972, %v6043
    %v6045 = vpop.f32.mrf.mxu0
    %6046 = vdwg.mxu0
    %v6047 = vmax.f32 %v6044, 0.0
    %vm6048 = vcmask 130048
    %6049 = vst.msk [vmem:[#allocation11] sm:$0xff] %vm6048, %v6047
    // Predicated region
    $region66: #{tpu_custom_call.1} parent=1 // pred_check
      _
    $region67: #{tpu_custom_call.1} parent=1 // pred_check_branch
      %6051 = sbr.rel (0) target = $region69
    $region68: #{tpu_custom_call.1} parent=1 // pred_region
      %s6053 = ssub.s32 128, 128
      %6054 = vsyncadd [#allocation4], %s6053
      %s6056 = sshll.u32 [#allocation11], 4
      %s6057 = int_to_ptr.vmem [resolvable:$true] %s6056
      %6059 = dma.vmem_to_hbm [thread:$0]  %s6057, 128, %s11, [#allocation4]
    $region69: #{tpu_custom_call.1} parent=1 // pred_fallthru
      _
    // Predicated region
    $region70: #{tpu_custom_call.1} parent=1 // pred_check
      _
    $region71: #{tpu_custom_call.1} parent=1 // pred_check_branch
      %6061 = sbr.rel (0) target = $region73
    $region72: #{tpu_custom_call.1} parent=1 // pred_region
      %6062 = dma.done [#allocation4], 128
    $region73: #{tpu_custom_call.1} parent=1 // pred_fallthru
      _
    %6063 = vsyncpa [#allocation3], 1
    %6064 = vsyncpa [#allocation6], 1
    %6065 = vsyncpa [#allocation9], 1
    %6066 = vsyncpa [#allocation4], 1

</llo_original>
